<compile_context>
chip_gen: v5e
topology: v5e:2x2
jax: 0.10.0
libtpu: 0.0.40
codegen_flags: <defaults>
</compile_context>

<pallas_src>
import functools

import jax
import jax.numpy as jnp
from jax.experimental import pallas as pl
from jax.experimental.pallas import tpu as pltpu

EPS = 1e-5


def _round_up(x, m):
    return (x + m - 1) // m * m


def _im2col_conv3x3(pad_ref, patch_ref, w_ref, b_ref, *, th, wdt, c, use_bf16):
    """3x3 conv of a padded (th+2, wp, c) tile as a single wide MXU matmul.

    pad_ref:   VMEM (th+2, wp, c) -- SAME-padded input tile (padding already zero)
    patch_ref: VMEM (th*wdt, 9*c) -- im2col scratch, built once per tile
    w_ref:     (9*c, c) tap-major weight matrix;  b_ref: (1, c) bias
    Returns (th*wdt, c) f32.
    """
    for di in range(3):
        for dj in range(3):
            t = di * 3 + dj
            patch_ref[:, t * c:(t + 1) * c] = (
                pad_ref[di:di + th, dj:dj + wdt, :].reshape(th * wdt, c))
    patches = patch_ref[...]
    wmat = w_ref[...]
    if use_bf16:
        patches = patches.astype(jnp.bfloat16)
        wmat = wmat.astype(jnp.bfloat16)
    acc = jnp.dot(patches, wmat, preferred_element_type=jnp.float32)
    return acc + b_ref[...]


def _conv1_stats_kernel(xc_ref, xt_ref, xb_ref, w_ref, b_ref,
                        y_ref, st_ref, pad_ref, patch_ref,
                        *, th, wdt, wp, c, use_bf16):
    g = pl.program_id(1)
    g_last = pl.num_programs(1) - 1

    # Assemble the (th+2, wp, c) padded tile: centre rows + 1-row halos.
    # (Width padding already present in the input; only image-boundary halo rows
    #  are forced to zero -- no full-buffer zero fill.)
    pad_ref[0] = jnp.where(g == 0, 0.0, xt_ref[0, 0])
    pad_ref[1:th + 1] = xc_ref[0]
    pad_ref[th + 1] = jnp.where(g == g_last, 0.0, xb_ref[0, 0])

    acc = _im2col_conv3x3(pad_ref, patch_ref, w_ref, b_ref,
                          th=th, wdt=wdt, c=c, use_bf16=use_bf16)

    # Fused single-pass partial BN statistics (sum, sum of squares) for this tile.
    st_ref[0, 0, 0:1, :] = jnp.sum(acc, axis=0, keepdims=True)
    st_ref[0, 0, 1:2, :] = jnp.sum(acc * acc, axis=0, keepdims=True)

    # Store conv1 output in the same padded-width layout (border columns zero so
    # the next conv's SAME padding is honoured).
    y_ref[0, :, 1:wdt + 1, :] = acc.reshape(th, wdt, c)
    y_ref[0, :, 0:1, :] = jnp.zeros((th, 1, c), jnp.float32)
    y_ref[0, :, wdt + 1:wp, :] = jnp.zeros((th, wp - wdt - 1, c), jnp.float32)


def _bnrelu_conv2_stats_kernel(m_ref, v_ref, yc_ref, yt_ref, yb_ref, w_ref, b_ref,
                               y2_ref, st_ref, pad_ref, patch_ref,
                               *, th, wdt, wp, c, use_bf16):
    g = pl.program_id(1)
    g_last = pl.num_programs(1) - 1
    mean = m_ref[...]          # (1, c)
    istd = v_ref[...]          # (1, c)

    # conv2's SAME zero padding applies *after* BN+ReLU -> mask padding columns.
    col = jax.lax.broadcasted_iota(jnp.int32, (wp, 1), 0)
    col_mask = ((col >= 1) & (col <= wdt)).astype(jnp.float32)   # (wp, 1)

    def bn_relu(v):            # v: (..., wp, c)
        return jnp.maximum((v - mean) * istd, 0.0) * col_mask

    pad_ref[0] = jnp.where(g == 0, 0.0, bn_relu(yt_ref[0, 0]))
    pad_ref[1:th + 1] = bn_relu(yc_ref[0])
    pad_ref[th + 1] = jnp.where(g == g_last, 0.0, bn_relu(yb_ref[0, 0]))

    acc = _im2col_conv3x3(pad_ref, patch_ref, w_ref, b_ref,
                          th=th, wdt=wdt, c=c, use_bf16=use_bf16)

    st_ref[0, 0, 0:1, :] = jnp.sum(acc, axis=0, keepdims=True)
    st_ref[0, 0, 1:2, :] = jnp.sum(acc * acc, axis=0, keepdims=True)

    y2_ref[0] = acc.reshape(th, wdt, c)


def _bn_residual_kernel(m_ref, v_ref, y_ref, x_ref, o_ref):
    # out = (y2 - mean2) * istd2 + x   on lane-dense (rows, W*C) slabs.
    o_ref[...] = (y_ref[...] - m_ref[...]) * v_ref[...] + x_ref[...]


def resblock_pallas(x_nhwc, w1, b1, w2, b2, *, tile_h=None, use_bf16_matmul=False):
    """SRGAN ResBlock forward.

    x_nhwc : (N, H, W, C) float32, NHWC (keeps the hot path transpose-free).
    w1, w2 : (C, C, 3, 3) OIHW conv weights;  b1, b2: (C,) biases.
    Returns (N, H, W, C) float32.
    """
    n, h, w, c = x_nhwc.shape
    k = w1.shape[-1]
    assert k == 3 and w1.shape == (c, c, k, k) and w2.shape == (c, c, k, k)

    if tile_h is None:
        tile_h = h
    assert h % tile_h == 0, "tile_h must divide H"
    g = h // tile_h
    wp = _round_up(w + 2, 8)            # sublane-aligned padded width

    f32 = jnp.float32
    x_nhwc = x_nhwc.astype(f32)

    # Width (SAME) padding + sublane alignment done once, outside the conv kernels.
    xpad = jnp.pad(x_nhwc, ((0, 0), (0, 0), (1, wp - w - 1), (0, 0)))

    def wmat(wt):                        # OIHW -> (9*Cin, Cout), tap-major
        return jnp.transpose(wt, (2, 3, 1, 0)).reshape(k * k * c, c).astype(f32)

    w1m, w2m = wmat(w1), wmat(w2)
    b1m = b1.reshape(1, c).astype(f32)
    b2m = b2.reshape(1, c).astype(f32)

    count = n * h * w

    def stats_to_mean_istd(st):          # st: (n, g, 2, c) per-tile partial sums
        tot = jnp.sum(st, axis=(0, 1))   # (2, c)  -- tiny XLA glue reduction
        mean = tot[0] / count
        var = tot[1] / count - mean * mean
        istd = jax.lax.rsqrt(var + EPS)
        return mean.reshape(1, c), istd.reshape(1, c)

    # ---- shared BlockSpecs for the two conv phases --------------------------
    center_spec = pl.BlockSpec((1, tile_h, wp, c), lambda i, j: (i, j, 0, 0))
    top_spec = pl.BlockSpec(
        (1, 1, wp, c), lambda i, j: (i, jnp.maximum(j * tile_h - 1, 0), 0, 0))
    bot_spec = pl.BlockSpec(
        (1, 1, wp, c), lambda i, j: (i, jnp.minimum((j + 1) * tile_h, h - 1), 0, 0))
    wspec = pl.BlockSpec((k * k * c, c), lambda i, j: (0, 0))
    bspec = pl.BlockSpec((1, c), lambda i, j: (0, 0))
    st_spec = pl.BlockSpec((1, 1, 2, c), lambda i, j: (i, j, 0, 0))

    scratch = [pltpu.VMEM((tile_h + 2, wp, c), f32),        # padded tile
               pltpu.VMEM((tile_h * w, k * k * c), f32)]    # im2col patches

    per_step_bytes = 4 * ((tile_h + 2) * wp * c              # x tile + halos
                          + tile_h * wp * c                  # y tile
                          + k * k * c * c + 3 * c)           # weights/bias/stats
    scratch_bytes = 4 * ((tile_h + 2) * wp * c + tile_h * w * k * k * c)
    vmem_limit = int(min(max(4 * per_step_bytes + 2 * scratch_bytes + (4 << 20),
                             16 << 20), 64 << 20))
    conv_params = pltpu.CompilerParams(
        dimension_semantics=("parallel", "parallel"),
        vmem_limit_bytes=vmem_limit)
    conv_cost = pl.CostEstimate(
        flops=2 * n * h * w * (k * k * c) * c + 4 * n * h * w * c,
        transcendentals=0,
        bytes_accessed=4 * (2 * n * h * wp * c + n * g * 2 * c + k * k * c * c + c))

    # ---- phase 1: conv1 + bias, per-tile partial BN stats --------------------
    p1 = functools.partial(_conv1_stats_kernel, th=tile_h, wdt=w, wp=wp, c=c,
                           use_bf16=use_bf16_matmul)
    y1, st1 = pl.pallas_call(
        p1,
        grid=(n, g),
        in_specs=[center_spec, top_spec, bot_spec, wspec, bspec],
        out_specs=[center_spec, st_spec],
        out_shape=[jax.ShapeDtypeStruct((n, h, wp, c), f32),
                   jax.ShapeDtypeStruct((n, g, 2, c), f32)],
        scratch_shapes=scratch,
        compiler_params=conv_params,
        cost_estimate=conv_cost,
    )(xpad, xpad, xpad, w1m, b1m)

    mean1, istd1 = stats_to_mean_istd(st1)

    # ---- phase 2: BN1 + ReLU + conv2 + bias, per-tile partial BN stats -------
    p2 = functools.partial(_bnrelu_conv2_stats_kernel, th=tile_h, wdt=w, wp=wp,
                           c=c, use_bf16=use_bf16_matmul)
    y2, st2 = pl.pallas_call(
        p2,
        grid=(n, g),
        in_specs=[bspec, bspec, center_spec, top_spec, bot_spec, wspec, bspec],
        out_specs=[pl.BlockSpec((1, tile_h, w, c), lambda i, j: (i, j, 0, 0)),
                   st_spec],
        out_shape=[jax.ShapeDtypeStruct((n, h, w, c), f32),
                   jax.ShapeDtypeStruct((n, g, 2, c), f32)],
        scratch_shapes=scratch,
        compiler_params=conv_params,
        cost_estimate=conv_cost,
    )(mean1, istd1, y1, y1, y1, w2m, b2m)

    mean2, istd2 = stats_to_mean_istd(st2)

    # ---- phase 3: BN2 + residual add on lane-dense (N*H, W*C) slabs ----------
    wc = w * c
    rows = n * h
    tr = tile_h                          # rows % tr == 0 since h % tile_h == 0
    y2f = y2.reshape(rows, wc)
    xf = x_nhwc.reshape(rows, wc)
    mean2t = jnp.tile(mean2, (1, w))     # (1, W*C) matching flattened channel order
    istd2t = jnp.tile(istd2, (1, w))

    row_spec = pl.BlockSpec((tr, wc), lambda i: (i, 0))
    vec_spec = pl.BlockSpec((1, wc), lambda i: (0, 0))
    outf = pl.pallas_call(
        _bn_residual_kernel,
        grid=(rows // tr,),
        in_specs=[vec_spec, vec_spec, row_spec, row_spec],
        out_specs=row_spec,
        out_shape=jax.ShapeDtypeStruct((rows, wc), f32),
        compiler_params=pltpu.CompilerParams(
            dimension_semantics=("parallel",),
            vmem_limit_bytes=int(min(max(16 * 4 * tr * wc, 16 << 20), 64 << 20))),
        cost_estimate=pl.CostEstimate(flops=3 * rows * wc, transcendentals=0,
                                      bytes_accessed=4 * 3 * rows * wc),
    )(mean2t, istd2t, y2f, xf)

    return outf.reshape(n, h, w, c)


def resblock_reference(x, w1, b1, w2, b2):
    """Pure-JAX reference matching the PyTorch module semantics (NCHW)."""
    def conv_bn(x, wt, b):
        y = jax.lax.conv_general_dilated(
            x, wt, window_strides=(1, 1), padding="SAME",
            dimension_numbers=("NCHW", "OIHW", "NCHW"))
        y = y + b[None, :, None, None]
        mean = jnp.mean(y, axis=(0, 2, 3), keepdims=True)
        var = jnp.mean((y - mean) ** 2, axis=(0, 2, 3), keepdims=True)
        return (y - mean) * jax.lax.rsqrt(var + EPS)

    h = jnp.maximum(conv_bn(x, w1, b1), 0.0)
    h = conv_bn(h, w2, b2)
    return h + x


if __name__ == "__main__":
    N, C, H, W, K = 2, 4, 16, 16, 3

    key = jax.random.PRNGKey(0)
    kx, kw1, kw2 = jax.random.split(key, 3)

    x_nchw = jax.random.normal(kx, (N, C, H, W), dtype=jnp.float32)
    # _conv init: weight ~ N(0, 0.02), bias = 0
    w1 = 0.02 * jax.random.normal(kw1, (C, C, K, K), dtype=jnp.float32)
    w2 = 0.02 * jax.random.normal(kw2, (C, C, K, K), dtype=jnp.float32)
    b1 = jnp.zeros((C,), jnp.float32)
    b2 = jnp.zeros((C,), jnp.float32)

    # Test glue only: the Pallas path is NHWC end-to-end.
    x_nhwc = jnp.transpose(x_nchw, (0, 2, 3, 1))

    fwd = jax.jit(functools.partial(resblock_pallas, tile_h=8))
    out_nhwc = jax.block_until_ready(fwd(x_nhwc, w1, b1, w2, b2))

    ref = resblock_reference(x_nchw, w1, b1, w2, b2)
    out_nchw = jnp.transpose(out_nhwc, (0, 3, 1, 2))
    assert out_nchw.shape == (N, C, H, W)
    assert jnp.allclose(out_nchw, ref, atol=1e-4, rtol=1e-4), "mismatch vs reference"

    print("KERNEL_OK")
</pallas_src>

<mosaic_0001>
module attributes {stable_mosaic.version = 11 : i64} {
  func.func @_conv1_stats_kernel(%arg0: i32, %arg1: i32, %arg2: memref<1x8x24x4xf32, #tpu.memory_space<vmem>>, %arg3: memref<1x1x24x4xf32, #tpu.memory_space<vmem>>, %arg4: memref<1x1x24x4xf32, #tpu.memory_space<vmem>>, %arg5: memref<36x4xf32, #tpu.memory_space<vmem>>, %arg6: memref<1x4xf32, #tpu.memory_space<vmem>>, %arg7: memref<1x8x24x4xf32, #tpu.memory_space<vmem>>, %arg8: memref<1x1x2x4xf32, #tpu.memory_space<vmem>>, %arg9: memref<10x24x4xf32, #tpu.memory_space<vmem>>, %arg10: memref<128x36xf32, #tpu.memory_space<vmem>>) attributes {dimension_semantics = [#tpu.dimension_semantics<parallel>, #tpu.dimension_semantics<parallel>], iteration_bounds = array<i64: 2, 2>, scalar_prefetch = 0 : i64, scratch_operands = 2 : i64, tpu.core_type = #tpu.core_type<tc>, window_params = [{transform_indices = @transform_0, window_bounds = array<i64: 1, 8, 24, 4>}, {transform_indices = @transform_1, window_bounds = array<i64: 1, 1, 24, 4>}, {transform_indices = @transform_2, window_bounds = array<i64: 1, 1, 24, 4>}, {pipeline_mode = #tpu.pipeline_mode<synchronous>, transform_indices = @transform_3, window_bounds = array<i64: 36, 4>}, {pipeline_mode = #tpu.pipeline_mode<synchronous>, transform_indices = @transform_4, window_bounds = array<i64: 1, 4>}, {transform_indices = @transform_5, window_bounds = array<i64: 1, 8, 24, 4>}, {transform_indices = @transform_6, window_bounds = array<i64: 1, 1, 2, 4>}]} {
    %c0_i32 = arith.constant 0 : i32
    %0 = arith.cmpi eq, %arg1, %c0_i32 : i32
    %c0 = arith.constant 0 : index
    %c0_0 = arith.constant 0 : index
    %c0_1 = arith.constant 0 : index
    %c0_2 = arith.constant 0 : index
    %1 = vector.load %arg3[%c0, %c0_0, %c0_1, %c0_2] : memref<1x1x24x4xf32, #tpu.memory_space<vmem>>, vector<1x1x24x4xf32>
    %2 = vector.shape_cast %1 : vector<1x1x24x4xf32> to vector<24x4xf32>
    %cst = arith.constant 0.000000e+00 : f32
    %3 = vector.broadcast %cst : f32 to vector<24x4xf32>
    %4 = arith.select %0, %3, %2 : vector<24x4xf32>
    %c0_3 = arith.constant 0 : index
    %c0_4 = arith.constant 0 : index
    %c0_5 = arith.constant 0 : index
    %5 = vector.load %arg9[%c0_3, %c0_4, %c0_5] : memref<10x24x4xf32, #tpu.memory_space<vmem>>, vector<1x24x4xf32>
    %6 = vector.shape_cast %5 : vector<1x24x4xf32> to vector<24x4xf32>
    %7 = vector.shape_cast %4 : vector<24x4xf32> to vector<1x24x4xf32>
    tpu.vector_store %arg9[%c0_3, %c0_4, %c0_5], %7 {strides = array<i32>} : memref<10x24x4xf32, #tpu.memory_space<vmem>>, vector<1x24x4xf32>,
    %c0_6 = arith.constant 0 : index
    %c0_7 = arith.constant 0 : index
    %c0_8 = arith.constant 0 : index
    %c0_9 = arith.constant 0 : index
    %8 = vector.load %arg2[%c0_6, %c0_7, %c0_8, %c0_9] : memref<1x8x24x4xf32, #tpu.memory_space<vmem>>, vector<1x8x24x4xf32>
    %9 = vector.shape_cast %8 : vector<1x8x24x4xf32> to vector<8x24x4xf32>
    %c1 = arith.constant 1 : index
    %c0_10 = arith.constant 0 : index
    %c0_11 = arith.constant 0 : index
    %10 = vector.load %arg9[%c1, %c0_10, %c0_11] : memref<10x24x4xf32, #tpu.memory_space<vmem>>, vector<8x24x4xf32>
    tpu.vector_store %arg9[%c1, %c0_10, %c0_11], %9 {strides = array<i32>} : memref<10x24x4xf32, #tpu.memory_space<vmem>>, vector<8x24x4xf32>,
    %c1_i32 = arith.constant 1 : i32
    %11 = arith.cmpi eq, %arg1, %c1_i32 : i32
    %c0_12 = arith.constant 0 : index
    %c0_13 = arith.constant 0 : index
    %c0_14 = arith.constant 0 : index
    %c0_15 = arith.constant 0 : index
    %12 = vector.load %arg4[%c0_12, %c0_13, %c0_14, %c0_15] : memref<1x1x24x4xf32, #tpu.memory_space<vmem>>, vector<1x1x24x4xf32>
    %13 = vector.shape_cast %12 : vector<1x1x24x4xf32> to vector<24x4xf32>
    %cst_16 = arith.constant 0.000000e+00 : f32
    %14 = vector.broadcast %cst_16 : f32 to vector<24x4xf32>
    %15 = arith.select %11, %14, %13 : vector<24x4xf32>
    %c9 = arith.constant 9 : index
    %c0_17 = arith.constant 0 : index
    %c0_18 = arith.constant 0 : index
    %16 = vector.load %arg9[%c9, %c0_17, %c0_18] : memref<10x24x4xf32, #tpu.memory_space<vmem>>, vector<1x24x4xf32>
    %17 = vector.shape_cast %16 : vector<1x24x4xf32> to vector<24x4xf32>
    %18 = vector.shape_cast %15 : vector<24x4xf32> to vector<1x24x4xf32>
    tpu.vector_store %arg9[%c9, %c0_17, %c0_18], %18 {strides = array<i32>} : memref<10x24x4xf32, #tpu.memory_space<vmem>>, vector<1x24x4xf32>,
    %c0_19 = arith.constant 0 : index
    %c0_20 = arith.constant 0 : index
    %c0_21 = arith.constant 0 : index
    %19 = vector.load %arg9[%c0_19, %c0_20, %c0_21] : memref<10x24x4xf32, #tpu.memory_space<vmem>>, vector<8x16x4xf32>
    %20 = vector.shape_cast %19 : vector<8x16x4xf32> to vector<128x4xf32>
    %c0_22 = arith.constant 0 : index
    %c0_23 = arith.constant 0 : index
    %21 = vector.load %arg10[%c0_22, %c0_23] : memref<128x36xf32, #tpu.memory_space<vmem>>, vector<128x4xf32>
    tpu.vector_store %arg10[%c0_22, %c0_23], %20 {strides = array<i32>} : memref<128x36xf32, #tpu.memory_space<vmem>>, vector<128x4xf32>,
    %c0_24 = arith.constant 0 : index
    %c1_25 = arith.constant 1 : index
    %c0_26 = arith.constant 0 : index
    %22 = vector.load %arg9[%c0_24, %c1_25, %c0_26] : memref<10x24x4xf32, #tpu.memory_space<vmem>>, vector<8x16x4xf32>
    %23 = vector.shape_cast %22 : vector<8x16x4xf32> to vector<128x4xf32>
    %c0_27 = arith.constant 0 : index
    %c4 = arith.constant 4 : index
    %24 = vector.load %arg10[%c0_27, %c4] : memref<128x36xf32, #tpu.memory_space<vmem>>, vector<128x4xf32>
    tpu.vector_store %arg10[%c0_27, %c4], %23 {strides = array<i32>} : memref<128x36xf32, #tpu.memory_space<vmem>>, vector<128x4xf32>,
    %c0_28 = arith.constant 0 : index
    %c2 = arith.constant 2 : index
    %c0_29 = arith.constant 0 : index
    %25 = vector.load %arg9[%c0_28, %c2, %c0_29] : memref<10x24x4xf32, #tpu.memory_space<vmem>>, vector<8x16x4xf32>
    %26 = vector.shape_cast %25 : vector<8x16x4xf32> to vector<128x4xf32>
    %c0_30 = arith.constant 0 : index
    %c8 = arith.constant 8 : index
    %27 = vector.load %arg10[%c0_30, %c8] : memref<128x36xf32, #tpu.memory_space<vmem>>, vector<128x4xf32>
    tpu.vector_store %arg10[%c0_30, %c8], %26 {strides = array<i32>} : memref<128x36xf32, #tpu.memory_space<vmem>>, vector<128x4xf32>,
    %c1_31 = arith.constant 1 : index
    %c0_32 = arith.constant 0 : index
    %c0_33 = arith.constant 0 : index
    %28 = vector.load %arg9[%c1_31, %c0_32, %c0_33] : memref<10x24x4xf32, #tpu.memory_space<vmem>>, vector<8x16x4xf32>
    %29 = vector.shape_cast %28 : vector<8x16x4xf32> to vector<128x4xf32>
    %c0_34 = arith.constant 0 : index
    %c12 = arith.constant 12 : index
    %30 = vector.load %arg10[%c0_34, %c12] : memref<128x36xf32, #tpu.memory_space<vmem>>, vector<128x4xf32>
    tpu.vector_store %arg10[%c0_34, %c12], %29 {strides = array<i32>} : memref<128x36xf32, #tpu.memory_space<vmem>>, vector<128x4xf32>,
    %c1_35 = arith.constant 1 : index
    %c1_36 = arith.constant 1 : index
    %c0_37 = arith.constant 0 : index
    %31 = vector.load %arg9[%c1_35, %c1_36, %c0_37] : memref<10x24x4xf32, #tpu.memory_space<vmem>>, vector<8x16x4xf32>
    %32 = vector.shape_cast %31 : vector<8x16x4xf32> to vector<128x4xf32>
    %c0_38 = arith.constant 0 : index
    %c16 = arith.constant 16 : index
    %33 = vector.load %arg10[%c0_38, %c16] : memref<128x36xf32, #tpu.memory_space<vmem>>, vector<128x4xf32>
    tpu.vector_store %arg10[%c0_38, %c16], %32 {strides = array<i32>} : memref<128x36xf32, #tpu.memory_space<vmem>>, vector<128x4xf32>,
    %c1_39 = arith.constant 1 : index
    %c2_40 = arith.constant 2 : index
    %c0_41 = arith.constant 0 : index
    %34 = vector.load %arg9[%c1_39, %c2_40, %c0_41] : memref<10x24x4xf32, #tpu.memory_space<vmem>>, vector<8x16x4xf32>
    %35 = vector.shape_cast %34 : vector<8x16x4xf32> to vector<128x4xf32>
    %c0_42 = arith.constant 0 : index
    %c20 = arith.constant 20 : index
    %36 = vector.load %arg10[%c0_42, %c20] : memref<128x36xf32, #tpu.memory_space<vmem>>, vector<128x4xf32>
    tpu.vector_store %arg10[%c0_42, %c20], %35 {strides = array<i32>} : memref<128x36xf32, #tpu.memory_space<vmem>>, vector<128x4xf32>,
    %c2_43 = arith.constant 2 : index
    %c0_44 = arith.constant 0 : index
    %c0_45 = arith.constant 0 : index
    %37 = vector.load %arg9[%c2_43, %c0_44, %c0_45] : memref<10x24x4xf32, #tpu.memory_space<vmem>>, vector<8x16x4xf32>
    %38 = vector.shape_cast %37 : vector<8x16x4xf32> to vector<128x4xf32>
    %c0_46 = arith.constant 0 : index
    %c24 = arith.constant 24 : index
    %39 = vector.load %arg10[%c0_46, %c24] : memref<128x36xf32, #tpu.memory_space<vmem>>, vector<128x4xf32>
    tpu.vector_store %arg10[%c0_46, %c24], %38 {strides = array<i32>} : memref<128x36xf32, #tpu.memory_space<vmem>>, vector<128x4xf32>,
    %c2_47 = arith.constant 2 : index
    %c1_48 = arith.constant 1 : index
    %c0_49 = arith.constant 0 : index
    %40 = vector.load %arg9[%c2_47, %c1_48, %c0_49] : memref<10x24x4xf32, #tpu.memory_space<vmem>>, vector<8x16x4xf32>
    %41 = vector.shape_cast %40 : vector<8x16x4xf32> to vector<128x4xf32>
    %c0_50 = arith.constant 0 : index
    %c28 = arith.constant 28 : index
    %42 = vector.load %arg10[%c0_50, %c28] : memref<128x36xf32, #tpu.memory_space<vmem>>, vector<128x4xf32>
    tpu.vector_store %arg10[%c0_50, %c28], %41 {strides = array<i32>} : memref<128x36xf32, #tpu.memory_space<vmem>>, vector<128x4xf32>,
    %c2_51 = arith.constant 2 : index
    %c2_52 = arith.constant 2 : index
    %c0_53 = arith.constant 0 : index
    %43 = vector.load %arg9[%c2_51, %c2_52, %c0_53] : memref<10x24x4xf32, #tpu.memory_space<vmem>>, vector<8x16x4xf32>
    %44 = vector.shape_cast %43 : vector<8x16x4xf32> to vector<128x4xf32>
    %c0_54 = arith.constant 0 : index
    %c32 = arith.constant 32 : index
    %45 = vector.load %arg10[%c0_54, %c32] : memref<128x36xf32, #tpu.memory_space<vmem>>, vector<128x4xf32>
    tpu.vector_store %arg10[%c0_54, %c32], %44 {strides = array<i32>} : memref<128x36xf32, #tpu.memory_space<vmem>>, vector<128x4xf32>,
    %c0_55 = arith.constant 0 : index
    %c0_56 = arith.constant 0 : index
    %46 = vector.load %arg10[%c0_55, %c0_56] : memref<128x36xf32, #tpu.memory_space<vmem>>, vector<128x36xf32>
    %c0_57 = arith.constant 0 : index
    %c0_58 = arith.constant 0 : index
    %47 = vector.load %arg5[%c0_57, %c0_58] : memref<36x4xf32, #tpu.memory_space<vmem>>, vector<36x4xf32>
    %cst_59 = arith.constant dense<0.000000e+00> : vector<128x4xf32>
    %48 = tpu.matmul %46, %47, %cst_59 {dimension_numbers = #tpu.dot_dimension_numbers<[1], [0], [0], [1], [0, 0, 1, 1], [], []>} : vector<128x36xf32>, vector<36x4xf32>, vector<128x4xf32> -> vector<128x4xf32>
    %c0_60 = arith.constant 0 : index
    %c0_61 = arith.constant 0 : index
    %49 = vector.load %arg6[%c0_60, %c0_61] : memref<1x4xf32, #tpu.memory_space<vmem>>, vector<1x4xf32>
    %50 = vector.broadcast %49 : vector<1x4xf32> to vector<128x4xf32>
    %51 = arith.addf %48, %50 : vector<128x4xf32>
    %cst_62 = arith.constant dense<0.000000e+00> : vector<4xf32>
    %52 = vector.multi_reduction <add>, %51, %cst_62 [0] : vector<128x4xf32> to vector<4xf32>
    %53 = vector.shape_cast %52 : vector<4xf32> to vector<1x4xf32>
    %c0_63 = arith.constant 0 : index
    %c0_64 = arith.constant 0 : index
    %c0_65 = arith.constant 0 : index
    %c0_66 = arith.constant 0 : index
    %54 = vector.load %arg8[%c0_63, %c0_64, %c0_65, %c0_66] : memref<1x1x2x4xf32, #tpu.memory_space<vmem>>, vector<1x1x1x4xf32>
    %55 = vector.shape_cast %54 : vector<1x1x1x4xf32> to vector<1x4xf32>
    %56 = vector.shape_cast %53 : vector<1x4xf32> to vector<1x1x1x4xf32>
    tpu.vector_store %arg8[%c0_63, %c0_64, %c0_65, %c0_66], %56 {strides = array<i32>} : memref<1x1x2x4xf32, #tpu.memory_space<vmem>>, vector<1x1x1x4xf32>,
    %57 = arith.mulf %51, %51 : vector<128x4xf32>
    %cst_67 = arith.constant dense<0.000000e+00> : vector<4xf32>
    %58 = vector.multi_reduction <add>, %57, %cst_67 [0] : vector<128x4xf32> to vector<4xf32>
    %59 = vector.shape_cast %58 : vector<4xf32> to vector<1x4xf32>
    %c0_68 = arith.constant 0 : index
    %c0_69 = arith.constant 0 : index
    %c1_70 = arith.constant 1 : index
    %c0_71 = arith.constant 0 : index
    %60 = vector.load %arg8[%c0_68, %c0_69, %c1_70, %c0_71] : memref<1x1x2x4xf32, #tpu.memory_space<vmem>>, vector<1x1x1x4xf32>
    %61 = vector.shape_cast %60 : vector<1x1x1x4xf32> to vector<1x4xf32>
    %62 = vector.shape_cast %59 : vector<1x4xf32> to vector<1x1x1x4xf32>
    tpu.vector_store %arg8[%c0_68, %c0_69, %c1_70, %c0_71], %62 {strides = array<i32>} : memref<1x1x2x4xf32, #tpu.memory_space<vmem>>, vector<1x1x1x4xf32>,
    %63 = vector.shape_cast %51 : vector<128x4xf32> to vector<8x16x4xf32>
    %c0_72 = arith.constant 0 : index
    %c0_73 = arith.constant 0 : index
    %c1_74 = arith.constant 1 : index
    %c0_75 = arith.constant 0 : index
    %64 = vector.load %arg7[%c0_72, %c0_73, %c1_74, %c0_75] : memref<1x8x24x4xf32, #tpu.memory_space<vmem>>, vector<1x8x16x4xf32>
    %65 = vector.shape_cast %64 : vector<1x8x16x4xf32> to vector<8x16x4xf32>
    %66 = vector.shape_cast %63 : vector<8x16x4xf32> to vector<1x8x16x4xf32>
    tpu.vector_store %arg7[%c0_72, %c0_73, %c1_74, %c0_75], %66 {strides = array<i32>} : memref<1x8x24x4xf32, #tpu.memory_space<vmem>>, vector<1x8x16x4xf32>,
    %cst_76 = arith.constant 0.000000e+00 : f32
    %67 = vector.broadcast %cst_76 : f32 to vector<8x1x4xf32>
    %c0_77 = arith.constant 0 : index
    %c0_78 = arith.constant 0 : index
    %c0_79 = arith.constant 0 : index
    %c0_80 = arith.constant 0 : index
    %68 = vector.load %arg7[%c0_77, %c0_78, %c0_79, %c0_80] : memref<1x8x24x4xf32, #tpu.memory_space<vmem>>, vector<1x8x1x4xf32>
    %69 = vector.shape_cast %68 : vector<1x8x1x4xf32> to vector<8x1x4xf32>
    %70 = vector.shape_cast %67 : vector<8x1x4xf32> to vector<1x8x1x4xf32>
    tpu.vector_store %arg7[%c0_77, %c0_78, %c0_79, %c0_80], %70 {strides = array<i32>} : memref<1x8x24x4xf32, #tpu.memory_space<vmem>>, vector<1x8x1x4xf32>,
    %cst_81 = arith.constant 0.000000e+00 : f32
    %71 = vector.broadcast %cst_81 : f32 to vector<8x7x4xf32>
    %c0_82 = arith.constant 0 : index
    %c0_83 = arith.constant 0 : index
    %c17 = arith.constant 17 : index
    %c0_84 = arith.constant 0 : index
    %72 = vector.load %arg7[%c0_82, %c0_83, %c17, %c0_84] : memref<1x8x24x4xf32, #tpu.memory_space<vmem>>, vector<1x8x7x4xf32>
    %73 = vector.shape_cast %72 : vector<1x8x7x4xf32> to vector<8x7x4xf32>
    %74 = vector.shape_cast %71 : vector<8x7x4xf32> to vector<1x8x7x4xf32>
    tpu.vector_store %arg7[%c0_82, %c0_83, %c17, %c0_84], %74 {strides = array<i32>} : memref<1x8x24x4xf32, #tpu.memory_space<vmem>>, vector<1x8x7x4xf32>,
    return
  }
  func.func @transform_0(%arg0: i32, %arg1: i32) -> (i32, i32, i32, i32) {
    %c0_i32 = arith.constant 0 : i32
    %c0_i32_0 = arith.constant 0 : i32
    %c0_i32_1 = arith.constant 0 : i32
    return %arg0, %arg1, %c0_i32, %c0_i32_0 : i32, i32, i32, i32
  }
  func.func @transform_1(%arg0: i32, %arg1: i32) -> (i32, i32, i32, i32) {
    %c8_i32 = arith.constant 8 : i32
    %0 = arith.muli %arg1, %c8_i32 : i32
    %c1_i32 = arith.constant 1 : i32
    %1 = arith.subi %0, %c1_i32 : i32
    %c0_i32 = arith.constant 0 : i32
    %2 = arith.maxsi %1, %c0_i32 : i32
    %c0_i32_0 = arith.constant 0 : i32
    %c0_i32_1 = arith.constant 0 : i32
    %c0_i32_2 = arith.constant 0 : i32
    return %arg0, %2, %c0_i32_0, %c0_i32_1 : i32, i32, i32, i32
  }
  func.func @transform_2(%arg0: i32, %arg1: i32) -> (i32, i32, i32, i32) {
    %c1_i32 = arith.constant 1 : i32
    %0 = arith.addi %arg1, %c1_i32 : i32
    %c8_i32 = arith.constant 8 : i32
    %1 = arith.muli %0, %c8_i32 : i32
    %c15_i32 = arith.constant 15 : i32
    %2 = arith.minsi %1, %c15_i32 : i32
    %c0_i32 = arith.constant 0 : i32
    %c0_i32_0 = arith.constant 0 : i32
    %c0_i32_1 = arith.constant 0 : i32
    return %arg0, %2, %c0_i32, %c0_i32_0 : i32, i32, i32, i32
  }
  func.func @transform_3(%arg0: i32, %arg1: i32) -> (i32, i32) {
    %c0_i32 = arith.constant 0 : i32
    %c0_i32_0 = arith.constant 0 : i32
    %c0_i32_1 = arith.constant 0 : i32
    return %c0_i32, %c0_i32_0 : i32, i32
  }
  func.func @transform_4(%arg0: i32, %arg1: i32) -> (i32, i32) {
    %c0_i32 = arith.constant 0 : i32
    %c0_i32_0 = arith.constant 0 : i32
    %c0_i32_1 = arith.constant 0 : i32
    return %c0_i32, %c0_i32_0 : i32, i32
  }
  func.func @transform_5(%arg0: i32, %arg1: i32) -> (i32, i32, i32, i32) {
    %c0_i32 = arith.constant 0 : i32
    %c0_i32_0 = arith.constant 0 : i32
    %c0_i32_1 = arith.constant 0 : i32
    return %arg0, %arg1, %c0_i32, %c0_i32_0 : i32, i32, i32, i32
  }
  func.func @transform_6(%arg0: i32, %arg1: i32) -> (i32, i32, i32, i32) {
    %c0_i32 = arith.constant 0 : i32
    %c0_i32_0 = arith.constant 0 : i32
    %c0_i32_1 = arith.constant 0 : i32
    return %arg0, %arg1, %c0_i32, %c0_i32_0 : i32, i32, i32, i32
  }
}

module attributes {stable_mosaic.version = 11 : i64} {
  func.func @_bnrelu_conv2_stats_kernel(%arg0: i32, %arg1: i32, %arg2: memref<1x4xf32, #tpu.memory_space<vmem>>, %arg3: memref<1x4xf32, #tpu.memory_space<vmem>>, %arg4: memref<1x8x24x4xf32, #tpu.memory_space<vmem>>, %arg5: memref<1x1x24x4xf32, #tpu.memory_space<vmem>>, %arg6: memref<1x1x24x4xf32, #tpu.memory_space<vmem>>, %arg7: memref<36x4xf32, #tpu.memory_space<vmem>>, %arg8: memref<1x4xf32, #tpu.memory_space<vmem>>, %arg9: memref<1x8x16x4xf32, #tpu.memory_space<vmem>>, %arg10: memref<1x1x2x4xf32, #tpu.memory_space<vmem>>, %arg11: memref<10x24x4xf32, #tpu.memory_space<vmem>>, %arg12: memref<128x36xf32, #tpu.memory_space<vmem>>) attributes {dimension_semantics = [#tpu.dimension_semantics<parallel>, #tpu.dimension_semantics<parallel>], iteration_bounds = array<i64: 2, 2>, scalar_prefetch = 0 : i64, scratch_operands = 2 : i64, tpu.core_type = #tpu.core_type<tc>, window_params = [{pipeline_mode = #tpu.pipeline_mode<synchronous>, transform_indices = @transform_0, window_bounds = array<i64: 1, 4>}, {pipeline_mode = #tpu.pipeline_mode<synchronous>, transform_indices = @transform_1, window_bounds = array<i64: 1, 4>}, {transform_indices = @transform_2, window_bounds = array<i64: 1, 8, 24, 4>}, {transform_indices = @transform_3, window_bounds = array<i64: 1, 1, 24, 4>}, {transform_indices = @transform_4, window_bounds = array<i64: 1, 1, 24, 4>}, {pipeline_mode = #tpu.pipeline_mode<synchronous>, transform_indices = @transform_5, window_bounds = array<i64: 36, 4>}, {pipeline_mode = #tpu.pipeline_mode<synchronous>, transform_indices = @transform_6, window_bounds = array<i64: 1, 4>}, {transform_indices = @transform_7, window_bounds = array<i64: 1, 8, 16, 4>}, {transform_indices = @transform_8, window_bounds = array<i64: 1, 1, 2, 4>}]} {
    %c0 = arith.constant 0 : index
    %c0_0 = arith.constant 0 : index
    %0 = vector.load %arg2[%c0, %c0_0] : memref<1x4xf32, #tpu.memory_space<vmem>>, vector<1x4xf32>
    %c0_1 = arith.constant 0 : index
    %c0_2 = arith.constant 0 : index
    %1 = vector.load %arg3[%c0_1, %c0_2] : memref<1x4xf32, #tpu.memory_space<vmem>>, vector<1x4xf32>
    %2 = tpu.iota {dimensions = array<i32: 0>} : vector<24x1xi32>
    %c1_i32 = arith.constant 1 : i32
    %3 = vector.broadcast %c1_i32 : i32 to vector<24x1xi32>
    %4 = arith.cmpi sge, %2, %3 : vector<24x1xi32>
    %c16_i32 = arith.constant 16 : i32
    %5 = vector.broadcast %c16_i32 : i32 to vector<24x1xi32>
    %6 = arith.cmpi sle, %2, %5 : vector<24x1xi32>
    %7 = arith.andi %4, %6 : vector<24x1xi1>
    %8 = arith.extui %7 : vector<24x1xi1> to vector<24x1xi32>
    %9 = arith.sitofp %8 : vector<24x1xi32> to vector<24x1xf32>
    %c0_i32 = arith.constant 0 : i32
    %10 = arith.cmpi eq, %arg1, %c0_i32 : i32
    %c0_3 = arith.constant 0 : index
    %c0_4 = arith.constant 0 : index
    %c0_5 = arith.constant 0 : index
    %c0_6 = arith.constant 0 : index
    %11 = vector.load %arg5[%c0_3, %c0_4, %c0_5, %c0_6] : memref<1x1x24x4xf32, #tpu.memory_space<vmem>>, vector<1x1x24x4xf32>
    %12 = vector.shape_cast %11 : vector<1x1x24x4xf32> to vector<24x4xf32>
    %13 = vector.broadcast %0 : vector<1x4xf32> to vector<24x4xf32>
    %14 = arith.subf %12, %13 : vector<24x4xf32>
    %15 = vector.broadcast %1 : vector<1x4xf32> to vector<24x4xf32>
    %16 = arith.mulf %14, %15 : vector<24x4xf32>
    %cst = arith.constant 0.000000e+00 : f32
    %17 = vector.broadcast %cst : f32 to vector<24x4xf32>
    %18 = arith.maximumf %16, %17 : vector<24x4xf32>
    %19 = vector.broadcast %9 : vector<24x1xf32> to vector<24x4xf32>
    %20 = arith.mulf %18, %19 : vector<24x4xf32>
    %cst_7 = arith.constant 0.000000e+00 : f32
    %21 = vector.broadcast %cst_7 : f32 to vector<24x4xf32>
    %22 = arith.select %10, %21, %20 : vector<24x4xf32>
    %c0_8 = arith.constant 0 : index
    %c0_9 = arith.constant 0 : index
    %c0_10 = arith.constant 0 : index
    %23 = vector.load %arg11[%c0_8, %c0_9, %c0_10] : memref<10x24x4xf32, #tpu.memory_space<vmem>>, vector<1x24x4xf32>
    %24 = vector.shape_cast %23 : vector<1x24x4xf32> to vector<24x4xf32>
    %25 = vector.shape_cast %22 : vector<24x4xf32> to vector<1x24x4xf32>
    tpu.vector_store %arg11[%c0_8, %c0_9, %c0_10], %25 {strides = array<i32>} : memref<10x24x4xf32, #tpu.memory_space<vmem>>, vector<1x24x4xf32>,
    %c0_11 = arith.constant 0 : index
    %c0_12 = arith.constant 0 : index
    %c0_13 = arith.constant 0 : index
    %c0_14 = arith.constant 0 : index
    %26 = vector.load %arg4[%c0_11, %c0_12, %c0_13, %c0_14] : memref<1x8x24x4xf32, #tpu.memory_space<vmem>>, vector<1x8x24x4xf32>
    %27 = vector.shape_cast %26 : vector<1x8x24x4xf32> to vector<8x24x4xf32>
    %28 = vector.shape_cast %0 : vector<1x4xf32> to vector<1x1x4xf32>
    %29 = vector.broadcast %28 : vector<1x1x4xf32> to vector<8x24x4xf32>
    %30 = arith.subf %27, %29 : vector<8x24x4xf32>
    %31 = vector.shape_cast %1 : vector<1x4xf32> to vector<1x1x4xf32>
    %32 = vector.broadcast %31 : vector<1x1x4xf32> to vector<8x24x4xf32>
    %33 = arith.mulf %30, %32 : vector<8x24x4xf32>
    %cst_15 = arith.constant 0.000000e+00 : f32
    %34 = vector.broadcast %cst_15 : f32 to vector<8x24x4xf32>
    %35 = arith.maximumf %33, %34 : vector<8x24x4xf32>
    %36 = vector.shape_cast %9 : vector<24x1xf32> to vector<1x24x1xf32>
    %37 = vector.broadcast %36 : vector<1x24x1xf32> to vector<8x24x4xf32>
    %38 = arith.mulf %35, %37 : vector<8x24x4xf32>
    %c1 = arith.constant 1 : index
    %c0_16 = arith.constant 0 : index
    %c0_17 = arith.constant 0 : index
    %39 = vector.load %arg11[%c1, %c0_16, %c0_17] : memref<10x24x4xf32, #tpu.memory_space<vmem>>, vector<8x24x4xf32>
    tpu.vector_store %arg11[%c1, %c0_16, %c0_17], %38 {strides = array<i32>} : memref<10x24x4xf32, #tpu.memory_space<vmem>>, vector<8x24x4xf32>,
    %c1_i32_18 = arith.constant 1 : i32
    %40 = arith.cmpi eq, %arg1, %c1_i32_18 : i32
    %c0_19 = arith.constant 0 : index
    %c0_20 = arith.constant 0 : index
    %c0_21 = arith.constant 0 : index
    %c0_22 = arith.constant 0 : index
    %41 = vector.load %arg6[%c0_19, %c0_20, %c0_21, %c0_22] : memref<1x1x24x4xf32, #tpu.memory_space<vmem>>, vector<1x1x24x4xf32>
    %42 = vector.shape_cast %41 : vector<1x1x24x4xf32> to vector<24x4xf32>
    %43 = vector.broadcast %0 : vector<1x4xf32> to vector<24x4xf32>
    %44 = arith.subf %42, %43 : vector<24x4xf32>
    %45 = vector.broadcast %1 : vector<1x4xf32> to vector<24x4xf32>
    %46 = arith.mulf %44, %45 : vector<24x4xf32>
    %cst_23 = arith.constant 0.000000e+00 : f32
    %47 = vector.broadcast %cst_23 : f32 to vector<24x4xf32>
    %48 = arith.maximumf %46, %47 : vector<24x4xf32>
    %49 = vector.broadcast %9 : vector<24x1xf32> to vector<24x4xf32>
    %50 = arith.mulf %48, %49 : vector<24x4xf32>
    %cst_24 = arith.constant 0.000000e+00 : f32
    %51 = vector.broadcast %cst_24 : f32 to vector<24x4xf32>
    %52 = arith.select %40, %51, %50 : vector<24x4xf32>
    %c9 = arith.constant 9 : index
    %c0_25 = arith.constant 0 : index
    %c0_26 = arith.constant 0 : index
    %53 = vector.load %arg11[%c9, %c0_25, %c0_26] : memref<10x24x4xf32, #tpu.memory_space<vmem>>, vector<1x24x4xf32>
    %54 = vector.shape_cast %53 : vector<1x24x4xf32> to vector<24x4xf32>
    %55 = vector.shape_cast %52 : vector<24x4xf32> to vector<1x24x4xf32>
    tpu.vector_store %arg11[%c9, %c0_25, %c0_26], %55 {strides = array<i32>} : memref<10x24x4xf32, #tpu.memory_space<vmem>>, vector<1x24x4xf32>,
    %c0_27 = arith.constant 0 : index
    %c0_28 = arith.constant 0 : index
    %c0_29 = arith.constant 0 : index
    %56 = vector.load %arg11[%c0_27, %c0_28, %c0_29] : memref<10x24x4xf32, #tpu.memory_space<vmem>>, vector<8x16x4xf32>
    %57 = vector.shape_cast %56 : vector<8x16x4xf32> to vector<128x4xf32>
    %c0_30 = arith.constant 0 : index
    %c0_31 = arith.constant 0 : index
    %58 = vector.load %arg12[%c0_30, %c0_31] : memref<128x36xf32, #tpu.memory_space<vmem>>, vector<128x4xf32>
    tpu.vector_store %arg12[%c0_30, %c0_31], %57 {strides = array<i32>} : memref<128x36xf32, #tpu.memory_space<vmem>>, vector<128x4xf32>,
    %c0_32 = arith.constant 0 : index
    %c1_33 = arith.constant 1 : index
    %c0_34 = arith.constant 0 : index
    %59 = vector.load %arg11[%c0_32, %c1_33, %c0_34] : memref<10x24x4xf32, #tpu.memory_space<vmem>>, vector<8x16x4xf32>
    %60 = vector.shape_cast %59 : vector<8x16x4xf32> to vector<128x4xf32>
    %c0_35 = arith.constant 0 : index
    %c4 = arith.constant 4 : index
    %61 = vector.load %arg12[%c0_35, %c4] : memref<128x36xf32, #tpu.memory_space<vmem>>, vector<128x4xf32>
    tpu.vector_store %arg12[%c0_35, %c4], %60 {strides = array<i32>} : memref<128x36xf32, #tpu.memory_space<vmem>>, vector<128x4xf32>,
    %c0_36 = arith.constant 0 : index
    %c2 = arith.constant 2 : index
    %c0_37 = arith.constant 0 : index
    %62 = vector.load %arg11[%c0_36, %c2, %c0_37] : memref<10x24x4xf32, #tpu.memory_space<vmem>>, vector<8x16x4xf32>
    %63 = vector.shape_cast %62 : vector<8x16x4xf32> to vector<128x4xf32>
    %c0_38 = arith.constant 0 : index
    %c8 = arith.constant 8 : index
    %64 = vector.load %arg12[%c0_38, %c8] : memref<128x36xf32, #tpu.memory_space<vmem>>, vector<128x4xf32>
    tpu.vector_store %arg12[%c0_38, %c8], %63 {strides = array<i32>} : memref<128x36xf32, #tpu.memory_space<vmem>>, vector<128x4xf32>,
    %c1_39 = arith.constant 1 : index
    %c0_40 = arith.constant 0 : index
    %c0_41 = arith.constant 0 : index
    %65 = vector.load %arg11[%c1_39, %c0_40, %c0_41] : memref<10x24x4xf32, #tpu.memory_space<vmem>>, vector<8x16x4xf32>
    %66 = vector.shape_cast %65 : vector<8x16x4xf32> to vector<128x4xf32>
    %c0_42 = arith.constant 0 : index
    %c12 = arith.constant 12 : index
    %67 = vector.load %arg12[%c0_42, %c12] : memref<128x36xf32, #tpu.memory_space<vmem>>, vector<128x4xf32>
    tpu.vector_store %arg12[%c0_42, %c12], %66 {strides = array<i32>} : memref<128x36xf32, #tpu.memory_space<vmem>>, vector<128x4xf32>,
    %c1_43 = arith.constant 1 : index
    %c1_44 = arith.constant 1 : index
    %c0_45 = arith.constant 0 : index
    %68 = vector.load %arg11[%c1_43, %c1_44, %c0_45] : memref<10x24x4xf32, #tpu.memory_space<vmem>>, vector<8x16x4xf32>
    %69 = vector.shape_cast %68 : vector<8x16x4xf32> to vector<128x4xf32>
    %c0_46 = arith.constant 0 : index
    %c16 = arith.constant 16 : index
    %70 = vector.load %arg12[%c0_46, %c16] : memref<128x36xf32, #tpu.memory_space<vmem>>, vector<128x4xf32>
    tpu.vector_store %arg12[%c0_46, %c16], %69 {strides = array<i32>} : memref<128x36xf32, #tpu.memory_space<vmem>>, vector<128x4xf32>,
    %c1_47 = arith.constant 1 : index
    %c2_48 = arith.constant 2 : index
    %c0_49 = arith.constant 0 : index
    %71 = vector.load %arg11[%c1_47, %c2_48, %c0_49] : memref<10x24x4xf32, #tpu.memory_space<vmem>>, vector<8x16x4xf32>
    %72 = vector.shape_cast %71 : vector<8x16x4xf32> to vector<128x4xf32>
    %c0_50 = arith.constant 0 : index
    %c20 = arith.constant 20 : index
    %73 = vector.load %arg12[%c0_50, %c20] : memref<128x36xf32, #tpu.memory_space<vmem>>, vector<128x4xf32>
    tpu.vector_store %arg12[%c0_50, %c20], %72 {strides = array<i32>} : memref<128x36xf32, #tpu.memory_space<vmem>>, vector<128x4xf32>,
    %c2_51 = arith.constant 2 : index
    %c0_52 = arith.constant 0 : index
    %c0_53 = arith.constant 0 : index
    %74 = vector.load %arg11[%c2_51, %c0_52, %c0_53] : memref<10x24x4xf32, #tpu.memory_space<vmem>>, vector<8x16x4xf32>
    %75 = vector.shape_cast %74 : vector<8x16x4xf32> to vector<128x4xf32>
    %c0_54 = arith.constant 0 : index
    %c24 = arith.constant 24 : index
    %76 = vector.load %arg12[%c0_54, %c24] : memref<128x36xf32, #tpu.memory_space<vmem>>, vector<128x4xf32>
    tpu.vector_store %arg12[%c0_54, %c24], %75 {strides = array<i32>} : memref<128x36xf32, #tpu.memory_space<vmem>>, vector<128x4xf32>,
    %c2_55 = arith.constant 2 : index
    %c1_56 = arith.constant 1 : index
    %c0_57 = arith.constant 0 : index
    %77 = vector.load %arg11[%c2_55, %c1_56, %c0_57] : memref<10x24x4xf32, #tpu.memory_space<vmem>>, vector<8x16x4xf32>
    %78 = vector.shape_cast %77 : vector<8x16x4xf32> to vector<128x4xf32>
    %c0_58 = arith.constant 0 : index
    %c28 = arith.constant 28 : index
    %79 = vector.load %arg12[%c0_58, %c28] : memref<128x36xf32, #tpu.memory_space<vmem>>, vector<128x4xf32>
    tpu.vector_store %arg12[%c0_58, %c28], %78 {strides = array<i32>} : memref<128x36xf32, #tpu.memory_space<vmem>>, vector<128x4xf32>,
    %c2_59 = arith.constant 2 : index
    %c2_60 = arith.constant 2 : index
    %c0_61 = arith.constant 0 : index
    %80 = vector.load %arg11[%c2_59, %c2_60, %c0_61] : memref<10x24x4xf32, #tpu.memory_space<vmem>>, vector<8x16x4xf32>
    %81 = vector.shape_cast %80 : vector<8x16x4xf32> to vector<128x4xf32>
    %c0_62 = arith.constant 0 : index
    %c32 = arith.constant 32 : index
    %82 = vector.load %arg12[%c0_62, %c32] : memref<128x36xf32, #tpu.memory_space<vmem>>, vector<128x4xf32>
    tpu.vector_store %arg12[%c0_62, %c32], %81 {strides = array<i32>} : memref<128x36xf32, #tpu.memory_space<vmem>>, vector<128x4xf32>,
    %c0_63 = arith.constant 0 : index
    %c0_64 = arith.constant 0 : index
    %83 = vector.load %arg12[%c0_63, %c0_64] : memref<128x36xf32, #tpu.memory_space<vmem>>, vector<128x36xf32>
    %c0_65 = arith.constant 0 : index
    %c0_66 = arith.constant 0 : index
    %84 = vector.load %arg7[%c0_65, %c0_66] : memref<36x4xf32, #tpu.memory_space<vmem>>, vector<36x4xf32>
    %cst_67 = arith.constant dense<0.000000e+00> : vector<128x4xf32>
    %85 = tpu.matmul %83, %84, %cst_67 {dimension_numbers = #tpu.dot_dimension_numbers<[1], [0], [0], [1], [0, 0, 1, 1], [], []>} : vector<128x36xf32>, vector<36x4xf32>, vector<128x4xf32> -> vector<128x4xf32>
    %c0_68 = arith.constant 0 : index
    %c0_69 = arith.constant 0 : index
    %86 = vector.load %arg8[%c0_68, %c0_69] : memref<1x4xf32, #tpu.memory_space<vmem>>, vector<1x4xf32>
    %87 = vector.broadcast %86 : vector<1x4xf32> to vector<128x4xf32>
    %88 = arith.addf %85, %87 : vector<128x4xf32>
    %cst_70 = arith.constant dense<0.000000e+00> : vector<4xf32>
    %89 = vector.multi_reduction <add>, %88, %cst_70 [0] : vector<128x4xf32> to vector<4xf32>
    %90 = vector.shape_cast %89 : vector<4xf32> to vector<1x4xf32>
    %c0_71 = arith.constant 0 : index
    %c0_72 = arith.constant 0 : index
    %c0_73 = arith.constant 0 : index
    %c0_74 = arith.constant 0 : index
    %91 = vector.load %arg10[%c0_71, %c0_72, %c0_73, %c0_74] : memref<1x1x2x4xf32, #tpu.memory_space<vmem>>, vector<1x1x1x4xf32>
    %92 = vector.shape_cast %91 : vector<1x1x1x4xf32> to vector<1x4xf32>
    %93 = vector.shape_cast %90 : vector<1x4xf32> to vector<1x1x1x4xf32>
    tpu.vector_store %arg10[%c0_71, %c0_72, %c0_73, %c0_74], %93 {strides = array<i32>} : memref<1x1x2x4xf32, #tpu.memory_space<vmem>>, vector<1x1x1x4xf32>,
    %94 = arith.mulf %88, %88 : vector<128x4xf32>
    %cst_75 = arith.constant dense<0.000000e+00> : vector<4xf32>
    %95 = vector.multi_reduction <add>, %94, %cst_75 [0] : vector<128x4xf32> to vector<4xf32>
    %96 = vector.shape_cast %95 : vector<4xf32> to vector<1x4xf32>
    %c0_76 = arith.constant 0 : index
    %c0_77 = arith.constant 0 : index
    %c1_78 = arith.constant 1 : index
    %c0_79 = arith.constant 0 : index
    %97 = vector.load %arg10[%c0_76, %c0_77, %c1_78, %c0_79] : memref<1x1x2x4xf32, #tpu.memory_space<vmem>>, vector<1x1x1x4xf32>
    %98 = vector.shape_cast %97 : vector<1x1x1x4xf32> to vector<1x4xf32>
    %99 = vector.shape_cast %96 : vector<1x4xf32> to vector<1x1x1x4xf32>
    tpu.vector_store %arg10[%c0_76, %c0_77, %c1_78, %c0_79], %99 {strides = array<i32>} : memref<1x1x2x4xf32, #tpu.memory_space<vmem>>, vector<1x1x1x4xf32>,
    %100 = vector.shape_cast %88 : vector<128x4xf32> to vector<8x16x4xf32>
    %c0_80 = arith.constant 0 : index
    %c0_81 = arith.constant 0 : index
    %c0_82 = arith.constant 0 : index
    %c0_83 = arith.constant 0 : index
    %101 = vector.load %arg9[%c0_80, %c0_81, %c0_82, %c0_83] : memref<1x8x16x4xf32, #tpu.memory_space<vmem>>, vector<1x8x16x4xf32>
    %102 = vector.shape_cast %101 : vector<1x8x16x4xf32> to vector<8x16x4xf32>
    %103 = vector.shape_cast %100 : vector<8x16x4xf32> to vector<1x8x16x4xf32>
    tpu.vector_store %arg9[%c0_80, %c0_81, %c0_82, %c0_83], %103 {strides = array<i32>} : memref<1x8x16x4xf32, #tpu.memory_space<vmem>>, vector<1x8x16x4xf32>,
    return
  }
  func.func @transform_0(%arg0: i32, %arg1: i32) -> (i32, i32) {
    %c0_i32 = arith.constant 0 : i32
    %c0_i32_0 = arith.constant 0 : i32
    %c0_i32_1 = arith.constant 0 : i32
    return %c0_i32, %c0_i32_0 : i32, i32
  }
  func.func @transform_1(%arg0: i32, %arg1: i32) -> (i32, i32) {
    %c0_i32 = arith.constant 0 : i32
    %c0_i32_0 = arith.constant 0 : i32
    %c0_i32_1 = arith.constant 0 : i32
    return %c0_i32, %c0_i32_0 : i32, i32
  }
  func.func @transform_2(%arg0: i32, %arg1: i32) -> (i32, i32, i32, i32) {
    %c0_i32 = arith.constant 0 : i32
    %c0_i32_0 = arith.constant 0 : i32
    %c0_i32_1 = arith.constant 0 : i32
    return %arg0, %arg1, %c0_i32, %c0_i32_0 : i32, i32, i32, i32
  }
  func.func @transform_3(%arg0: i32, %arg1: i32) -> (i32, i32, i32, i32) {
    %c8_i32 = arith.constant 8 : i32
    %0 = arith.muli %arg1, %c8_i32 : i32
    %c1_i32 = arith.constant 1 : i32
    %1 = arith.subi %0, %c1_i32 : i32
    %c0_i32 = arith.constant 0 : i32
    %2 = arith.maxsi %1, %c0_i32 : i32
    %c0_i32_0 = arith.constant 0 : i32
    %c0_i32_1 = arith.constant 0 : i32
    %c0_i32_2 = arith.constant 0 : i32
    return %arg0, %2, %c0_i32_0, %c0_i32_1 : i32, i32, i32, i32
  }
  func.func @transform_4(%arg0: i32, %arg1: i32) -> (i32, i32, i32, i32) {
    %c1_i32 = arith.constant 1 : i32
    %0 = arith.addi %arg1, %c1_i32 : i32
    %c8_i32 = arith.constant 8 : i32
    %1 = arith.muli %0, %c8_i32 : i32
    %c15_i32 = arith.constant 15 : i32
    %2 = arith.minsi %1, %c15_i32 : i32
    %c0_i32 = arith.constant 0 : i32
    %c0_i32_0 = arith.constant 0 : i32
    %c0_i32_1 = arith.constant 0 : i32
    return %arg0, %2, %c0_i32, %c0_i32_0 : i32, i32, i32, i32
  }
  func.func @transform_5(%arg0: i32, %arg1: i32) -> (i32, i32) {
    %c0_i32 = arith.constant 0 : i32
    %c0_i32_0 = arith.constant 0 : i32
    %c0_i32_1 = arith.constant 0 : i32
    return %c0_i32, %c0_i32_0 : i32, i32
  }
  func.func @transform_6(%arg0: i32, %arg1: i32) -> (i32, i32) {
    %c0_i32 = arith.constant 0 : i32
    %c0_i32_0 = arith.constant 0 : i32
    %c0_i32_1 = arith.constant 0 : i32
    return %c0_i32, %c0_i32_0 : i32, i32
  }
  func.func @transform_7(%arg0: i32, %arg1: i32) -> (i32, i32, i32, i32) {
    %c0_i32 = arith.constant 0 : i32
    %c0_i32_0 = arith.constant 0 : i32
    %c0_i32_1 = arith.constant 0 : i32
    return %arg0, %arg1, %c0_i32, %c0_i32_0 : i32, i32, i32, i32
  }
  func.func @transform_8(%arg0: i32, %arg1: i32) -> (i32, i32, i32, i32) {
    %c0_i32 = arith.constant 0 : i32
    %c0_i32_0 = arith.constant 0 : i32
    %c0_i32_1 = arith.constant 0 : i32
    return %arg0, %arg1, %c0_i32, %c0_i32_0 : i32, i32, i32, i32
  }
}

module attributes {stable_mosaic.version = 11 : i64} {
  func.func @_bn_residual_kernel(%arg0: i32, %arg1: memref<1x64xf32, #tpu.memory_space<vmem>>, %arg2: memref<1x64xf32, #tpu.memory_space<vmem>>, %arg3: memref<8x64xf32, #tpu.memory_space<vmem>>, %arg4: memref<8x64xf32, #tpu.memory_space<vmem>>, %arg5: memref<8x64xf32, #tpu.memory_space<vmem>>) attributes {dimension_semantics = [#tpu.dimension_semantics<parallel>], iteration_bounds = array<i64: 4>, scalar_prefetch = 0 : i64, scratch_operands = 0 : i64, tpu.core_type = #tpu.core_type<tc>, window_params = [{pipeline_mode = #tpu.pipeline_mode<synchronous>, transform_indices = @transform_0, window_bounds = array<i64: 1, 64>}, {pipeline_mode = #tpu.pipeline_mode<synchronous>, transform_indices = @transform_1, window_bounds = array<i64: 1, 64>}, {transform_indices = @transform_2, window_bounds = array<i64: 8, 64>}, {transform_indices = @transform_3, window_bounds = array<i64: 8, 64>}, {transform_indices = @transform_4, window_bounds = array<i64: 8, 64>}]} {
    %c0 = arith.constant 0 : index
    %c0_0 = arith.constant 0 : index
    %0 = vector.load %arg3[%c0, %c0_0] : memref<8x64xf32, #tpu.memory_space<vmem>>, vector<8x64xf32>
    %c0_1 = arith.constant 0 : index
    %c0_2 = arith.constant 0 : index
    %1 = vector.load %arg1[%c0_1, %c0_2] : memref<1x64xf32, #tpu.memory_space<vmem>>, vector<1x64xf32>
    %2 = vector.broadcast %1 : vector<1x64xf32> to vector<8x64xf32>
    %3 = arith.subf %0, %2 : vector<8x64xf32>
    %c0_3 = arith.constant 0 : index
    %c0_4 = arith.constant 0 : index
    %4 = vector.load %arg2[%c0_3, %c0_4] : memref<1x64xf32, #tpu.memory_space<vmem>>, vector<1x64xf32>
    %5 = vector.broadcast %4 : vector<1x64xf32> to vector<8x64xf32>
    %6 = arith.mulf %3, %5 : vector<8x64xf32>
    %c0_5 = arith.constant 0 : index
    %c0_6 = arith.constant 0 : index
    %7 = vector.load %arg4[%c0_5, %c0_6] : memref<8x64xf32, #tpu.memory_space<vmem>>, vector<8x64xf32>
    %8 = arith.addf %6, %7 : vector<8x64xf32>
    %c0_7 = arith.constant 0 : index
    %c0_8 = arith.constant 0 : index
    %9 = vector.load %arg5[%c0_7, %c0_8] : memref<8x64xf32, #tpu.memory_space<vmem>>, vector<8x64xf32>
    tpu.vector_store %arg5[%c0_7, %c0_8], %8 {strides = array<i32>} : memref<8x64xf32, #tpu.memory_space<vmem>>, vector<8x64xf32>,
    return
  }
  func.func @transform_0(%arg0: i32) -> (i32, i32) {
    %c0_i32 = arith.constant 0 : i32
    %c0_i32_0 = arith.constant 0 : i32
    %c0_i32_1 = arith.constant 0 : i32
    return %c0_i32, %c0_i32_0 : i32, i32
  }
  func.func @transform_1(%arg0: i32) -> (i32, i32) {
    %c0_i32 = arith.constant 0 : i32
    %c0_i32_0 = arith.constant 0 : i32
    %c0_i32_1 = arith.constant 0 : i32
    return %c0_i32, %c0_i32_0 : i32, i32
  }
  func.func @transform_2(%arg0: i32) -> (i32, i32) {
    %c0_i32 = arith.constant 0 : i32
    %c0_i32_0 = arith.constant 0 : i32
    return %arg0, %c0_i32 : i32, i32
  }
  func.func @transform_3(%arg0: i32) -> (i32, i32) {
    %c0_i32 = arith.constant 0 : i32
    %c0_i32_0 = arith.constant 0 : i32
    return %arg0, %c0_i32 : i32, i32
  }
  func.func @transform_4(%arg0: i32) -> (i32, i32) {
    %c0_i32 = arith.constant 0 : i32
    %c0_i32_0 = arith.constant 0 : i32
    return %arg0, %c0_i32 : i32, i32
  }
}

</mosaic_0001>

<llo_original>
// kernel: resblock_pallas.5
$region0: #{resblock_pallas.5}
  #allocation0 [shape = 'u32[]', space=smem, size = 0x4, offset = 0x4, fixed_abs, tag = 'smem constant byte address 0x4 - core index']
  #allocation1 [shape = 'u32[72,128]{1,0:T(1,128)}', space=vmem, size = 0x9000, scoped, tag = 'internal scratch']
  %s0 = inlined_call_operand.vmem [shape: f32[1,64], index: 0, kind: input, shape index: {}]
  %s1 = inlined_call_operand.vmem [shape: f32[1,64], index: 1, kind: input, shape index: {}]
  %s2 = inlined_call_operand.vmem [shape: f32[32,64], index: 2, kind: input, shape index: {}]
  %s3 = inlined_call_operand.vmem [shape: f32[32,64], index: 3, kind: input, shape index: {}]
  %s4 = inlined_call_operand.vmem [shape: f32[32,64], index: 4, kind: output, shape index: {}]
  %s5 = sld [smem:[#allocation0]]
  $region49: #{resblock_pallas.5} parent=0
    _
  %s7 = ssub.s32 1, %s5
  %s8 = scalar_select 0, %s7, %s5
  loop: start=0, step=1, limit=6
  $region2: #{resblock_pallas.5} parent=0 // loop_pre_header
    _
  $region3: #{resblock_pallas.5} parent=0 // loop_header
    %s10 = sphi 0, %s14
    %p11 = scmp.ge.s32.totalorder %s10, 6
    %s18 = sphi 0, %s18
    %s20 = sphi 0, %s18
    %s21 = sphi 0, %s20
    %s35 = sphi 0, %s21
    %s39 = sphi 0, %s39
    %s41 = sphi 0, %s39
    %s42 = sphi 0, %s41
    %s56 = sphi 0, %s42
    %s62 = sphi 0, %s64
    %s65 = sphi 0, %s62
    %s66 = sphi 0, %s65
    %s82 = sphi 0, %s66
    %s88 = sphi 0, %s90
    %s91 = sphi 0, %s88
    %s92 = sphi 0, %s91
    %s108 = sphi 0, %s92
    %s114 = sphi 0, %s116
    %s117 = sphi 0, %s114
    %s118 = sphi 0, %s117
    %s134 = sphi 0, %s118
  $region4: #{resblock_pallas.5} parent=0 // loop_header_branch
    %13 = sbr.rel (%p11) target = $region8
  $region5: #{resblock_pallas.5} parent=0 // loop_body
    %s15 = ssub.s32 %s10, 1
    %s16 = ssub.s32 %s10, 2
    %s17 = sadd.s32 %s10, 1
    %s19 = sadd.s32 %s18, 1
    %p22 = scmp.eq.s32.totalorder %s10, 3
    %p23 = scmp.ne.s32.totalorder %s18, %s20
    %p24 = scmp.eq.s32.totalorder %s10, 0
    %p25 = por %p23, %p24
    %p26 = scmp.ne.s32.totalorder %s18, %s20
    %p27 = scmp.eq.s32.totalorder %s15, 3
    %p28 = por %p26, %p27
    %p29 = scmp.ne.s32.totalorder %s20, %s21
    %p30 = scmp.eq.s32.totalorder %s15, 0
    %p31 = por %p29, %p30
    %p32 = scmp.ne.s32.totalorder %s20, %s21
    %p33 = scmp.eq.s32.totalorder %s16, 3
    %p34 = por %p32, %p33
    %p36 = scmp.ne.s32.totalorder %s21, %s35
    %p37 = scmp.eq.s32.totalorder %s16, 0
    %p38 = por %p36, %p37
    %s40 = sadd.s32 %s39, 1
    %p43 = scmp.eq.s32.totalorder %s10, 3
    %p44 = scmp.ne.s32.totalorder %s39, %s41
    %p45 = scmp.eq.s32.totalorder %s10, 0
    %p46 = por %p44, %p45
    %p47 = scmp.ne.s32.totalorder %s39, %s41
    %p48 = scmp.eq.s32.totalorder %s15, 3
    %p49 = por %p47, %p48
    %p50 = scmp.ne.s32.totalorder %s41, %s42
    %p51 = scmp.eq.s32.totalorder %s15, 0
    %p52 = por %p50, %p51
    %p53 = scmp.ne.s32.totalorder %s41, %s42
    %p54 = scmp.eq.s32.totalorder %s16, 3
    %p55 = por %p53, %p54
    %p57 = scmp.ne.s32.totalorder %s42, %s56
    %p58 = scmp.eq.s32.totalorder %s16, 0
    %p59 = por %p57, %p58
    %s60 = ssub.s32 %s10, %s17
    %p61 = scmp.eq.s32.totalorder %s60, 0
    %s63 = sadd.s32 %s62, 1
    %s64 = scalar_select %p61, %s62, %s63
    %p67 = pneg %p61
    %p68 = scmp.eq.s32.totalorder %s10, 3
    %p69 = por %p67, %p68
    %p70 = scmp.ne.s32.totalorder %s62, %s65
    %p71 = scmp.eq.s32.totalorder %s10, 0
    %p72 = por %p70, %p71
    %p73 = scmp.ne.s32.totalorder %s62, %s65
    %p74 = scmp.eq.s32.totalorder %s15, 3
    %p75 = por %p73, %p74
    %p76 = scmp.ne.s32.totalorder %s65, %s66
    %p77 = scmp.eq.s32.totalorder %s15, 0
    %p78 = por %p76, %p77
    %p79 = scmp.ne.s32.totalorder %s65, %s66
    %p80 = scmp.eq.s32.totalorder %s16, 3
    %p81 = por %p79, %p80
    %p83 = scmp.ne.s32.totalorder %s66, %s82
    %p84 = scmp.eq.s32.totalorder %s16, 0
    %p85 = por %p83, %p84
    %s86 = ssub.s32 %s10, %s17
    %p87 = scmp.eq.s32.totalorder %s86, 0
    %s89 = sadd.s32 %s88, 1
    %s90 = scalar_select %p87, %s88, %s89
    %p93 = pneg %p87
    %p94 = scmp.eq.s32.totalorder %s10, 3
    %p95 = por %p93, %p94
    %p96 = scmp.ne.s32.totalorder %s88, %s91
    %p97 = scmp.eq.s32.totalorder %s10, 0
    %p98 = por %p96, %p97
    %p99 = scmp.ne.s32.totalorder %s88, %s91
    %p100 = scmp.eq.s32.totalorder %s15, 3
    %p101 = por %p99, %p100
    %p102 = scmp.ne.s32.totalorder %s91, %s92
    %p103 = scmp.eq.s32.totalorder %s15, 0
    %p104 = por %p102, %p103
    %p105 = scmp.ne.s32.totalorder %s91, %s92
    %p106 = scmp.eq.s32.totalorder %s16, 3
    %p107 = por %p105, %p106
    %p109 = scmp.ne.s32.totalorder %s92, %s108
    %p110 = scmp.eq.s32.totalorder %s16, 0
    %p111 = por %p109, %p110
    %s112 = ssub.s32 %s10, %s17
    %p113 = scmp.eq.s32.totalorder %s112, 0
    %s115 = sadd.s32 %s114, 1
    %s116 = scalar_select %p113, %s114, %s115
    %p119 = pneg %p113
    %p120 = scmp.eq.s32.totalorder %s10, 3
    %p121 = por %p119, %p120
    %p122 = scmp.ne.s32.totalorder %s114, %s117
    %p123 = scmp.eq.s32.totalorder %s10, 0
    %p124 = por %p122, %p123
    %p125 = scmp.ne.s32.totalorder %s114, %s117
    %p126 = scmp.eq.s32.totalorder %s15, 3
    %p127 = por %p125, %p126
    %p128 = scmp.ne.s32.totalorder %s117, %s118
    %p129 = scmp.eq.s32.totalorder %s15, 0
    %p130 = por %p128, %p129
    %p131 = scmp.ne.s32.totalorder %s117, %s118
    %p132 = scmp.eq.s32.totalorder %s16, 3
    %p133 = por %p131, %p132
    %p135 = scmp.ne.s32.totalorder %s118, %s134
    %p136 = scmp.eq.s32.totalorder %s16, 0
    %p137 = por %p135, %p136
    %p138 = scmp.le.s32.totalorder 1, %s10
    %p139 = scmp.lt.s32.totalorder %s10, 5
    %p140 = pnand %p138, %p139
    %p141 = pneg %p140
    // Predicated region
    $region9: #{resblock_pallas.5} parent=5 // pred_check
      _
    $region10: #{resblock_pallas.5} parent=5 // pred_check_branch
      %143 = sbr.rel (%p140) target = $region12
    $region11: #{resblock_pallas.5} parent=5 // pred_region
      %s144 = ssub.s32 %s10, 1
      // Predicated region
      $region13: #{resblock_pallas.5} parent=11 // pred_check
        %p145 = pneg %p31
      $region14: #{resblock_pallas.5} parent=11 // pred_check_branch
        %147 = sbr.rel (%p145) target = $region16
      $region15: #{resblock_pallas.5} parent=11 // pred_region
        _
      $region16: #{resblock_pallas.5} parent=11 // pred_fallthru
        _
      // Predicated region
      $region17: #{resblock_pallas.5} parent=11 // pred_check
        %p148 = pneg %p52
      $region18: #{resblock_pallas.5} parent=11 // pred_check_branch
        %150 = sbr.rel (%p148) target = $region20
      $region19: #{resblock_pallas.5} parent=11 // pred_region
        _
      $region20: #{resblock_pallas.5} parent=11 // pred_fallthru
        _
    $region12: #{resblock_pallas.5} parent=5 // pred_fallthru
      _
    %p151 = scmp.lt.s32.totalorder %s10, 4
    // Predicated region
    $region21: #{resblock_pallas.5} parent=5 // pred_check
      %p152 = pneg %p151
    $region22: #{resblock_pallas.5} parent=5 // pred_check_branch
      %154 = sbr.rel (%p152) target = $region24
    $region23: #{resblock_pallas.5} parent=5 // pred_region
      // Predicated region
      $region25: #{resblock_pallas.5} parent=23 // pred_check
        %p155 = pneg %p72
      $region26: #{resblock_pallas.5} parent=23 // pred_check_branch
        %157 = sbr.rel (%p155) target = $region28
      $region27: #{resblock_pallas.5} parent=23 // pred_region
        %p158 = scmp.lt.s32.totalorder %s10, 3
        %s159 = scalar_select %p158, %s10, 3
        %s160 = smul.addr %s159, 8
        %s161 = scalar_lea.vmem %s2, %s160
      $region28: #{resblock_pallas.5} parent=23 // pred_fallthru
        _
      // Predicated region
      $region29: #{resblock_pallas.5} parent=23 // pred_check
        %p162 = pneg %p98
      $region30: #{resblock_pallas.5} parent=23 // pred_check_branch
        %164 = sbr.rel (%p162) target = $region32
      $region31: #{resblock_pallas.5} parent=23 // pred_region
        %p165 = scmp.lt.s32.totalorder %s10, 3
        %s166 = scalar_select %p165, %s10, 3
        %s167 = smul.addr %s166, 8
        %s168 = scalar_lea.vmem %s3, %s167
      $region32: #{resblock_pallas.5} parent=23 // pred_fallthru
        _
    $region24: #{resblock_pallas.5} parent=5 // pred_fallthru
      _
    %p169 = scmp.le.s32.totalorder 1, %s10
    %p170 = scmp.lt.s32.totalorder %s10, 5
    %p171 = pnand %p169, %p170
    %p172 = pneg %p171
    // Predicated region
    $region33: #{resblock_pallas.5} parent=5 // pred_check
      _
    $region34: #{resblock_pallas.5} parent=5 // pred_check_branch
      %174 = sbr.rel (%p171) target = $region36
    $region35: #{resblock_pallas.5} parent=5 // pred_region
      %s175 = ssub.s32 %s10, 1
      %p176 = pneg %p31
      %p177 = pneg %p28
      %p178 = pneg %p52
      %p179 = pneg %p49
      %p180 = scmp.lt.s32.totalorder %s15, 3
      %s181 = scalar_select %p180, %s15, 3
      %s182 = smul.addr %s181, 8
      %s183 = scalar_lea.vmem %s2, %s182
      %p184 = pneg %p78
      %p185 = pneg %p75
      %p186 = scmp.lt.s32.totalorder %s15, 3
      %s187 = scalar_select %p186, %s15, 3
      %s188 = smul.addr %s187, 8
      %s189 = scalar_lea.vmem %s3, %s188
      %p190 = pneg %p104
      %p191 = pneg %p101
      %p192 = pneg %p130
      %p193 = pneg %p127
      %p194 = scmp.lt.s32.totalorder %s15, 3
      %s195 = scalar_select %p194, %s15, 3
      %s196 = smul.addr %s195, 8
      %s197 = scalar_lea.vmem %s4, %s196
      %p198 = scmp.lt.s32.totalorder %s15, 3
      %s199 = scalar_select %p198, %s15, 3
      %s200 = smul.addr %s199, 8
      %s201 = scalar_lea.vmem %s2, %s200
      %p202 = scmp.lt.s32.totalorder %s15, 3
      %s203 = scalar_select %p202, %s15, 3
      %s204 = smul.addr %s203, 8
      %s205 = scalar_lea.vmem %s3, %s204
      %p206 = scmp.lt.s32.totalorder %s15, 3
      %s207 = scalar_select %p206, %s15, 3
      %s208 = smul.addr %s207, 8
      %s209 = scalar_lea.vmem %s4, %s208
      %v210 = vld [vmem:[%s201] sm:$0xff]
      %v211 = vld [vmem:[%s0] sm:$0x1]
      %v213 = vperm.slane %v211, 0
      %v215 = vsub.f32 %v210, %v213
      %v216 = vld [vmem:[%s1] sm:$0x1]
      %v218 = vperm.slane %v216, 0
      %v220 = vmul.f32 %v215, %v218
      %v221 = vld [vmem:[%s205] sm:$0xff]
      %v222 = vadd.f32 %v220, %v221
      %vm223 = vcmask 523264
      %224 = vst.msk [vmem:[%s209] sm:$0xff] %vm223, %v222
      %p225 = scmp.lt.s32.totalorder %s15, 3
      %s226 = scalar_select %p225, %s15, 3
      %s227 = smul.addr %s226, 8
      %s228 = scalar_lea.vmem %s4, %s227
      // Predicated region
      $region37: #{resblock_pallas.5} parent=35 // pred_check
        %p229 = pneg %p127
      $region38: #{resblock_pallas.5} parent=35 // pred_check_branch
        %231 = sbr.rel (%p229) target = $region40
      $region39: #{resblock_pallas.5} parent=35 // pred_region
        _
      $region40: #{resblock_pallas.5} parent=35 // pred_fallthru
        _
    $region36: #{resblock_pallas.5} parent=5 // pred_fallthru
      _
    %p232 = scmp.le.s32.totalorder 2, %s10
    // Predicated region
    $region41: #{resblock_pallas.5} parent=5 // pred_check
      %p233 = pneg %p232
    $region42: #{resblock_pallas.5} parent=5 // pred_check_branch
      %235 = sbr.rel (%p233) target = $region44
    $region43: #{resblock_pallas.5} parent=5 // pred_region
      %s236 = ssub.s32 %s10, 2
      // Predicated region
      $region45: #{resblock_pallas.5} parent=43 // pred_check
        %p237 = pneg %p133
      $region46: #{resblock_pallas.5} parent=43 // pred_check_branch
        %239 = sbr.rel (%p237) target = $region48
      $region47: #{resblock_pallas.5} parent=43 // pred_region
        %p240 = scmp.lt.s32.totalorder %s16, 3
        %s241 = scalar_select %p240, %s16, 3
        %s242 = smul.addr %s241, 8
        %s243 = scalar_lea.vmem %s4, %s242
      $region48: #{resblock_pallas.5} parent=43 // pred_fallthru
        _
    $region44: #{resblock_pallas.5} parent=5 // pred_fallthru
      _
  $region6: #{resblock_pallas.5} parent=0 // loop_footer
    %s14 = sadd.s32 1, %s10
  $region7: #{resblock_pallas.5} parent=0 // loop_footer_branch
    %9 = sbr.rel target = $region3
  $region8: #{resblock_pallas.5} parent=0 // loop_exit
    _

// kernel: resblock_pallas.3
$region0: #{resblock_pallas.3}
  #allocation0 [shape = 'u32[]', space=smem, size = 0x4, offset = 0x4, fixed_abs, tag = 'smem constant byte address 0x4 - core index']
  #allocation1 [shape = 'u32[72,128]{1,0:T(1,128)}', space=vmem, size = 0x9000, scoped, tag = 'internal scratch']
  #allocation2 [shape = 'f32[10,24,4]{2,1,0:T(8,128)}', space=vmem, size = 0x1e000, scoped, tag = 'scratch operand']
  #allocation3 [shape = 'f32[128,36]{1,0:T(8,128)}', space=vmem, size = 0x10000, scoped, tag = 'scratch operand']
  %s0 = inlined_call_operand.vmem [shape: f32[2,16,24,4], index: 0, kind: input, shape index: {}, may-alias: {0,1,2}]
  %s1 = inlined_call_operand.vmem [shape: f32[2,16,24,4], index: 1, kind: input, shape index: {}, may-alias: {0,1,2}]
  %s2 = inlined_call_operand.vmem [shape: f32[2,16,24,4], index: 2, kind: input, shape index: {}, may-alias: {0,1,2}]
  %s3 = inlined_call_operand.vmem [shape: f32[36,4], index: 3, kind: input, shape index: {}]
  %s4 = inlined_call_operand.vmem [shape: f32[1,4], index: 4, kind: input, shape index: {}]
  %s5 = inlined_call_operand.vmem [shape: f32[2,16,24,4], index: 5, kind: output, shape index: {0}]
  %s6 = inlined_call_operand.vmem [shape: f32[2,2,2,4], index: 6, kind: output, shape index: {1}]
  %7 = xla_tuple %s5, %s6
  %s8 = sld [smem:[#allocation0]]
  $region61: #{resblock_pallas.3} parent=0
    _
  %s10 = ssub.s32 1, %s8
  %s11 = scalar_select 0, %s10, %s8
  loop: start=0, step=1, limit=6
  $region2: #{resblock_pallas.3} parent=0 // loop_pre_header
    _
  $region3: #{resblock_pallas.3} parent=0 // loop_header
    %s13 = sphi 0, %s17
    %p14 = scmp.ge.s32.totalorder %s13, 6
    %s20 = sphi 0, %s32
    %s21 = sphi 0, %s28
    %s22 = sphi 0, %s20
    %s23 = sphi 0, %s21
    %s24 = sphi 0, %s22
    %s25 = sphi 0, %s23
    %s37 = sphi 0, %s39
    %s40 = sphi 0, %s37
    %s41 = sphi 0, %s40
    %s57 = sphi 0, %s41
    %s73 = sphi 0, %s75
    %s76 = sphi 0, %s73
    %s77 = sphi 0, %s76
    %s93 = sphi 0, %s77
    %s109 = sphi 0, %s111
    %s112 = sphi 0, %s109
    %s113 = sphi 0, %s112
    %s129 = sphi 0, %s113
    %s133 = sphi 0, %s133
    %s135 = sphi 0, %s133
    %s136 = sphi 0, %s135
    %s150 = sphi 0, %s136
    %s154 = sphi 0, %s154
    %s156 = sphi 0, %s154
    %s157 = sphi 0, %s156
    %s171 = sphi 0, %s157
    %s179 = sphi 0, %s181
    %s182 = sphi 0, %s179
    %s183 = sphi 0, %s182
    %s199 = sphi 0, %s183
    %s207 = sphi 0, %s209
    %s210 = sphi 0, %s207
    %s211 = sphi 0, %s210
    %s227 = sphi 0, %s211
  $region4: #{resblock_pallas.3} parent=0 // loop_header_branch
    %16 = sbr.rel (%p14) target = $region8
  $region5: #{resblock_pallas.3} parent=0 // loop_body
    %s18 = ssub.s32 %s13, 1
    %s19 = ssub.s32 %s13, 2
    %s26 = sadd.s32 1, %s21
    %p27 = scmp.ge.s32.totalorder %s26, 2
    %s28 = scalar_select %p27, 0, %s26
    %s29 = sadd.s32 1, %s20
    %s30 = scalar_select %p27, %s29, %s20
    %p31 = scmp.ge.s32.totalorder %s30, 2
    %s32 = scalar_select %p31, 0, %s30
    %s33 = ssub.s32 %s20, %s32
    %s34 = ssub.s32 %s21, %s28
    %s35 = sor.u32 %s33, %s34
    %p36 = scmp.eq.s32.totalorder %s35, 0
    %s38 = sadd.s32 %s37, 1
    %s39 = scalar_select %p36, %s37, %s38
    %p42 = pneg %p36
    %p43 = scmp.eq.s32.totalorder %s13, 3
    %p44 = por %p42, %p43
    %p45 = scmp.ne.s32.totalorder %s37, %s40
    %p46 = scmp.eq.s32.totalorder %s13, 0
    %p47 = por %p45, %p46
    %p48 = scmp.ne.s32.totalorder %s37, %s40
    %p49 = scmp.eq.s32.totalorder %s18, 3
    %p50 = por %p48, %p49
    %p51 = scmp.ne.s32.totalorder %s40, %s41
    %p52 = scmp.eq.s32.totalorder %s18, 0
    %p53 = por %p51, %p52
    %p54 = scmp.ne.s32.totalorder %s40, %s41
    %p55 = scmp.eq.s32.totalorder %s19, 3
    %p56 = por %p54, %p55
    %p58 = scmp.ne.s32.totalorder %s41, %s57
    %p59 = scmp.eq.s32.totalorder %s19, 0
    %p60 = por %p58, %p59
    %s61 = smul.u32 %s21, 8
    %s62 = ssub.s32 %s61, 1
    %p63 = scmp.gt.s32.totalorder %s62, 0
    %s64 = scalar_select %p63, %s62, 0
    %s65 = smul.u32 %s28, 8
    %s66 = ssub.s32 %s65, 1
    %p67 = scmp.gt.s32.totalorder %s66, 0
    %s68 = scalar_select %p67, %s66, 0
    %s69 = ssub.s32 %s20, %s32
    %s70 = ssub.s32 %s64, %s68
    %s71 = sor.u32 %s69, %s70
    %p72 = scmp.eq.s32.totalorder %s71, 0
    %s74 = sadd.s32 %s73, 1
    %s75 = scalar_select %p72, %s73, %s74
    %p78 = pneg %p72
    %p79 = scmp.eq.s32.totalorder %s13, 3
    %p80 = por %p78, %p79
    %p81 = scmp.ne.s32.totalorder %s73, %s76
    %p82 = scmp.eq.s32.totalorder %s13, 0
    %p83 = por %p81, %p82
    %p84 = scmp.ne.s32.totalorder %s73, %s76
    %p85 = scmp.eq.s32.totalorder %s18, 3
    %p86 = por %p84, %p85
    %p87 = scmp.ne.s32.totalorder %s76, %s77
    %p88 = scmp.eq.s32.totalorder %s18, 0
    %p89 = por %p87, %p88
    %p90 = scmp.ne.s32.totalorder %s76, %s77
    %p91 = scmp.eq.s32.totalorder %s19, 3
    %p92 = por %p90, %p91
    %p94 = scmp.ne.s32.totalorder %s77, %s93
    %p95 = scmp.eq.s32.totalorder %s19, 0
    %p96 = por %p94, %p95
    %s97 = sadd.s32 %s21, 1
    %s98 = smul.u32 %s97, 8
    %p99 = scmp.lt.s32.totalorder %s98, 15
    %s100 = scalar_select %p99, %s98, 15
    %s101 = sadd.s32 %s28, 1
    %s102 = smul.u32 %s101, 8
    %p103 = scmp.lt.s32.totalorder %s102, 15
    %s104 = scalar_select %p103, %s102, 15
    %s105 = ssub.s32 %s20, %s32
    %s106 = ssub.s32 %s100, %s104
    %s107 = sor.u32 %s105, %s106
    %p108 = scmp.eq.s32.totalorder %s107, 0
    %s110 = sadd.s32 %s109, 1
    %s111 = scalar_select %p108, %s109, %s110
    %p114 = pneg %p108
    %p115 = scmp.eq.s32.totalorder %s13, 3
    %p116 = por %p114, %p115
    %p117 = scmp.ne.s32.totalorder %s109, %s112
    %p118 = scmp.eq.s32.totalorder %s13, 0
    %p119 = por %p117, %p118
    %p120 = scmp.ne.s32.totalorder %s109, %s112
    %p121 = scmp.eq.s32.totalorder %s18, 3
    %p122 = por %p120, %p121
    %p123 = scmp.ne.s32.totalorder %s112, %s113
    %p124 = scmp.eq.s32.totalorder %s18, 0
    %p125 = por %p123, %p124
    %p126 = scmp.ne.s32.totalorder %s112, %s113
    %p127 = scmp.eq.s32.totalorder %s19, 3
    %p128 = por %p126, %p127
    %p130 = scmp.ne.s32.totalorder %s113, %s129
    %p131 = scmp.eq.s32.totalorder %s19, 0
    %p132 = por %p130, %p131
    %s134 = sadd.s32 %s133, 1
    %p137 = scmp.eq.s32.totalorder %s13, 3
    %p138 = scmp.ne.s32.totalorder %s133, %s135
    %p139 = scmp.eq.s32.totalorder %s13, 0
    %p140 = por %p138, %p139
    %p141 = scmp.ne.s32.totalorder %s133, %s135
    %p142 = scmp.eq.s32.totalorder %s18, 3
    %p143 = por %p141, %p142
    %p144 = scmp.ne.s32.totalorder %s135, %s136
    %p145 = scmp.eq.s32.totalorder %s18, 0
    %p146 = por %p144, %p145
    %p147 = scmp.ne.s32.totalorder %s135, %s136
    %p148 = scmp.eq.s32.totalorder %s19, 3
    %p149 = por %p147, %p148
    %p151 = scmp.ne.s32.totalorder %s136, %s150
    %p152 = scmp.eq.s32.totalorder %s19, 0
    %p153 = por %p151, %p152
    %s155 = sadd.s32 %s154, 1
    %p158 = scmp.eq.s32.totalorder %s13, 3
    %p159 = scmp.ne.s32.totalorder %s154, %s156
    %p160 = scmp.eq.s32.totalorder %s13, 0
    %p161 = por %p159, %p160
    %p162 = scmp.ne.s32.totalorder %s154, %s156
    %p163 = scmp.eq.s32.totalorder %s18, 3
    %p164 = por %p162, %p163
    %p165 = scmp.ne.s32.totalorder %s156, %s157
    %p166 = scmp.eq.s32.totalorder %s18, 0
    %p167 = por %p165, %p166
    %p168 = scmp.ne.s32.totalorder %s156, %s157
    %p169 = scmp.eq.s32.totalorder %s19, 3
    %p170 = por %p168, %p169
    %p172 = scmp.ne.s32.totalorder %s157, %s171
    %p173 = scmp.eq.s32.totalorder %s19, 0
    %p174 = por %p172, %p173
    %s175 = ssub.s32 %s20, %s32
    %s176 = ssub.s32 %s21, %s28
    %s177 = sor.u32 %s175, %s176
    %p178 = scmp.eq.s32.totalorder %s177, 0
    %s180 = sadd.s32 %s179, 1
    %s181 = scalar_select %p178, %s179, %s180
    %p184 = pneg %p178
    %p185 = scmp.eq.s32.totalorder %s13, 3
    %p186 = por %p184, %p185
    %p187 = scmp.ne.s32.totalorder %s179, %s182
    %p188 = scmp.eq.s32.totalorder %s13, 0
    %p189 = por %p187, %p188
    %p190 = scmp.ne.s32.totalorder %s179, %s182
    %p191 = scmp.eq.s32.totalorder %s18, 3
    %p192 = por %p190, %p191
    %p193 = scmp.ne.s32.totalorder %s182, %s183
    %p194 = scmp.eq.s32.totalorder %s18, 0
    %p195 = por %p193, %p194
    %p196 = scmp.ne.s32.totalorder %s182, %s183
    %p197 = scmp.eq.s32.totalorder %s19, 3
    %p198 = por %p196, %p197
    %p200 = scmp.ne.s32.totalorder %s183, %s199
    %p201 = scmp.eq.s32.totalorder %s19, 0
    %p202 = por %p200, %p201
    %s203 = ssub.s32 %s20, %s32
    %s204 = ssub.s32 %s21, %s28
    %s205 = sor.u32 %s203, %s204
    %p206 = scmp.eq.s32.totalorder %s205, 0
    %s208 = sadd.s32 %s207, 1
    %s209 = scalar_select %p206, %s207, %s208
    %p212 = pneg %p206
    %p213 = scmp.eq.s32.totalorder %s13, 3
    %p214 = por %p212, %p213
    %p215 = scmp.ne.s32.totalorder %s207, %s210
    %p216 = scmp.eq.s32.totalorder %s13, 0
    %p217 = por %p215, %p216
    %p218 = scmp.ne.s32.totalorder %s207, %s210
    %p219 = scmp.eq.s32.totalorder %s18, 3
    %p220 = por %p218, %p219
    %p221 = scmp.ne.s32.totalorder %s210, %s211
    %p222 = scmp.eq.s32.totalorder %s18, 0
    %p223 = por %p221, %p222
    %p224 = scmp.ne.s32.totalorder %s210, %s211
    %p225 = scmp.eq.s32.totalorder %s19, 3
    %p226 = por %p224, %p225
    %p228 = scmp.ne.s32.totalorder %s211, %s227
    %p229 = scmp.eq.s32.totalorder %s19, 0
    %p230 = por %p228, %p229
    %p231 = scmp.le.s32.totalorder 1, %s13
    %p232 = scmp.lt.s32.totalorder %s13, 5
    %p233 = pnand %p231, %p232
    %p234 = pneg %p233
    // Predicated region
    $region9: #{resblock_pallas.3} parent=5 // pred_check
      _
    $region10: #{resblock_pallas.3} parent=5 // pred_check_branch
      %236 = sbr.rel (%p233) target = $region12
    $region11: #{resblock_pallas.3} parent=5 // pred_region
      %s237 = ssub.s32 %s13, 1
      // Predicated region
      $region13: #{resblock_pallas.3} parent=11 // pred_check
        %p238 = pneg %p146
      $region14: #{resblock_pallas.3} parent=11 // pred_check_branch
        %240 = sbr.rel (%p238) target = $region16
      $region15: #{resblock_pallas.3} parent=11 // pred_region
        _
      $region16: #{resblock_pallas.3} parent=11 // pred_fallthru
        _
      // Predicated region
      $region17: #{resblock_pallas.3} parent=11 // pred_check
        %p241 = pneg %p167
      $region18: #{resblock_pallas.3} parent=11 // pred_check_branch
        %243 = sbr.rel (%p241) target = $region20
      $region19: #{resblock_pallas.3} parent=11 // pred_region
        _
      $region20: #{resblock_pallas.3} parent=11 // pred_fallthru
        _
    $region12: #{resblock_pallas.3} parent=5 // pred_fallthru
      _
    %p244 = scmp.lt.s32.totalorder %s13, 4
    // Predicated region
    $region21: #{resblock_pallas.3} parent=5 // pred_check
      %p245 = pneg %p244
    $region22: #{resblock_pallas.3} parent=5 // pred_check_branch
      %247 = sbr.rel (%p245) target = $region24
    $region23: #{resblock_pallas.3} parent=5 // pred_region
      // Predicated region
      $region25: #{resblock_pallas.3} parent=23 // pred_check
        %p248 = pneg %p47
      $region26: #{resblock_pallas.3} parent=23 // pred_check_branch
        %250 = sbr.rel (%p248) target = $region28
      $region27: #{resblock_pallas.3} parent=23 // pred_region
        %s251 = smul.u32 8, %s21
        %p252 = scmp.lt.s32.totalorder %s20, 1
        %s253 = scalar_select %p252, %s20, 1
        %p254 = scmp.lt.s32.totalorder %s251, 15
        %s255 = scalar_select %p254, %s251, 15
        %s256 = smul.addr %s255, 3
        %s257 = smul.addr %s253, 48
        %s258 = sadd.s32 %s256, %s257
        %s259 = smul.addr %s258, 8
        %s260 = scalar_lea.vmem %s0, %s259
        %s261 = smul.u32 8, %s21
      $region28: #{resblock_pallas.3} parent=23 // pred_fallthru
        _
      // Predicated region
      $region29: #{resblock_pallas.3} parent=23 // pred_check
        %p262 = pneg %p83
      $region30: #{resblock_pallas.3} parent=23 // pred_check_branch
        %264 = sbr.rel (%p262) target = $region32
      $region31: #{resblock_pallas.3} parent=23 // pred_region
        %s265 = smul.u32 %s21, 8
        %s266 = ssub.s32 %s265, 1
        %p267 = scmp.gt.s32.totalorder %s266, 0
        %s268 = scalar_select %p267, %s266, 0
        %p269 = scmp.lt.s32.totalorder %s20, 1
        %s270 = scalar_select %p269, %s20, 1
        %p271 = scmp.lt.s32.totalorder %s268, 15
        %s272 = scalar_select %p271, %s268, 15
        %s273 = smul.addr %s272, 3
        %s274 = smul.addr %s270, 48
        %s275 = sadd.s32 %s273, %s274
        %s276 = smul.addr %s275, 8
        %s277 = scalar_lea.vmem %s1, %s276
        %s278 = smul.u32 %s21, 8
        %s279 = ssub.s32 %s278, 1
        %p280 = scmp.gt.s32.totalorder %s279, 0
        %s281 = scalar_select %p280, %s279, 0
      $region32: #{resblock_pallas.3} parent=23 // pred_fallthru
        _
      // Predicated region
      $region33: #{resblock_pallas.3} parent=23 // pred_check
        %p282 = pneg %p119
      $region34: #{resblock_pallas.3} parent=23 // pred_check_branch
        %284 = sbr.rel (%p282) target = $region36
      $region35: #{resblock_pallas.3} parent=23 // pred_region
        %s285 = sadd.s32 %s21, 1
        %s286 = smul.u32 %s285, 8
        %p287 = scmp.lt.s32.totalorder %s286, 15
        %s288 = scalar_select %p287, %s286, 15
        %p289 = scmp.lt.s32.totalorder %s20, 1
        %s290 = scalar_select %p289, %s20, 1
        %p291 = scmp.lt.s32.totalorder %s288, 15
        %s292 = scalar_select %p291, %s288, 15
        %s293 = smul.addr %s292, 3
        %s294 = smul.addr %s290, 48
        %s295 = sadd.s32 %s293, %s294
        %s296 = smul.addr %s295, 8
        %s297 = scalar_lea.vmem %s2, %s296
        %s298 = sadd.s32 %s21, 1
        %s299 = smul.u32 %s298, 8
        %p300 = scmp.lt.s32.totalorder %s299, 15
        %s301 = scalar_select %p300, %s299, 15
      $region36: #{resblock_pallas.3} parent=23 // pred_fallthru
        _
    $region24: #{resblock_pallas.3} parent=5 // pred_fallthru
      _
    %p302 = scmp.le.s32.totalorder 1, %s13
    %p303 = scmp.lt.s32.totalorder %s13, 5
    %p304 = pnand %p302, %p303
    %p305 = pneg %p304
    // Predicated region
    $region37: #{resblock_pallas.3} parent=5 // pred_check
      _
    $region38: #{resblock_pallas.3} parent=5 // pred_check_branch
      %307 = sbr.rel (%p304) target = $region40
    $region39: #{resblock_pallas.3} parent=5 // pred_region
      %s308 = ssub.s32 %s13, 1
      %s309 = smul.u32 8, %s23
      %p310 = scmp.lt.s32.totalorder %s22, 1
      %s311 = scalar_select %p310, %s22, 1
      %p312 = scmp.lt.s32.totalorder %s309, 15
      %s313 = scalar_select %p312, %s309, 15
      %s314 = smul.addr %s313, 3
      %s315 = smul.addr %s311, 48
      %s316 = sadd.s32 %s314, %s315
      %s317 = smul.addr %s316, 8
      %s318 = scalar_lea.vmem %s0, %s317
      %p319 = pneg %p53
      %p320 = pneg %p50
      %s321 = smul.u32 %s23, 8
      %s322 = ssub.s32 %s321, 1
      %p323 = scmp.gt.s32.totalorder %s322, 0
      %s324 = scalar_select %p323, %s322, 0
      %p325 = scmp.lt.s32.totalorder %s22, 1
      %s326 = scalar_select %p325, %s22, 1
      %p327 = scmp.lt.s32.totalorder %s324, 15
      %s328 = scalar_select %p327, %s324, 15
      %s329 = smul.addr %s328, 3
      %s330 = smul.addr %s326, 48
      %s331 = sadd.s32 %s329, %s330
      %s332 = smul.addr %s331, 8
      %s333 = scalar_lea.vmem %s1, %s332
      %p334 = pneg %p89
      %p335 = pneg %p86
      %s336 = sadd.s32 %s23, 1
      %s337 = smul.u32 %s336, 8
      %p338 = scmp.lt.s32.totalorder %s337, 15
      %s339 = scalar_select %p338, %s337, 15
      %p340 = scmp.lt.s32.totalorder %s22, 1
      %s341 = scalar_select %p340, %s22, 1
      %p342 = scmp.lt.s32.totalorder %s339, 15
      %s343 = scalar_select %p342, %s339, 15
      %s344 = smul.addr %s343, 3
      %s345 = smul.addr %s341, 48
      %s346 = sadd.s32 %s344, %s345
      %s347 = smul.addr %s346, 8
      %s348 = scalar_lea.vmem %s2, %s347
      %p349 = pneg %p125
      %p350 = pneg %p122
      %p351 = pneg %p146
      %p352 = pneg %p143
      %p353 = pneg %p167
      %p354 = pneg %p164
      %p355 = pneg %p195
      %p356 = pneg %p192
      %s357 = smul.u32 8, %s23
      %p358 = scmp.lt.s32.totalorder %s22, 1
      %s359 = scalar_select %p358, %s22, 1
      %p360 = scmp.lt.s32.totalorder %s357, 15
      %s361 = scalar_select %p360, %s357, 15
      %s362 = smul.addr %s361, 3
      %s363 = smul.addr %s359, 48
      %s364 = sadd.s32 %s362, %s363
      %s365 = smul.addr %s364, 8
      %s366 = scalar_lea.vmem %s5, %s365
      %p367 = pneg %p223
      %p368 = pneg %p220
      %p369 = scmp.lt.s32.totalorder %s22, 1
      %s370 = scalar_select %p369, %s22, 1
      %p371 = scmp.lt.s32.totalorder %s23, 1
      %s372 = scalar_select %p371, %s23, 1
      %s373 = smul.addr %s370, 2
      %s374 = sadd.s32 %s372, %s373
      %s375 = smul.addr %s374, 2
      %s376 = scalar_lea.vmem %s6, %s375
      %s377 = smul.u32 8, %s23
      %p378 = scmp.lt.s32.totalorder %s22, 1
      %s379 = scalar_select %p378, %s22, 1
      %p380 = scmp.lt.s32.totalorder %s377, 15
      %s381 = scalar_select %p380, %s377, 15
      %s382 = smul.addr %s381, 3
      %s383 = smul.addr %s379, 48
      %s384 = sadd.s32 %s382, %s383
      %s385 = smul.addr %s384, 8
      %s386 = scalar_lea.vmem %s0, %s385
      %s387 = smul.u32 8, %s23
      %s388 = smul.u32 %s23, 8
      %s389 = ssub.s32 %s388, 1
      %p390 = scmp.gt.s32.totalorder %s389, 0
      %s391 = scalar_select %p390, %s389, 0
      %p392 = scmp.lt.s32.totalorder %s22, 1
      %s393 = scalar_select %p392, %s22, 1
      %p394 = scmp.lt.s32.totalorder %s391, 15
      %s395 = scalar_select %p394, %s391, 15
      %s396 = smul.addr %s395, 3
      %s397 = smul.addr %s393, 48
      %s398 = sadd.s32 %s396, %s397
      %s399 = smul.addr %s398, 8
      %s400 = scalar_lea.vmem %s1, %s399
      %s401 = smul.u32 %s23, 8
      %s402 = ssub.s32 %s401, 1
      %p403 = scmp.gt.s32.totalorder %s402, 0
      %s404 = scalar_select %p403, %s402, 0
      %s405 = sadd.s32 %s23, 1
      %s406 = smul.u32 %s405, 8
      %p407 = scmp.lt.s32.totalorder %s406, 15
      %s408 = scalar_select %p407, %s406, 15
      %p409 = scmp.lt.s32.totalorder %s22, 1
      %s410 = scalar_select %p409, %s22, 1
      %p411 = scmp.lt.s32.totalorder %s408, 15
      %s412 = scalar_select %p411, %s408, 15
      %s413 = smul.addr %s412, 3
      %s414 = smul.addr %s410, 48
      %s415 = sadd.s32 %s413, %s414
      %s416 = smul.addr %s415, 8
      %s417 = scalar_lea.vmem %s2, %s416
      %s418 = sadd.s32 %s23, 1
      %s419 = smul.u32 %s418, 8
      %p420 = scmp.lt.s32.totalorder %s419, 15
      %s421 = scalar_select %p420, %s419, 15
      %s422 = smul.u32 8, %s23
      %p423 = scmp.lt.s32.totalorder %s22, 1
      %s424 = scalar_select %p423, %s22, 1
      %p425 = scmp.lt.s32.totalorder %s422, 15
      %s426 = scalar_select %p425, %s422, 15
      %s427 = smul.addr %s426, 3
      %s428 = smul.addr %s424, 48
      %s429 = sadd.s32 %s427, %s428
      %s430 = smul.addr %s429, 8
      %s431 = scalar_lea.vmem %s5, %s430
      %s432 = smul.u32 8, %s23
      %p433 = scmp.lt.s32.totalorder %s22, 1
      %s434 = scalar_select %p433, %s22, 1
      %p435 = scmp.lt.s32.totalorder %s23, 1
      %s436 = scalar_select %p435, %s23, 1
      %s437 = smul.addr %s434, 2
      %s438 = sadd.s32 %s436, %s437
      %s439 = smul.addr %s438, 2
      %s440 = scalar_lea.vmem %s6, %s439
      %p441 = scmp.eq.s32.totalorder %s23, 0
      %v442 = vld [vmem:[%s400] sm:$0xff]
      %v443 = vld [vmem:[%s400 + $0x8] sm:$0xff]
      %v444 = vld [vmem:[%s400 + $0x10] sm:$0xff]
      %s445 = scalar_select %p441, 1, 0
      %v446 = vstv %s445
      %vm447 = vcmp.eq.s32.totalorder %v446, 1
      %v448 = vsel %vm447, 0.0, %v442
      %v449 = vsel %vm447, 0.0, %v443
      %v450 = vsel %vm447, 0.0, %v444
      %vm451 = vcmask 31744
      %452 = vst.msk [vmem:[#allocation2] sm:$0xff] %vm451, %v448
      %453 = vst.msk [vmem:[#allocation2 + $0x8] sm:$0xff] %vm451, %v449
      %454 = vst.msk [vmem:[#allocation2 + $0x10] sm:$0xff] %vm451, %v450
      %v455 = vld [vmem:[%s386] sm:$0xff]
      %v456 = vld [vmem:[%s386 + $0x8] sm:$0xff]
      %v457 = vld [vmem:[%s386 + $0x10] sm:$0xff]
      %v458 = vld [vmem:[%s386 + $0x18] sm:$0xff]
      %v459 = vld [vmem:[%s386 + $0x20] sm:$0xff]
      %v460 = vld [vmem:[%s386 + $0x28] sm:$0xff]
      %v461 = vld [vmem:[%s386 + $0x30] sm:$0xff]
      %v462 = vld [vmem:[%s386 + $0x38] sm:$0xff]
      %v463 = vld [vmem:[%s386 + $0x40] sm:$0xff]
      %v464 = vld [vmem:[%s386 + $0x48] sm:$0xff]
      %v465 = vld [vmem:[%s386 + $0x50] sm:$0xff]
      %v466 = vld [vmem:[%s386 + $0x58] sm:$0xff]
      %v467 = vld [vmem:[%s386 + $0x60] sm:$0xff]
      %v468 = vld [vmem:[%s386 + $0x68] sm:$0xff]
      %v469 = vld [vmem:[%s386 + $0x70] sm:$0xff]
      %v470 = vld [vmem:[%s386 + $0x78] sm:$0xff]
      %v471 = vld [vmem:[%s386 + $0x80] sm:$0xff]
      %v472 = vld [vmem:[%s386 + $0x88] sm:$0xff]
      %v473 = vld [vmem:[%s386 + $0x90] sm:$0xff]
      %v474 = vld [vmem:[%s386 + $0x98] sm:$0xff]
      %v475 = vld [vmem:[%s386 + $0xa0] sm:$0xff]
      %v476 = vld [vmem:[%s386 + $0xa8] sm:$0xff]
      %v477 = vld [vmem:[%s386 + $0xb0] sm:$0xff]
      %v478 = vld [vmem:[%s386 + $0xb8] sm:$0xff]
      %s479 = scalar_lea.vmem [#allocation2], 24
      %480 = vst.msk [vmem:[%s479] sm:$0xff] %vm451, %v455
      %481 = vst.msk [vmem:[%s479 + $0x8] sm:$0xff] %vm451, %v456
      %482 = vst.msk [vmem:[%s479 + $0x10] sm:$0xff] %vm451, %v457
      %483 = vst.msk [vmem:[%s479 + $0x18] sm:$0xff] %vm451, %v458
      %484 = vst.msk [vmem:[%s479 + $0x20] sm:$0xff] %vm451, %v459
      %485 = vst.msk [vmem:[%s479 + $0x28] sm:$0xff] %vm451, %v460
      %486 = vst.msk [vmem:[%s479 + $0x30] sm:$0xff] %vm451, %v461
      %487 = vst.msk [vmem:[%s479 + $0x38] sm:$0xff] %vm451, %v462
      %488 = vst.msk [vmem:[%s479 + $0x40] sm:$0xff] %vm451, %v463
      %489 = vst.msk [vmem:[%s479 + $0x48] sm:$0xff] %vm451, %v464
      %490 = vst.msk [vmem:[%s479 + $0x50] sm:$0xff] %vm451, %v465
      %491 = vst.msk [vmem:[%s479 + $0x58] sm:$0xff] %vm451, %v466
      %492 = vst.msk [vmem:[%s479 + $0x60] sm:$0xff] %vm451, %v467
      %493 = vst.msk [vmem:[%s479 + $0x68] sm:$0xff] %vm451, %v468
      %494 = vst.msk [vmem:[%s479 + $0x70] sm:$0xff] %vm451, %v469
      %495 = vst.msk [vmem:[%s479 + $0x78] sm:$0xff] %vm451, %v470
      %496 = vst.msk [vmem:[%s479 + $0x80] sm:$0xff] %vm451, %v471
      %497 = vst.msk [vmem:[%s479 + $0x88] sm:$0xff] %vm451, %v472
      %498 = vst.msk [vmem:[%s479 + $0x90] sm:$0xff] %vm451, %v473
      %499 = vst.msk [vmem:[%s479 + $0x98] sm:$0xff] %vm451, %v474
      %500 = vst.msk [vmem:[%s479 + $0xa0] sm:$0xff] %vm451, %v475
      %501 = vst.msk [vmem:[%s479 + $0xa8] sm:$0xff] %vm451, %v476
      %502 = vst.msk [vmem:[%s479 + $0xb0] sm:$0xff] %vm451, %v477
      %503 = vst.msk [vmem:[%s479 + $0xb8] sm:$0xff] %vm451, %v478
      %p504 = scmp.eq.s32.totalorder %s23, 1
      %v505 = vld [vmem:[%s417] sm:$0xff]
      %v506 = vld [vmem:[%s417 + $0x8] sm:$0xff]
      %v507 = vld [vmem:[%s417 + $0x10] sm:$0xff]
      %s508 = scalar_select %p504, 1, 0
      %v509 = vstv %s508
      %vm510 = vcmp.eq.s32.totalorder %v509, 1
      %v511 = vsel %vm510, 0.0, %v505
      %v512 = vsel %vm510, 0.0, %v506
      %v513 = vsel %vm510, 0.0, %v507
      %s514 = scalar_lea.vmem [#allocation2], 216
      %515 = vst.msk [vmem:[%s514] sm:$0xff] %vm451, %v511
      %516 = vst.msk [vmem:[%s514 + $0x8] sm:$0xff] %vm451, %v512
      %517 = vst.msk [vmem:[%s514 + $0x10] sm:$0xff] %vm451, %v513
      %v518 = vld [vmem:[#allocation2] sm:$0xff]
      %v519 = vld [vmem:[#allocation2 + $0x8] sm:$0xff]
      %v520 = vld [vmem:[#allocation2 + $0x18] sm:$0xff]
      %v521 = vld [vmem:[#allocation2 + $0x20] sm:$0xff]
      %v522 = vld [vmem:[#allocation2 + $0x30] sm:$0xff]
      %v523 = vld [vmem:[#allocation2 + $0x38] sm:$0xff]
      %v524 = vld [vmem:[#allocation2 + $0x48] sm:$0xff]
      %v525 = vld [vmem:[#allocation2 + $0x50] sm:$0xff]
      %v526 = vld [vmem:[#allocation2 + $0x60] sm:$0xff]
      %v527 = vld [vmem:[#allocation2 + $0x68] sm:$0xff]
      %v528 = vld [vmem:[#allocation2 + $0x78] sm:$0xff]
      %v529 = vld [vmem:[#allocation2 + $0x80] sm:$0xff]
      %v530 = vld [vmem:[#allocation2 + $0x90] sm:$0xff]
      %v531 = vld [vmem:[#allocation2 + $0x98] sm:$0xff]
      %v532 = vld [vmem:[#allocation2 + $0xa8] sm:$0xff]
      %v533 = vld [vmem:[#allocation2 + $0xb0] sm:$0xff]
      %534 = vst.msk [vmem:[#allocation3] sm:$0xff] %vm451, %v518
      %535 = vst.msk [vmem:[#allocation3 + $0x8] sm:$0xff] %vm451, %v519
      %536 = vst.msk [vmem:[#allocation3 + $0x10] sm:$0xff] %vm451, %v520
      %537 = vst.msk [vmem:[#allocation3 + $0x18] sm:$0xff] %vm451, %v521
      %538 = vst.msk [vmem:[#allocation3 + $0x20] sm:$0xff] %vm451, %v522
      %539 = vst.msk [vmem:[#allocation3 + $0x28] sm:$0xff] %vm451, %v523
      %540 = vst.msk [vmem:[#allocation3 + $0x30] sm:$0xff] %vm451, %v524
      %541 = vst.msk [vmem:[#allocation3 + $0x38] sm:$0xff] %vm451, %v525
      %542 = vst.msk [vmem:[#allocation3 + $0x40] sm:$0xff] %vm451, %v526
      %543 = vst.msk [vmem:[#allocation3 + $0x48] sm:$0xff] %vm451, %v527
      %544 = vst.msk [vmem:[#allocation3 + $0x50] sm:$0xff] %vm451, %v528
      %545 = vst.msk [vmem:[#allocation3 + $0x58] sm:$0xff] %vm451, %v529
      %546 = vst.msk [vmem:[#allocation3 + $0x60] sm:$0xff] %vm451, %v530
      %547 = vst.msk [vmem:[#allocation3 + $0x68] sm:$0xff] %vm451, %v531
      %548 = vst.msk [vmem:[#allocation3 + $0x70] sm:$0xff] %vm451, %v532
      %549 = vst.msk [vmem:[#allocation3 + $0x78] sm:$0xff] %vm451, %v533
      %v550 = vld [vmem:[#allocation2 + $0x1] sm:$0xff]
      %v551 = vld [vmem:[#allocation2 + $0x9] sm:$0xff]
      %v552 = vld [vmem:[#allocation2 + $0x19] sm:$0xff]
      %v553 = vld [vmem:[#allocation2 + $0x21] sm:$0xff]
      %v554 = vld [vmem:[#allocation2 + $0x31] sm:$0xff]
      %v555 = vld [vmem:[#allocation2 + $0x39] sm:$0xff]
      %v556 = vld [vmem:[#allocation2 + $0x49] sm:$0xff]
      %v557 = vld [vmem:[#allocation2 + $0x51] sm:$0xff]
      %v558 = vld [vmem:[#allocation2 + $0x61] sm:$0xff]
      %v559 = vld [vmem:[#allocation2 + $0x69] sm:$0xff]
      %v560 = vld [vmem:[#allocation2 + $0x79] sm:$0xff]
      %v561 = vld [vmem:[#allocation2 + $0x81] sm:$0xff]
      %v562 = vld [vmem:[#allocation2 + $0x91] sm:$0xff]
      %v563 = vld [vmem:[#allocation2 + $0x99] sm:$0xff]
      %v564 = vld [vmem:[#allocation2 + $0xa9] sm:$0xff]
      %v565 = vld [vmem:[#allocation2 + $0xb1] sm:$0xff]
      %582 = vrot.lane.b32.xlu0 %v550, 4
      %v583 = vpop.permute.xlu0 %582
      %584 = vrot.lane.b32.xlu0 %v551, 4
      %v585 = vpop.permute.xlu0 %584
      %586 = vrot.lane.b32.xlu0 %v552, 4
      %v587 = vpop.permute.xlu0 %586
      %588 = vrot.lane.b32.xlu0 %v553, 4
      %v589 = vpop.permute.xlu0 %588
      %590 = vrot.lane.b32.xlu0 %v554, 4
      %v591 = vpop.permute.xlu0 %590
      %592 = vrot.lane.b32.xlu0 %v555, 4
      %v593 = vpop.permute.xlu0 %592
      %594 = vrot.lane.b32.xlu0 %v556, 4
      %v595 = vpop.permute.xlu0 %594
      %596 = vrot.lane.b32.xlu0 %v557, 4
      %v597 = vpop.permute.xlu0 %596
      %598 = vrot.lane.b32.xlu0 %v558, 4
      %v599 = vpop.permute.xlu0 %598
      %600 = vrot.lane.b32.xlu0 %v559, 4
      %v601 = vpop.permute.xlu0 %600
      %602 = vrot.lane.b32.xlu0 %v560, 4
      %v603 = vpop.permute.xlu0 %602
      %604 = vrot.lane.b32.xlu0 %v561, 4
      %v605 = vpop.permute.xlu0 %604
      %606 = vrot.lane.b32.xlu0 %v562, 4
      %v607 = vpop.permute.xlu0 %606
      %608 = vrot.lane.b32.xlu0 %v563, 4
      %v609 = vpop.permute.xlu0 %608
      %610 = vrot.lane.b32.xlu0 %v564, 4
      %v611 = vpop.permute.xlu0 %610
      %612 = vrot.lane.b32.xlu0 %v565, 4
      %v613 = vpop.permute.xlu0 %612
      %vm630 = vcmask 64544
      %631 = vst.msk [vmem:[#allocation3] sm:$0xff] %vm630, %v583
      %632 = vst.msk [vmem:[#allocation3 + $0x8] sm:$0xff] %vm630, %v585
      %633 = vst.msk [vmem:[#allocation3 + $0x10] sm:$0xff] %vm630, %v587
      %634 = vst.msk [vmem:[#allocation3 + $0x18] sm:$0xff] %vm630, %v589
      %635 = vst.msk [vmem:[#allocation3 + $0x20] sm:$0xff] %vm630, %v591
      %636 = vst.msk [vmem:[#allocation3 + $0x28] sm:$0xff] %vm630, %v593
      %637 = vst.msk [vmem:[#allocation3 + $0x30] sm:$0xff] %vm630, %v595
      %638 = vst.msk [vmem:[#allocation3 + $0x38] sm:$0xff] %vm630, %v597
      %639 = vst.msk [vmem:[#allocation3 + $0x40] sm:$0xff] %vm630, %v599
      %640 = vst.msk [vmem:[#allocation3 + $0x48] sm:$0xff] %vm630, %v601
      %641 = vst.msk [vmem:[#allocation3 + $0x50] sm:$0xff] %vm630, %v603
      %642 = vst.msk [vmem:[#allocation3 + $0x58] sm:$0xff] %vm630, %v605
      %643 = vst.msk [vmem:[#allocation3 + $0x60] sm:$0xff] %vm630, %v607
      %644 = vst.msk [vmem:[#allocation3 + $0x68] sm:$0xff] %vm630, %v609
      %645 = vst.msk [vmem:[#allocation3 + $0x70] sm:$0xff] %vm630, %v611
      %646 = vst.msk [vmem:[#allocation3 + $0x78] sm:$0xff] %vm630, %v613
      %v647 = vld [vmem:[#allocation2 + $0x2] sm:$0xff]
      %v648 = vld [vmem:[#allocation2 + $0xa] sm:$0xff]
      %v649 = vld [vmem:[#allocation2 + $0x1a] sm:$0xff]
      %v650 = vld [vmem:[#allocation2 + $0x22] sm:$0xff]
      %v651 = vld [vmem:[#allocation2 + $0x32] sm:$0xff]
      %v652 = vld [vmem:[#allocation2 + $0x3a] sm:$0xff]
      %v653 = vld [vmem:[#allocation2 + $0x4a] sm:$0xff]
      %v654 = vld [vmem:[#allocation2 + $0x52] sm:$0xff]
      %v655 = vld [vmem:[#allocation2 + $0x62] sm:$0xff]
      %v656 = vld [vmem:[#allocation2 + $0x6a] sm:$0xff]
      %v657 = vld [vmem:[#allocation2 + $0x7a] sm:$0xff]
      %v658 = vld [vmem:[#allocation2 + $0x82] sm:$0xff]
      %v659 = vld [vmem:[#allocation2 + $0x92] sm:$0xff]
      %v660 = vld [vmem:[#allocation2 + $0x9a] sm:$0xff]
      %v661 = vld [vmem:[#allocation2 + $0xaa] sm:$0xff]
      %v662 = vld [vmem:[#allocation2 + $0xb2] sm:$0xff]
      %679 = vrot.lane.b32.xlu0 %v647, 8
      %v680 = vpop.permute.xlu0 %679
      %681 = vrot.lane.b32.xlu0 %v648, 8
      %v682 = vpop.permute.xlu0 %681
      %683 = vrot.lane.b32.xlu0 %v649, 8
      %v684 = vpop.permute.xlu0 %683
      %685 = vrot.lane.b32.xlu0 %v650, 8
      %v686 = vpop.permute.xlu0 %685
      %687 = vrot.lane.b32.xlu0 %v651, 8
      %v688 = vpop.permute.xlu0 %687
      %689 = vrot.lane.b32.xlu0 %v652, 8
      %v690 = vpop.permute.xlu0 %689
      %691 = vrot.lane.b32.xlu0 %v653, 8
      %v692 = vpop.permute.xlu0 %691
      %693 = vrot.lane.b32.xlu0 %v654, 8
      %v694 = vpop.permute.xlu0 %693
      %695 = vrot.lane.b32.xlu0 %v655, 8
      %v696 = vpop.permute.xlu0 %695
      %697 = vrot.lane.b32.xlu0 %v656, 8
      %v698 = vpop.permute.xlu0 %697
      %699 = vrot.lane.b32.xlu0 %v657, 8
      %v700 = vpop.permute.xlu0 %699
      %701 = vrot.lane.b32.xlu0 %v658, 8
      %v702 = vpop.permute.xlu0 %701
      %703 = vrot.lane.b32.xlu0 %v659, 8
      %v704 = vpop.permute.xlu0 %703
      %705 = vrot.lane.b32.xlu0 %v660, 8
      %v706 = vpop.permute.xlu0 %705
      %707 = vrot.lane.b32.xlu0 %v661, 8
      %v708 = vpop.permute.xlu0 %707
      %709 = vrot.lane.b32.xlu0 %v662, 8
      %v710 = vpop.permute.xlu0 %709
      %vm727 = vcmask 97344
      %728 = vst.msk [vmem:[#allocation3] sm:$0xff] %vm727, %v680
      %729 = vst.msk [vmem:[#allocation3 + $0x8] sm:$0xff] %vm727, %v682
      %730 = vst.msk [vmem:[#allocation3 + $0x10] sm:$0xff] %vm727, %v684
      %731 = vst.msk [vmem:[#allocation3 + $0x18] sm:$0xff] %vm727, %v686
      %732 = vst.msk [vmem:[#allocation3 + $0x20] sm:$0xff] %vm727, %v688
      %733 = vst.msk [vmem:[#allocation3 + $0x28] sm:$0xff] %vm727, %v690
      %734 = vst.msk [vmem:[#allocation3 + $0x30] sm:$0xff] %vm727, %v692
      %735 = vst.msk [vmem:[#allocation3 + $0x38] sm:$0xff] %vm727, %v694
      %736 = vst.msk [vmem:[#allocation3 + $0x40] sm:$0xff] %vm727, %v696
      %737 = vst.msk [vmem:[#allocation3 + $0x48] sm:$0xff] %vm727, %v698
      %738 = vst.msk [vmem:[#allocation3 + $0x50] sm:$0xff] %vm727, %v700
      %739 = vst.msk [vmem:[#allocation3 + $0x58] sm:$0xff] %vm727, %v702
      %740 = vst.msk [vmem:[#allocation3 + $0x60] sm:$0xff] %vm727, %v704
      %741 = vst.msk [vmem:[#allocation3 + $0x68] sm:$0xff] %vm727, %v706
      %742 = vst.msk [vmem:[#allocation3 + $0x70] sm:$0xff] %vm727, %v708
      %743 = vst.msk [vmem:[#allocation3 + $0x78] sm:$0xff] %vm727, %v710
      %v744 = vld [vmem:[%s479] sm:$0xff]
      %v745 = vld [vmem:[%s479 + $0x8] sm:$0xff]
      %v746 = vld [vmem:[%s479 + $0x18] sm:$0xff]
      %v747 = vld [vmem:[%s479 + $0x20] sm:$0xff]
      %v748 = vld [vmem:[%s479 + $0x30] sm:$0xff]
      %v749 = vld [vmem:[%s479 + $0x38] sm:$0xff]
      %v750 = vld [vmem:[%s479 + $0x48] sm:$0xff]
      %v751 = vld [vmem:[%s479 + $0x50] sm:$0xff]
      %v752 = vld [vmem:[%s479 + $0x60] sm:$0xff]
      %v753 = vld [vmem:[%s479 + $0x68] sm:$0xff]
      %v754 = vld [vmem:[%s479 + $0x78] sm:$0xff]
      %v755 = vld [vmem:[%s479 + $0x80] sm:$0xff]
      %v756 = vld [vmem:[%s479 + $0x90] sm:$0xff]
      %v757 = vld [vmem:[%s479 + $0x98] sm:$0xff]
      %v758 = vld [vmem:[%s479 + $0xa8] sm:$0xff]
      %v759 = vld [vmem:[%s479 + $0xb0] sm:$0xff]
      %776 = vrot.lane.b32.xlu0 %v744, 12
      %v777 = vpop.permute.xlu0 %776
      %778 = vrot.lane.b32.xlu0 %v745, 12
      %v779 = vpop.permute.xlu0 %778
      %780 = vrot.lane.b32.xlu0 %v746, 12
      %v781 = vpop.permute.xlu0 %780
      %782 = vrot.lane.b32.xlu0 %v747, 12
      %v783 = vpop.permute.xlu0 %782
      %784 = vrot.lane.b32.xlu0 %v748, 12
      %v785 = vpop.permute.xlu0 %784
      %786 = vrot.lane.b32.xlu0 %v749, 12
      %v787 = vpop.permute.xlu0 %786
      %788 = vrot.lane.b32.xlu0 %v750, 12
      %v789 = vpop.permute.xlu0 %788
      %790 = vrot.lane.b32.xlu0 %v751, 12
      %v791 = vpop.permute.xlu0 %790
      %792 = vrot.lane.b32.xlu0 %v752, 12
      %v793 = vpop.permute.xlu0 %792
      %794 = vrot.lane.b32.xlu0 %v753, 12
      %v795 = vpop.permute.xlu0 %794
      %796 = vrot.lane.b32.xlu0 %v754, 12
      %v797 = vpop.permute.xlu0 %796
      %798 = vrot.lane.b32.xlu0 %v755, 12
      %v799 = vpop.permute.xlu0 %798
      %800 = vrot.lane.b32.xlu0 %v756, 12
      %v801 = vpop.permute.xlu0 %800
      %802 = vrot.lane.b32.xlu0 %v757, 12
      %v803 = vpop.permute.xlu0 %802
      %804 = vrot.lane.b32.xlu0 %v758, 12
      %v805 = vpop.permute.xlu0 %804
      %806 = vrot.lane.b32.xlu0 %v759, 12
      %v807 = vpop.permute.xlu0 %806
      %vm824 = vcmask 130144
      %825 = vst.msk [vmem:[#allocation3] sm:$0xff] %vm824, %v777
      %826 = vst.msk [vmem:[#allocation3 + $0x8] sm:$0xff] %vm824, %v779
      %827 = vst.msk [vmem:[#allocation3 + $0x10] sm:$0xff] %vm824, %v781
      %828 = vst.msk [vmem:[#allocation3 + $0x18] sm:$0xff] %vm824, %v783
      %829 = vst.msk [vmem:[#allocation3 + $0x20] sm:$0xff] %vm824, %v785
      %830 = vst.msk [vmem:[#allocation3 + $0x28] sm:$0xff] %vm824, %v787
      %831 = vst.msk [vmem:[#allocation3 + $0x30] sm:$0xff] %vm824, %v789
      %832 = vst.msk [vmem:[#allocation3 + $0x38] sm:$0xff] %vm824, %v791
      %833 = vst.msk [vmem:[#allocation3 + $0x40] sm:$0xff] %vm824, %v793
      %834 = vst.msk [vmem:[#allocation3 + $0x48] sm:$0xff] %vm824, %v795
      %835 = vst.msk [vmem:[#allocation3 + $0x50] sm:$0xff] %vm824, %v797
      %836 = vst.msk [vmem:[#allocation3 + $0x58] sm:$0xff] %vm824, %v799
      %837 = vst.msk [vmem:[#allocation3 + $0x60] sm:$0xff] %vm824, %v801
      %838 = vst.msk [vmem:[#allocation3 + $0x68] sm:$0xff] %vm824, %v803
      %839 = vst.msk [vmem:[#allocation3 + $0x70] sm:$0xff] %vm824, %v805
      %840 = vst.msk [vmem:[#allocation3 + $0x78] sm:$0xff] %vm824, %v807
      %v841 = vld [vmem:[%s479 + $0x1] sm:$0xff]
      %v842 = vld [vmem:[%s479 + $0x9] sm:$0xff]
      %v843 = vld [vmem:[%s479 + $0x19] sm:$0xff]
      %v844 = vld [vmem:[%s479 + $0x21] sm:$0xff]
      %v845 = vld [vmem:[%s479 + $0x31] sm:$0xff]
      %v846 = vld [vmem:[%s479 + $0x39] sm:$0xff]
      %v847 = vld [vmem:[%s479 + $0x49] sm:$0xff]
      %v848 = vld [vmem:[%s479 + $0x51] sm:$0xff]
      %v849 = vld [vmem:[%s479 + $0x61] sm:$0xff]
      %v850 = vld [vmem:[%s479 + $0x69] sm:$0xff]
      %v851 = vld [vmem:[%s479 + $0x79] sm:$0xff]
      %v852 = vld [vmem:[%s479 + $0x81] sm:$0xff]
      %v853 = vld [vmem:[%s479 + $0x91] sm:$0xff]
      %v854 = vld [vmem:[%s479 + $0x99] sm:$0xff]
      %v855 = vld [vmem:[%s479 + $0xa9] sm:$0xff]
      %v856 = vld [vmem:[%s479 + $0xb1] sm:$0xff]
      %873 = vrot.lane.b32.xlu0 %v841, 16
      %v874 = vpop.permute.xlu0 %873
      %875 = vrot.lane.b32.xlu0 %v842, 16
      %v876 = vpop.permute.xlu0 %875
      %877 = vrot.lane.b32.xlu0 %v843, 16
      %v878 = vpop.permute.xlu0 %877
      %879 = vrot.lane.b32.xlu0 %v844, 16
      %v880 = vpop.permute.xlu0 %879
      %881 = vrot.lane.b32.xlu0 %v845, 16
      %v882 = vpop.permute.xlu0 %881
      %883 = vrot.lane.b32.xlu0 %v846, 16
      %v884 = vpop.permute.xlu0 %883
      %885 = vrot.lane.b32.xlu0 %v847, 16
      %v886 = vpop.permute.xlu0 %885
      %887 = vrot.lane.b32.xlu0 %v848, 16
      %v888 = vpop.permute.xlu0 %887
      %889 = vrot.lane.b32.xlu0 %v849, 16
      %v890 = vpop.permute.xlu0 %889
      %891 = vrot.lane.b32.xlu0 %v850, 16
      %v892 = vpop.permute.xlu0 %891
      %893 = vrot.lane.b32.xlu0 %v851, 16
      %v894 = vpop.permute.xlu0 %893
      %895 = vrot.lane.b32.xlu0 %v852, 16
      %v896 = vpop.permute.xlu0 %895
      %897 = vrot.lane.b32.xlu0 %v853, 16
      %v898 = vpop.permute.xlu0 %897
      %899 = vrot.lane.b32.xlu0 %v854, 16
      %v900 = vpop.permute.xlu0 %899
      %901 = vrot.lane.b32.xlu0 %v855, 16
      %v902 = vpop.permute.xlu0 %901
      %903 = vrot.lane.b32.xlu0 %v856, 16
      %v904 = vpop.permute.xlu0 %903
      %vm921 = vcmask 162944
      %922 = vst.msk [vmem:[#allocation3] sm:$0xff] %vm921, %v874
      %923 = vst.msk [vmem:[#allocation3 + $0x8] sm:$0xff] %vm921, %v876
      %924 = vst.msk [vmem:[#allocation3 + $0x10] sm:$0xff] %vm921, %v878
      %925 = vst.msk [vmem:[#allocation3 + $0x18] sm:$0xff] %vm921, %v880
      %926 = vst.msk [vmem:[#allocation3 + $0x20] sm:$0xff] %vm921, %v882
      %927 = vst.msk [vmem:[#allocation3 + $0x28] sm:$0xff] %vm921, %v884
      %928 = vst.msk [vmem:[#allocation3 + $0x30] sm:$0xff] %vm921, %v886
      %929 = vst.msk [vmem:[#allocation3 + $0x38] sm:$0xff] %vm921, %v888
      %930 = vst.msk [vmem:[#allocation3 + $0x40] sm:$0xff] %vm921, %v890
      %931 = vst.msk [vmem:[#allocation3 + $0x48] sm:$0xff] %vm921, %v892
      %932 = vst.msk [vmem:[#allocation3 + $0x50] sm:$0xff] %vm921, %v894
      %933 = vst.msk [vmem:[#allocation3 + $0x58] sm:$0xff] %vm921, %v896
      %934 = vst.msk [vmem:[#allocation3 + $0x60] sm:$0xff] %vm921, %v898
      %935 = vst.msk [vmem:[#allocation3 + $0x68] sm:$0xff] %vm921, %v900
      %936 = vst.msk [vmem:[#allocation3 + $0x70] sm:$0xff] %vm921, %v902
      %937 = vst.msk [vmem:[#allocation3 + $0x78] sm:$0xff] %vm921, %v904
      %v938 = vld [vmem:[%s479 + $0x2] sm:$0xff]
      %v939 = vld [vmem:[%s479 + $0xa] sm:$0xff]
      %v940 = vld [vmem:[%s479 + $0x1a] sm:$0xff]
      %v941 = vld [vmem:[%s479 + $0x22] sm:$0xff]
      %v942 = vld [vmem:[%s479 + $0x32] sm:$0xff]
      %v943 = vld [vmem:[%s479 + $0x3a] sm:$0xff]
      %v944 = vld [vmem:[%s479 + $0x4a] sm:$0xff]
      %v945 = vld [vmem:[%s479 + $0x52] sm:$0xff]
      %v946 = vld [vmem:[%s479 + $0x62] sm:$0xff]
      %v947 = vld [vmem:[%s479 + $0x6a] sm:$0xff]
      %v948 = vld [vmem:[%s479 + $0x7a] sm:$0xff]
      %v949 = vld [vmem:[%s479 + $0x82] sm:$0xff]
      %v950 = vld [vmem:[%s479 + $0x92] sm:$0xff]
      %v951 = vld [vmem:[%s479 + $0x9a] sm:$0xff]
      %v952 = vld [vmem:[%s479 + $0xaa] sm:$0xff]
      %v953 = vld [vmem:[%s479 + $0xb2] sm:$0xff]
      %970 = vrot.lane.b32.xlu0 %v938, 20
      %v971 = vpop.permute.xlu0 %970
      %972 = vrot.lane.b32.xlu0 %v939, 20
      %v973 = vpop.permute.xlu0 %972
      %974 = vrot.lane.b32.xlu0 %v940, 20
      %v975 = vpop.permute.xlu0 %974
      %976 = vrot.lane.b32.xlu0 %v941, 20
      %v977 = vpop.permute.xlu0 %976
      %978 = vrot.lane.b32.xlu0 %v942, 20
      %v979 = vpop.permute.xlu0 %978
      %980 = vrot.lane.b32.xlu0 %v943, 20
      %v981 = vpop.permute.xlu0 %980
      %982 = vrot.lane.b32.xlu0 %v944, 20
      %v983 = vpop.permute.xlu0 %982
      %984 = vrot.lane.b32.xlu0 %v945, 20
      %v985 = vpop.permute.xlu0 %984
      %986 = vrot.lane.b32.xlu0 %v946, 20
      %v987 = vpop.permute.xlu0 %986
      %988 = vrot.lane.b32.xlu0 %v947, 20
      %v989 = vpop.permute.xlu0 %988
      %990 = vrot.lane.b32.xlu0 %v948, 20
      %v991 = vpop.permute.xlu0 %990
      %992 = vrot.lane.b32.xlu0 %v949, 20
      %v993 = vpop.permute.xlu0 %992
      %994 = vrot.lane.b32.xlu0 %v950, 20
      %v995 = vpop.permute.xlu0 %994
      %996 = vrot.lane.b32.xlu0 %v951, 20
      %v997 = vpop.permute.xlu0 %996
      %998 = vrot.lane.b32.xlu0 %v952, 20
      %v999 = vpop.permute.xlu0 %998
      %1000 = vrot.lane.b32.xlu0 %v953, 20
      %v1001 = vpop.permute.xlu0 %1000
      %vm1018 = vcmask 195744
      %1019 = vst.msk [vmem:[#allocation3] sm:$0xff] %vm1018, %v971
      %1020 = vst.msk [vmem:[#allocation3 + $0x8] sm:$0xff] %vm1018, %v973
      %1021 = vst.msk [vmem:[#allocation3 + $0x10] sm:$0xff] %vm1018, %v975
      %1022 = vst.msk [vmem:[#allocation3 + $0x18] sm:$0xff] %vm1018, %v977
      %1023 = vst.msk [vmem:[#allocation3 + $0x20] sm:$0xff] %vm1018, %v979
      %1024 = vst.msk [vmem:[#allocation3 + $0x28] sm:$0xff] %vm1018, %v981
      %1025 = vst.msk [vmem:[#allocation3 + $0x30] sm:$0xff] %vm1018, %v983
      %1026 = vst.msk [vmem:[#allocation3 + $0x38] sm:$0xff] %vm1018, %v985
      %1027 = vst.msk [vmem:[#allocation3 + $0x40] sm:$0xff] %vm1018, %v987
      %1028 = vst.msk [vmem:[#allocation3 + $0x48] sm:$0xff] %vm1018, %v989
      %1029 = vst.msk [vmem:[#allocation3 + $0x50] sm:$0xff] %vm1018, %v991
      %1030 = vst.msk [vmem:[#allocation3 + $0x58] sm:$0xff] %vm1018, %v993
      %1031 = vst.msk [vmem:[#allocation3 + $0x60] sm:$0xff] %vm1018, %v995
      %1032 = vst.msk [vmem:[#allocation3 + $0x68] sm:$0xff] %vm1018, %v997
      %1033 = vst.msk [vmem:[#allocation3 + $0x70] sm:$0xff] %vm1018, %v999
      %1034 = vst.msk [vmem:[#allocation3 + $0x78] sm:$0xff] %vm1018, %v1001
      %s1035 = scalar_lea.vmem [#allocation2], 48
      %v1036 = vld [vmem:[%s1035] sm:$0xff]
      %v1037 = vld [vmem:[%s1035 + $0x8] sm:$0xff]
      %v1038 = vld [vmem:[%s1035 + $0x18] sm:$0xff]
      %v1039 = vld [vmem:[%s1035 + $0x20] sm:$0xff]
      %v1040 = vld [vmem:[%s1035 + $0x30] sm:$0xff]
      %v1041 = vld [vmem:[%s1035 + $0x38] sm:$0xff]
      %v1042 = vld [vmem:[%s1035 + $0x48] sm:$0xff]
      %v1043 = vld [vmem:[%s1035 + $0x50] sm:$0xff]
      %v1044 = vld [vmem:[%s1035 + $0x60] sm:$0xff]
      %v1045 = vld [vmem:[%s1035 + $0x68] sm:$0xff]
      %v1046 = vld [vmem:[%s1035 + $0x78] sm:$0xff]
      %v1047 = vld [vmem:[%s1035 + $0x80] sm:$0xff]
      %v1048 = vld [vmem:[%s1035 + $0x90] sm:$0xff]
      %v1049 = vld [vmem:[%s1035 + $0x98] sm:$0xff]
      %v1050 = vld [vmem:[%s1035 + $0xa8] sm:$0xff]
      %v1051 = vld [vmem:[%s1035 + $0xb0] sm:$0xff]
      %1068 = vrot.lane.b32.xlu0 %v1036, 24
      %v1069 = vpop.permute.xlu0 %1068
      %1070 = vrot.lane.b32.xlu0 %v1037, 24
      %v1071 = vpop.permute.xlu0 %1070
      %1072 = vrot.lane.b32.xlu0 %v1038, 24
      %v1073 = vpop.permute.xlu0 %1072
      %1074 = vrot.lane.b32.xlu0 %v1039, 24
      %v1075 = vpop.permute.xlu0 %1074
      %1076 = vrot.lane.b32.xlu0 %v1040, 24
      %v1077 = vpop.permute.xlu0 %1076
      %1078 = vrot.lane.b32.xlu0 %v1041, 24
      %v1079 = vpop.permute.xlu0 %1078
      %1080 = vrot.lane.b32.xlu0 %v1042, 24
      %v1081 = vpop.permute.xlu0 %1080
      %1082 = vrot.lane.b32.xlu0 %v1043, 24
      %v1083 = vpop.permute.xlu0 %1082
      %1084 = vrot.lane.b32.xlu0 %v1044, 24
      %v1085 = vpop.permute.xlu0 %1084
      %1086 = vrot.lane.b32.xlu0 %v1045, 24
      %v1087 = vpop.permute.xlu0 %1086
      %1088 = vrot.lane.b32.xlu0 %v1046, 24
      %v1089 = vpop.permute.xlu0 %1088
      %1090 = vrot.lane.b32.xlu0 %v1047, 24
      %v1091 = vpop.permute.xlu0 %1090
      %1092 = vrot.lane.b32.xlu0 %v1048, 24
      %v1093 = vpop.permute.xlu0 %1092
      %1094 = vrot.lane.b32.xlu0 %v1049, 24
      %v1095 = vpop.permute.xlu0 %1094
      %1096 = vrot.lane.b32.xlu0 %v1050, 24
      %v1097 = vpop.permute.xlu0 %1096
      %1098 = vrot.lane.b32.xlu0 %v1051, 24
      %v1099 = vpop.permute.xlu0 %1098
      %vm1116 = vcmask 228544
      %1117 = vst.msk [vmem:[#allocation3] sm:$0xff] %vm1116, %v1069
      %1118 = vst.msk [vmem:[#allocation3 + $0x8] sm:$0xff] %vm1116, %v1071
      %1119 = vst.msk [vmem:[#allocation3 + $0x10] sm:$0xff] %vm1116, %v1073
      %1120 = vst.msk [vmem:[#allocation3 + $0x18] sm:$0xff] %vm1116, %v1075
      %1121 = vst.msk [vmem:[#allocation3 + $0x20] sm:$0xff] %vm1116, %v1077
      %1122 = vst.msk [vmem:[#allocation3 + $0x28] sm:$0xff] %vm1116, %v1079
      %1123 = vst.msk [vmem:[#allocation3 + $0x30] sm:$0xff] %vm1116, %v1081
      %1124 = vst.msk [vmem:[#allocation3 + $0x38] sm:$0xff] %vm1116, %v1083
      %1125 = vst.msk [vmem:[#allocation3 + $0x40] sm:$0xff] %vm1116, %v1085
      %1126 = vst.msk [vmem:[#allocation3 + $0x48] sm:$0xff] %vm1116, %v1087
      %1127 = vst.msk [vmem:[#allocation3 + $0x50] sm:$0xff] %vm1116, %v1089
      %1128 = vst.msk [vmem:[#allocation3 + $0x58] sm:$0xff] %vm1116, %v1091
      %1129 = vst.msk [vmem:[#allocation3 + $0x60] sm:$0xff] %vm1116, %v1093
      %1130 = vst.msk [vmem:[#allocation3 + $0x68] sm:$0xff] %vm1116, %v1095
      %1131 = vst.msk [vmem:[#allocation3 + $0x70] sm:$0xff] %vm1116, %v1097
      %1132 = vst.msk [vmem:[#allocation3 + $0x78] sm:$0xff] %vm1116, %v1099
      %v1133 = vld [vmem:[%s1035 + $0x1] sm:$0xff]
      %v1134 = vld [vmem:[%s1035 + $0x9] sm:$0xff]
      %v1135 = vld [vmem:[%s1035 + $0x19] sm:$0xff]
      %v1136 = vld [vmem:[%s1035 + $0x21] sm:$0xff]
      %v1137 = vld [vmem:[%s1035 + $0x31] sm:$0xff]
      %v1138 = vld [vmem:[%s1035 + $0x39] sm:$0xff]
      %v1139 = vld [vmem:[%s1035 + $0x49] sm:$0xff]
      %v1140 = vld [vmem:[%s1035 + $0x51] sm:$0xff]
      %v1141 = vld [vmem:[%s1035 + $0x61] sm:$0xff]
      %v1142 = vld [vmem:[%s1035 + $0x69] sm:$0xff]
      %v1143 = vld [vmem:[%s1035 + $0x79] sm:$0xff]
      %v1144 = vld [vmem:[%s1035 + $0x81] sm:$0xff]
      %v1145 = vld [vmem:[%s1035 + $0x91] sm:$0xff]
      %v1146 = vld [vmem:[%s1035 + $0x99] sm:$0xff]
      %v1147 = vld [vmem:[%s1035 + $0xa9] sm:$0xff]
      %v1148 = vld [vmem:[%s1035 + $0xb1] sm:$0xff]
      %1165 = vrot.lane.b32.xlu0 %v1133, 28
      %v1166 = vpop.permute.xlu0 %1165
      %1167 = vrot.lane.b32.xlu0 %v1134, 28
      %v1168 = vpop.permute.xlu0 %1167
      %1169 = vrot.lane.b32.xlu0 %v1135, 28
      %v1170 = vpop.permute.xlu0 %1169
      %1171 = vrot.lane.b32.xlu0 %v1136, 28
      %v1172 = vpop.permute.xlu0 %1171
      %1173 = vrot.lane.b32.xlu0 %v1137, 28
      %v1174 = vpop.permute.xlu0 %1173
      %1175 = vrot.lane.b32.xlu0 %v1138, 28
      %v1176 = vpop.permute.xlu0 %1175
      %1177 = vrot.lane.b32.xlu0 %v1139, 28
      %v1178 = vpop.permute.xlu0 %1177
      %1179 = vrot.lane.b32.xlu0 %v1140, 28
      %v1180 = vpop.permute.xlu0 %1179
      %1181 = vrot.lane.b32.xlu0 %v1141, 28
      %v1182 = vpop.permute.xlu0 %1181
      %1183 = vrot.lane.b32.xlu0 %v1142, 28
      %v1184 = vpop.permute.xlu0 %1183
      %1185 = vrot.lane.b32.xlu0 %v1143, 28
      %v1186 = vpop.permute.xlu0 %1185
      %1187 = vrot.lane.b32.xlu0 %v1144, 28
      %v1188 = vpop.permute.xlu0 %1187
      %1189 = vrot.lane.b32.xlu0 %v1145, 28
      %v1190 = vpop.permute.xlu0 %1189
      %1191 = vrot.lane.b32.xlu0 %v1146, 28
      %v1192 = vpop.permute.xlu0 %1191
      %1193 = vrot.lane.b32.xlu0 %v1147, 28
      %v1194 = vpop.permute.xlu0 %1193
      %1195 = vrot.lane.b32.xlu0 %v1148, 28
      %v1196 = vpop.permute.xlu0 %1195
      %vm1213 = vcmask 261344
      %1214 = vst.msk [vmem:[#allocation3] sm:$0xff] %vm1213, %v1166
      %1215 = vst.msk [vmem:[#allocation3 + $0x8] sm:$0xff] %vm1213, %v1168
      %1216 = vst.msk [vmem:[#allocation3 + $0x10] sm:$0xff] %vm1213, %v1170
      %1217 = vst.msk [vmem:[#allocation3 + $0x18] sm:$0xff] %vm1213, %v1172
      %1218 = vst.msk [vmem:[#allocation3 + $0x20] sm:$0xff] %vm1213, %v1174
      %1219 = vst.msk [vmem:[#allocation3 + $0x28] sm:$0xff] %vm1213, %v1176
      %1220 = vst.msk [vmem:[#allocation3 + $0x30] sm:$0xff] %vm1213, %v1178
      %1221 = vst.msk [vmem:[#allocation3 + $0x38] sm:$0xff] %vm1213, %v1180
      %1222 = vst.msk [vmem:[#allocation3 + $0x40] sm:$0xff] %vm1213, %v1182
      %1223 = vst.msk [vmem:[#allocation3 + $0x48] sm:$0xff] %vm1213, %v1184
      %1224 = vst.msk [vmem:[#allocation3 + $0x50] sm:$0xff] %vm1213, %v1186
      %1225 = vst.msk [vmem:[#allocation3 + $0x58] sm:$0xff] %vm1213, %v1188
      %1226 = vst.msk [vmem:[#allocation3 + $0x60] sm:$0xff] %vm1213, %v1190
      %1227 = vst.msk [vmem:[#allocation3 + $0x68] sm:$0xff] %vm1213, %v1192
      %1228 = vst.msk [vmem:[#allocation3 + $0x70] sm:$0xff] %vm1213, %v1194
      %1229 = vst.msk [vmem:[#allocation3 + $0x78] sm:$0xff] %vm1213, %v1196
      %v1230 = vld [vmem:[%s1035 + $0x2] sm:$0xff]
      %v1231 = vld [vmem:[%s1035 + $0xa] sm:$0xff]
      %v1232 = vld [vmem:[%s1035 + $0x1a] sm:$0xff]
      %v1233 = vld [vmem:[%s1035 + $0x22] sm:$0xff]
      %v1234 = vld [vmem:[%s1035 + $0x32] sm:$0xff]
      %v1235 = vld [vmem:[%s1035 + $0x3a] sm:$0xff]
      %v1236 = vld [vmem:[%s1035 + $0x4a] sm:$0xff]
      %v1237 = vld [vmem:[%s1035 + $0x52] sm:$0xff]
      %v1238 = vld [vmem:[%s1035 + $0x62] sm:$0xff]
      %v1239 = vld [vmem:[%s1035 + $0x6a] sm:$0xff]
      %v1240 = vld [vmem:[%s1035 + $0x7a] sm:$0xff]
      %v1241 = vld [vmem:[%s1035 + $0x82] sm:$0xff]
      %v1242 = vld [vmem:[%s1035 + $0x92] sm:$0xff]
      %v1243 = vld [vmem:[%s1035 + $0x9a] sm:$0xff]
      %v1244 = vld [vmem:[%s1035 + $0xaa] sm:$0xff]
      %v1245 = vld [vmem:[%s1035 + $0xb2] sm:$0xff]
      %1262 = vrot.lane.b32.xlu0 %v1230, 32
      %v1263 = vpop.permute.xlu0 %1262
      %1264 = vrot.lane.b32.xlu0 %v1231, 32
      %v1265 = vpop.permute.xlu0 %1264
      %1266 = vrot.lane.b32.xlu0 %v1232, 32
      %v1267 = vpop.permute.xlu0 %1266
      %1268 = vrot.lane.b32.xlu0 %v1233, 32
      %v1269 = vpop.permute.xlu0 %1268
      %1270 = vrot.lane.b32.xlu0 %v1234, 32
      %v1271 = vpop.permute.xlu0 %1270
      %1272 = vrot.lane.b32.xlu0 %v1235, 32
      %v1273 = vpop.permute.xlu0 %1272
      %1274 = vrot.lane.b32.xlu0 %v1236, 32
      %v1275 = vpop.permute.xlu0 %1274
      %1276 = vrot.lane.b32.xlu0 %v1237, 32
      %v1277 = vpop.permute.xlu0 %1276
      %1278 = vrot.lane.b32.xlu0 %v1238, 32
      %v1279 = vpop.permute.xlu0 %1278
      %1280 = vrot.lane.b32.xlu0 %v1239, 32
      %v1281 = vpop.permute.xlu0 %1280
      %1282 = vrot.lane.b32.xlu0 %v1240, 32
      %v1283 = vpop.permute.xlu0 %1282
      %1284 = vrot.lane.b32.xlu0 %v1241, 32
      %v1285 = vpop.permute.xlu0 %1284
      %1286 = vrot.lane.b32.xlu0 %v1242, 32
      %v1287 = vpop.permute.xlu0 %1286
      %1288 = vrot.lane.b32.xlu0 %v1243, 32
      %v1289 = vpop.permute.xlu0 %1288
      %1290 = vrot.lane.b32.xlu0 %v1244, 32
      %v1291 = vpop.permute.xlu0 %1290
      %1292 = vrot.lane.b32.xlu0 %v1245, 32
      %v1293 = vpop.permute.xlu0 %1292
      %vm1310 = vcmask 294144
      %1311 = vst.msk [vmem:[#allocation3] sm:$0xff] %vm1310, %v1263
      %1312 = vst.msk [vmem:[#allocation3 + $0x8] sm:$0xff] %vm1310, %v1265
      %1313 = vst.msk [vmem:[#allocation3 + $0x10] sm:$0xff] %vm1310, %v1267
      %1314 = vst.msk [vmem:[#allocation3 + $0x18] sm:$0xff] %vm1310, %v1269
      %1315 = vst.msk [vmem:[#allocation3 + $0x20] sm:$0xff] %vm1310, %v1271
      %1316 = vst.msk [vmem:[#allocation3 + $0x28] sm:$0xff] %vm1310, %v1273
      %1317 = vst.msk [vmem:[#allocation3 + $0x30] sm:$0xff] %vm1310, %v1275
      %1318 = vst.msk [vmem:[#allocation3 + $0x38] sm:$0xff] %vm1310, %v1277
      %1319 = vst.msk [vmem:[#allocation3 + $0x40] sm:$0xff] %vm1310, %v1279
      %1320 = vst.msk [vmem:[#allocation3 + $0x48] sm:$0xff] %vm1310, %v1281
      %1321 = vst.msk [vmem:[#allocation3 + $0x50] sm:$0xff] %vm1310, %v1283
      %1322 = vst.msk [vmem:[#allocation3 + $0x58] sm:$0xff] %vm1310, %v1285
      %1323 = vst.msk [vmem:[#allocation3 + $0x60] sm:$0xff] %vm1310, %v1287
      %1324 = vst.msk [vmem:[#allocation3 + $0x68] sm:$0xff] %vm1310, %v1289
      %1325 = vst.msk [vmem:[#allocation3 + $0x70] sm:$0xff] %vm1310, %v1291
      %1326 = vst.msk [vmem:[#allocation3 + $0x78] sm:$0xff] %vm1310, %v1293
      %v1327 = vld [vmem:[#allocation3] sm:$0xff]
      %v1328 = vld [vmem:[#allocation3 + $0x8] sm:$0xff]
      %v1329 = vld [vmem:[#allocation3 + $0x10] sm:$0xff]
      %v1330 = vld [vmem:[#allocation3 + $0x18] sm:$0xff]
      %v1331 = vld [vmem:[#allocation3 + $0x20] sm:$0xff]
      %v1332 = vld [vmem:[#allocation3 + $0x28] sm:$0xff]
      %v1333 = vld [vmem:[#allocation3 + $0x30] sm:$0xff]
      %v1334 = vld [vmem:[#allocation3 + $0x38] sm:$0xff]
      %v1335 = vld [vmem:[#allocation3 + $0x40] sm:$0xff]
      %v1336 = vld [vmem:[#allocation3 + $0x48] sm:$0xff]
      %v1337 = vld [vmem:[#allocation3 + $0x50] sm:$0xff]
      %v1338 = vld [vmem:[#allocation3 + $0x58] sm:$0xff]
      %v1339 = vld [vmem:[#allocation3 + $0x60] sm:$0xff]
      %v1340 = vld [vmem:[#allocation3 + $0x68] sm:$0xff]
      %v1341 = vld [vmem:[#allocation3 + $0x70] sm:$0xff]
      %v1342 = vld [vmem:[#allocation3 + $0x78] sm:$0xff]
      %v1343 = vld [vmem:[%s3] sm:$0xff]
      %v1344 = vld [vmem:[%s3 + $0x8] sm:$0xff]
      %v1345 = vld [vmem:[%s3 + $0x10] sm:$0xff]
      %v1346 = vld [vmem:[%s3 + $0x18] sm:$0xff]
      %v1347 = vld [vmem:[%s3 + $0x20] sm:$0xf]
      %v1348 = vld [vmem:[%s4] sm:$0x1]
      %v1350 = vperm.slane %v1348, 0
      %vm1352 = vcmask 293888
      %v1354 = vsel %vm1352, %v1327, 0
      %v1357 = vsel %vm1352, %v1328, 0
      %v1360 = vsel %vm1352, %v1329, 0
      %v1363 = vsel %vm1352, %v1330, 0
      %v1366 = vsel %vm1352, %v1331, 0
      %v1369 = vsel %vm1352, %v1332, 0
      %v1372 = vsel %vm1352, %v1333, 0
      %v1375 = vsel %vm1352, %v1334, 0
      %v1378 = vsel %vm1352, %v1335, 0
      %v1381 = vsel %vm1352, %v1336, 0
      %v1384 = vsel %vm1352, %v1337, 0
      %v1387 = vsel %vm1352, %v1338, 0
      %v1390 = vsel %vm1352, %v1339, 0
      %v1393 = vsel %vm1352, %v1340, 0
      %v1396 = vsel %vm1352, %v1341, 0
      %v1399 = vsel %vm1352, %v1342, 0
      %vm1401 = vcmask 1043456
      %v1403 = vsel %vm1401, %v1347, 0
      %1405 = vmatpush.msra.mxu0 0.0
      %1406 = vmatpush.msra.mxu0 0.0
      %1407 = vmatpush.msra.mxu0 0.0
      %1408 = vmatpush.msra.mxu0 0.0
      %1409 = vmatpush.msra.mxu0 0.0
      %1410 = vmatpush.msra.mxu0 0.0
      %1411 = vmatpush.msra.mxu0 0.0
      %1412 = vmatpush.msra.mxu0 0.0
      %1413 = vmatpush.msra.mxu0 0.0
      %1414 = vmatpush.msra.mxu0 0.0
      %1415 = vmatpush.msra.mxu0 0.0
      %1416 = vmatpush.msra.mxu0 %v1403
      %1417 = vmatpush.msra.mxu0 %v1346
      %1418 = vmatpush.msra.mxu0 %v1345
      %1419 = vmatpush.msra.mxu0 %v1344
      %1420 = vmatpush.msra.mxu0 %v1343
      %1421 = vmatmul.f32.gmra.mxu0 %v1354
      %v1422 = vpop.f32.mrf.mxu0
      %v1423 = vadd.f32 %v1350, %v1422
      %1424 = vmatmul.f32.gmra.mxu0 %v1357
      %v1425 = vpop.f32.mrf.mxu0
      %v1426 = vadd.f32 %v1350, %v1425
      %1427 = vmatmul.f32.gmra.mxu0 %v1360
      %v1428 = vpop.f32.mrf.mxu0
      %v1429 = vadd.f32 %v1350, %v1428
      %1430 = vmatmul.f32.gmra.mxu0 %v1363
      %v1431 = vpop.f32.mrf.mxu0
      %v1432 = vadd.f32 %v1350, %v1431
      %1433 = vmatmul.f32.gmra.mxu0 %v1366
      %v1434 = vpop.f32.mrf.mxu0
      %v1435 = vadd.f32 %v1350, %v1434
      %1436 = vmatmul.f32.gmra.mxu0 %v1369
      %v1437 = vpop.f32.mrf.mxu0
      %v1438 = vadd.f32 %v1350, %v1437
      %1439 = vmatmul.f32.gmra.mxu0 %v1372
      %v1440 = vpop.f32.mrf.mxu0
      %v1441 = vadd.f32 %v1350, %v1440
      %1442 = vmatmul.f32.gmra.mxu0 %v1375
      %v1443 = vpop.f32.mrf.mxu0
      %v1444 = vadd.f32 %v1350, %v1443
      %1445 = vmatmul.f32.gmra.mxu0 %v1378
      %v1446 = vpop.f32.mrf.mxu0
      %v1447 = vadd.f32 %v1350, %v1446
      %1448 = vmatmul.f32.gmra.mxu0 %v1381
      %v1449 = vpop.f32.mrf.mxu0
      %v1450 = vadd.f32 %v1350, %v1449
      %1451 = vmatmul.f32.gmra.mxu0 %v1384
      %v1452 = vpop.f32.mrf.mxu0
      %v1453 = vadd.f32 %v1350, %v1452
      %1454 = vmatmul.f32.gmra.mxu0 %v1387
      %v1455 = vpop.f32.mrf.mxu0
      %v1456 = vadd.f32 %v1350, %v1455
      %1457 = vmatmul.f32.gmra.mxu0 %v1390
      %v1458 = vpop.f32.mrf.mxu0
      %v1459 = vadd.f32 %v1350, %v1458
      %1460 = vmatmul.f32.gmra.mxu0 %v1393
      %v1461 = vpop.f32.mrf.mxu0
      %v1462 = vadd.f32 %v1350, %v1461
      %1463 = vmatmul.f32.gmra.mxu0 %v1396
      %v1464 = vpop.f32.mrf.mxu0
      %v1465 = vadd.f32 %v1350, %v1464
      %1466 = vmatmul.f32.gmra.mxu0 %v1399
      %v1467 = vpop.f32.mrf.mxu0
      %v1468 = vadd.f32 %v1350, %v1467
      %1469 = vdwg.mxu0
      %v1470 = vsel %vm451, %v1423, 0.0
      %v1471 = vsel %vm451, %v1426, 0.0
      %v1472 = vadd.f32 %v1470, %v1471
      %v1473 = vsel %vm451, %v1429, 0.0
      %v1474 = vadd.f32 %v1472, %v1473
      %v1475 = vsel %vm451, %v1432, 0.0
      %v1476 = vadd.f32 %v1474, %v1475
      %v1477 = vsel %vm451, %v1435, 0.0
      %v1478 = vadd.f32 %v1476, %v1477
      %v1479 = vsel %vm451, %v1438, 0.0
      %v1480 = vadd.f32 %v1478, %v1479
      %v1481 = vsel %vm451, %v1441, 0.0
      %v1482 = vadd.f32 %v1480, %v1481
      %v1483 = vsel %vm451, %v1444, 0.0
      %v1484 = vadd.f32 %v1482, %v1483
      %v1485 = vsel %vm451, %v1447, 0.0
      %v1486 = vadd.f32 %v1484, %v1485
      %v1487 = vsel %vm451, %v1450, 0.0
      %v1488 = vadd.f32 %v1486, %v1487
      %v1489 = vsel %vm451, %v1453, 0.0
      %v1490 = vadd.f32 %v1488, %v1489
      %v1491 = vsel %vm451, %v1456, 0.0
      %v1492 = vadd.f32 %v1490, %v1491
      %v1493 = vsel %vm451, %v1459, 0.0
      %v1494 = vadd.f32 %v1492, %v1493
      %v1495 = vsel %vm451, %v1462, 0.0
      %v1496 = vadd.f32 %v1494, %v1495
      %v1497 = vsel %vm451, %v1465, 0.0
      %v1498 = vadd.f32 %v1496, %v1497
      %v1499 = vsel %vm451, %v1468, 0.0
      %v1500 = vadd.f32 %v1498, %v1499
      %v1501 = vrot.slane %v1500, 4
      %v1502 = vadd.f32 %v1500, %v1501
      %v1503 = vrot.slane %v1502, 2
      %v1504 = vadd.f32 %v1502, %v1503
      %v1505 = vrot.slane %v1504, 1
      %v1506 = vadd.f32 %v1504, %v1505
      %vm1507 = vcmask 24576
      %1508 = vst.msk [vmem:[%s440] sm:$0x1] %vm1507, %v1506
      %v1509 = vmul.f32 %v1423, %v1423
      %v1510 = vmul.f32 %v1426, %v1426
      %v1511 = vmul.f32 %v1429, %v1429
      %v1512 = vmul.f32 %v1432, %v1432
      %v1513 = vmul.f32 %v1435, %v1435
      %v1514 = vmul.f32 %v1438, %v1438
      %v1515 = vmul.f32 %v1441, %v1441
      %v1516 = vmul.f32 %v1444, %v1444
      %v1517 = vmul.f32 %v1447, %v1447
      %v1518 = vmul.f32 %v1450, %v1450
      %v1519 = vmul.f32 %v1453, %v1453
      %v1520 = vmul.f32 %v1456, %v1456
      %v1521 = vmul.f32 %v1459, %v1459
      %v1522 = vmul.f32 %v1462, %v1462
      %v1523 = vmul.f32 %v1465, %v1465
      %v1524 = vmul.f32 %v1468, %v1468
      %v1525 = vsel %vm451, %v1509, 0.0
      %v1526 = vsel %vm451, %v1510, 0.0
      %v1527 = vadd.f32 %v1525, %v1526
      %v1528 = vsel %vm451, %v1511, 0.0
      %v1529 = vadd.f32 %v1527, %v1528
      %v1530 = vsel %vm451, %v1512, 0.0
      %v1531 = vadd.f32 %v1529, %v1530
      %v1532 = vsel %vm451, %v1513, 0.0
      %v1533 = vadd.f32 %v1531, %v1532
      %v1534 = vsel %vm451, %v1514, 0.0
      %v1535 = vadd.f32 %v1533, %v1534
      %v1536 = vsel %vm451, %v1515, 0.0
      %v1537 = vadd.f32 %v1535, %v1536
      %v1538 = vsel %vm451, %v1516, 0.0
      %v1539 = vadd.f32 %v1537, %v1538
      %v1540 = vsel %vm451, %v1517, 0.0
      %v1541 = vadd.f32 %v1539, %v1540
      %v1542 = vsel %vm451, %v1518, 0.0
      %v1543 = vadd.f32 %v1541, %v1542
      %v1544 = vsel %vm451, %v1519, 0.0
      %v1545 = vadd.f32 %v1543, %v1544
      %v1546 = vsel %vm451, %v1520, 0.0
      %v1547 = vadd.f32 %v1545, %v1546
      %v1548 = vsel %vm451, %v1521, 0.0
      %v1549 = vadd.f32 %v1547, %v1548
      %v1550 = vsel %vm451, %v1522, 0.0
      %v1551 = vadd.f32 %v1549, %v1550
      %v1552 = vsel %vm451, %v1523, 0.0
      %v1553 = vadd.f32 %v1551, %v1552
      %v1554 = vsel %vm451, %v1524, 0.0
      %v1555 = vadd.f32 %v1553, %v1554
      %v1556 = vrot.slane %v1555, 4
      %v1557 = vadd.f32 %v1555, %v1556
      %v1558 = vrot.slane %v1557, 2
      %v1559 = vadd.f32 %v1557, %v1558
      %v1560 = vrot.slane %v1559, 1
      %v1561 = vadd.f32 %v1559, %v1560
      %1562 = vst.msk [vmem:[%s440 + $0x1] sm:$0x1] %vm1507, %v1561
      %1563 = vst.msk [vmem:[%s431 + $0x1] sm:$0xff] %vm451, %v1423
      %1564 = vst.msk [vmem:[%s431 + $0x9] sm:$0xff] %vm451, %v1426
      %1565 = vst.msk [vmem:[%s431 + $0x19] sm:$0xff] %vm451, %v1429
      %1566 = vst.msk [vmem:[%s431 + $0x21] sm:$0xff] %vm451, %v1432
      %1567 = vst.msk [vmem:[%s431 + $0x31] sm:$0xff] %vm451, %v1435
      %1568 = vst.msk [vmem:[%s431 + $0x39] sm:$0xff] %vm451, %v1438
      %1569 = vst.msk [vmem:[%s431 + $0x49] sm:$0xff] %vm451, %v1441
      %1570 = vst.msk [vmem:[%s431 + $0x51] sm:$0xff] %vm451, %v1444
      %1571 = vst.msk [vmem:[%s431 + $0x61] sm:$0xff] %vm451, %v1447
      %1572 = vst.msk [vmem:[%s431 + $0x69] sm:$0xff] %vm451, %v1450
      %1573 = vst.msk [vmem:[%s431 + $0x79] sm:$0xff] %vm451, %v1453
      %1574 = vst.msk [vmem:[%s431 + $0x81] sm:$0xff] %vm451, %v1456
      %1575 = vst.msk [vmem:[%s431 + $0x91] sm:$0xff] %vm451, %v1459
      %1576 = vst.msk [vmem:[%s431 + $0x99] sm:$0xff] %vm451, %v1462
      %1577 = vst.msk [vmem:[%s431 + $0xa9] sm:$0xff] %vm451, %v1465
      %1578 = vst.msk [vmem:[%s431 + $0xb1] sm:$0xff] %vm451, %v1468
      %1579 = vst.msk [vmem:[%s431] sm:$0x1] %vm1507, 0.0
      %1580 = vst.msk [vmem:[%s431 + $0x18] sm:$0x1] %vm1507, 0.0
      %1581 = vst.msk [vmem:[%s431 + $0x30] sm:$0x1] %vm1507, 0.0
      %1582 = vst.msk [vmem:[%s431 + $0x48] sm:$0x1] %vm1507, 0.0
      %1583 = vst.msk [vmem:[%s431 + $0x60] sm:$0x1] %vm1507, 0.0
      %1584 = vst.msk [vmem:[%s431 + $0x78] sm:$0x1] %vm1507, 0.0
      %1585 = vst.msk [vmem:[%s431 + $0x90] sm:$0x1] %vm1507, 0.0
      %1586 = vst.msk [vmem:[%s431 + $0xa8] sm:$0x1] %vm1507, 0.0
      %vm1587 = vcmask 30720
      %1588 = vst.msk [vmem:[%s431 + $0x11] sm:$0x7f] %vm1587, 0.0
      %1589 = vst.msk [vmem:[%s431 + $0x29] sm:$0x7f] %vm1587, 0.0
      %1590 = vst.msk [vmem:[%s431 + $0x41] sm:$0x7f] %vm1587, 0.0
      %1591 = vst.msk [vmem:[%s431 + $0x59] sm:$0x7f] %vm1587, 0.0
      %1592 = vst.msk [vmem:[%s431 + $0x71] sm:$0x7f] %vm1587, 0.0
      %1593 = vst.msk [vmem:[%s431 + $0x89] sm:$0x7f] %vm1587, 0.0
      %1594 = vst.msk [vmem:[%s431 + $0xa1] sm:$0x7f] %vm1587, 0.0
      %1595 = vst.msk [vmem:[%s431 + $0xb9] sm:$0x7f] %vm1587, 0.0
      %s1596 = smul.u32 8, %s23
      %p1597 = scmp.lt.s32.totalorder %s22, 1
      %s1598 = scalar_select %p1597, %s22, 1
      %p1599 = scmp.lt.s32.totalorder %s1596, 15
      %s1600 = scalar_select %p1599, %s1596, 15
      %s1601 = smul.addr %s1600, 3
      %s1602 = smul.addr %s1598, 48
      %s1603 = sadd.s32 %s1601, %s1602
      %s1604 = smul.addr %s1603, 8
      %s1605 = scalar_lea.vmem %s5, %s1604
      %p1606 = scmp.lt.s32.totalorder %s22, 1
      %s1607 = scalar_select %p1606, %s22, 1
      %p1608 = scmp.lt.s32.totalorder %s23, 1
      %s1609 = scalar_select %p1608, %s23, 1
      %s1610 = smul.addr %s1607, 2
      %s1611 = sadd.s32 %s1609, %s1610
      %s1612 = smul.addr %s1611, 2
      %s1613 = scalar_lea.vmem %s6, %s1612
      // Predicated region
      $region41: #{resblock_pallas.3} parent=39 // pred_check
        %p1614 = pneg %p192
      $region42: #{resblock_pallas.3} parent=39 // pred_check_branch
        %1616 = sbr.rel (%p1614) target = $region44
      $region43: #{resblock_pallas.3} parent=39 // pred_region
        %s1617 = smul.u32 8, %s23
      $region44: #{resblock_pallas.3} parent=39 // pred_fallthru
        _
      // Predicated region
      $region45: #{resblock_pallas.3} parent=39 // pred_check
        %p1618 = pneg %p220
      $region46: #{resblock_pallas.3} parent=39 // pred_check_branch
        %1620 = sbr.rel (%p1618) target = $region48
      $region47: #{resblock_pallas.3} parent=39 // pred_region
        _
      $region48: #{resblock_pallas.3} parent=39 // pred_fallthru
        _
    $region40: #{resblock_pallas.3} parent=5 // pred_fallthru
      _
    %p1621 = scmp.le.s32.totalorder 2, %s13
    // Predicated region
    $region49: #{resblock_pallas.3} parent=5 // pred_check
      %p1622 = pneg %p1621
    $region50: #{resblock_pallas.3} parent=5 // pred_check_branch
      %1624 = sbr.rel (%p1622) target = $region52
    $region51: #{resblock_pallas.3} parent=5 // pred_region
      %s1625 = ssub.s32 %s13, 2
      // Predicated region
      $region53: #{resblock_pallas.3} parent=51 // pred_check
        %p1626 = pneg %p198
      $region54: #{resblock_pallas.3} parent=51 // pred_check_branch
        %1628 = sbr.rel (%p1626) target = $region56
      $region55: #{resblock_pallas.3} parent=51 // pred_region
        %s1629 = smul.u32 8, %s25
        %p1630 = scmp.lt.s32.totalorder %s24, 1
        %s1631 = scalar_select %p1630, %s24, 1
        %p1632 = scmp.lt.s32.totalorder %s1629, 15
        %s1633 = scalar_select %p1632, %s1629, 15
        %s1634 = smul.addr %s1633, 3
        %s1635 = smul.addr %s1631, 48
        %s1636 = sadd.s32 %s1634, %s1635
        %s1637 = smul.addr %s1636, 8
        %s1638 = scalar_lea.vmem %s5, %s1637
      $region56: #{resblock_pallas.3} parent=51 // pred_fallthru
        _
      // Predicated region
      $region57: #{resblock_pallas.3} parent=51 // pred_check
        %p1639 = pneg %p226
      $region58: #{resblock_pallas.3} parent=51 // pred_check_branch
        %1641 = sbr.rel (%p1639) target = $region60
      $region59: #{resblock_pallas.3} parent=51 // pred_region
        %p1642 = scmp.lt.s32.totalorder %s24, 1
        %s1643 = scalar_select %p1642, %s24, 1
        %p1644 = scmp.lt.s32.totalorder %s25, 1
        %s1645 = scalar_select %p1644, %s25, 1
        %s1646 = smul.addr %s1643, 2
        %s1647 = sadd.s32 %s1645, %s1646
        %s1648 = smul.addr %s1647, 2
        %s1649 = scalar_lea.vmem %s6, %s1648
      $region60: #{resblock_pallas.3} parent=51 // pred_fallthru
        _
    $region52: #{resblock_pallas.3} parent=5 // pred_fallthru
      _
  $region6: #{resblock_pallas.3} parent=0 // loop_footer
    %s17 = sadd.s32 1, %s13
  $region7: #{resblock_pallas.3} parent=0 // loop_footer_branch
    %12 = sbr.rel target = $region3
  $region8: #{resblock_pallas.3} parent=0 // loop_exit
    _

// kernel: resblock_pallas.4
$region0: #{resblock_pallas.4}
  #allocation0 [shape = 'u32[]', space=smem, size = 0x4, offset = 0x4, fixed_abs, tag = 'smem constant byte address 0x4 - core index']
  #allocation1 [shape = 'u32[72,128]{1,0:T(1,128)}', space=vmem, size = 0x9000, scoped, tag = 'internal scratch']
  #allocation2 [shape = 'f32[10,24,4]{2,1,0:T(8,128)}', space=vmem, size = 0x1e000, scoped, tag = 'scratch operand']
  #allocation3 [shape = 'f32[128,36]{1,0:T(8,128)}', space=vmem, size = 0x10000, scoped, tag = 'scratch operand']
  %s0 = inlined_call_operand.vmem [shape: f32[1,4], index: 0, kind: input, shape index: {}]
  %s1 = inlined_call_operand.vmem [shape: f32[1,4], index: 1, kind: input, shape index: {}]
  %s2 = inlined_call_operand.vmem [shape: f32[2,16,24,4], index: 2, kind: input, shape index: {}, may-alias: {2,3,4}]
  %s3 = inlined_call_operand.vmem [shape: f32[2,16,24,4], index: 3, kind: input, shape index: {}, may-alias: {2,3,4}]
  %s4 = inlined_call_operand.vmem [shape: f32[2,16,24,4], index: 4, kind: input, shape index: {}, may-alias: {2,3,4}]
  %s5 = inlined_call_operand.vmem [shape: f32[36,4], index: 5, kind: input, shape index: {}]
  %s6 = inlined_call_operand.vmem [shape: f32[1,4], index: 6, kind: input, shape index: {}]
  %s7 = inlined_call_operand.vmem [shape: f32[2,16,16,4], index: 7, kind: output, shape index: {0}]
  %s8 = inlined_call_operand.vmem [shape: f32[2,2,2,4], index: 8, kind: output, shape index: {1}]
  %9 = xla_tuple %s7, %s8
  %s10 = sld [smem:[#allocation0]]
  $region69: #{resblock_pallas.4} parent=0
    _
  %s12 = ssub.s32 1, %s10
  %s13 = scalar_select 0, %s12, %s10
  loop: start=0, step=1, limit=6
  $region2: #{resblock_pallas.4} parent=0 // loop_pre_header
    _
  $region3: #{resblock_pallas.4} parent=0 // loop_header
    %s15 = sphi 0, %s19
    %p16 = scmp.ge.s32.totalorder %s15, 6
    %s22 = sphi 0, %s34
    %s23 = sphi 0, %s30
    %s24 = sphi 0, %s22
    %s25 = sphi 0, %s23
    %s26 = sphi 0, %s24
    %s27 = sphi 0, %s25
    %s35 = sphi 0, %s35
    %s37 = sphi 0, %s35
    %s38 = sphi 0, %s37
    %s52 = sphi 0, %s38
    %s56 = sphi 0, %s56
    %s58 = sphi 0, %s56
    %s59 = sphi 0, %s58
    %s73 = sphi 0, %s59
    %s81 = sphi 0, %s83
    %s84 = sphi 0, %s81
    %s85 = sphi 0, %s84
    %s101 = sphi 0, %s85
    %s117 = sphi 0, %s119
    %s120 = sphi 0, %s117
    %s121 = sphi 0, %s120
    %s137 = sphi 0, %s121
    %s153 = sphi 0, %s155
    %s156 = sphi 0, %s153
    %s157 = sphi 0, %s156
    %s173 = sphi 0, %s157
    %s177 = sphi 0, %s177
    %s179 = sphi 0, %s177
    %s180 = sphi 0, %s179
    %s194 = sphi 0, %s180
    %s198 = sphi 0, %s198
    %s200 = sphi 0, %s198
    %s201 = sphi 0, %s200
    %s215 = sphi 0, %s201
    %s223 = sphi 0, %s225
    %s226 = sphi 0, %s223
    %s227 = sphi 0, %s226
    %s243 = sphi 0, %s227
    %s251 = sphi 0, %s253
    %s254 = sphi 0, %s251
    %s255 = sphi 0, %s254
    %s271 = sphi 0, %s255
  $region4: #{resblock_pallas.4} parent=0 // loop_header_branch
    %18 = sbr.rel (%p16) target = $region8
  $region5: #{resblock_pallas.4} parent=0 // loop_body
    %s20 = ssub.s32 %s15, 1
    %s21 = ssub.s32 %s15, 2
    %s28 = sadd.s32 1, %s23
    %p29 = scmp.ge.s32.totalorder %s28, 2
    %s30 = scalar_select %p29, 0, %s28
    %s31 = sadd.s32 1, %s22
    %s32 = scalar_select %p29, %s31, %s22
    %p33 = scmp.ge.s32.totalorder %s32, 2
    %s34 = scalar_select %p33, 0, %s32
    %s36 = sadd.s32 %s35, 1
    %p39 = scmp.eq.s32.totalorder %s15, 3
    %p40 = scmp.ne.s32.totalorder %s35, %s37
    %p41 = scmp.eq.s32.totalorder %s15, 0
    %p42 = por %p40, %p41
    %p43 = scmp.ne.s32.totalorder %s35, %s37
    %p44 = scmp.eq.s32.totalorder %s20, 3
    %p45 = por %p43, %p44
    %p46 = scmp.ne.s32.totalorder %s37, %s38
    %p47 = scmp.eq.s32.totalorder %s20, 0
    %p48 = por %p46, %p47
    %p49 = scmp.ne.s32.totalorder %s37, %s38
    %p50 = scmp.eq.s32.totalorder %s21, 3
    %p51 = por %p49, %p50
    %p53 = scmp.ne.s32.totalorder %s38, %s52
    %p54 = scmp.eq.s32.totalorder %s21, 0
    %p55 = por %p53, %p54
    %s57 = sadd.s32 %s56, 1
    %p60 = scmp.eq.s32.totalorder %s15, 3
    %p61 = scmp.ne.s32.totalorder %s56, %s58
    %p62 = scmp.eq.s32.totalorder %s15, 0
    %p63 = por %p61, %p62
    %p64 = scmp.ne.s32.totalorder %s56, %s58
    %p65 = scmp.eq.s32.totalorder %s20, 3
    %p66 = por %p64, %p65
    %p67 = scmp.ne.s32.totalorder %s58, %s59
    %p68 = scmp.eq.s32.totalorder %s20, 0
    %p69 = por %p67, %p68
    %p70 = scmp.ne.s32.totalorder %s58, %s59
    %p71 = scmp.eq.s32.totalorder %s21, 3
    %p72 = por %p70, %p71
    %p74 = scmp.ne.s32.totalorder %s59, %s73
    %p75 = scmp.eq.s32.totalorder %s21, 0
    %p76 = por %p74, %p75
    %s77 = ssub.s32 %s22, %s34
    %s78 = ssub.s32 %s23, %s30
    %s79 = sor.u32 %s77, %s78
    %p80 = scmp.eq.s32.totalorder %s79, 0
    %s82 = sadd.s32 %s81, 1
    %s83 = scalar_select %p80, %s81, %s82
    %p86 = pneg %p80
    %p87 = scmp.eq.s32.totalorder %s15, 3
    %p88 = por %p86, %p87
    %p89 = scmp.ne.s32.totalorder %s81, %s84
    %p90 = scmp.eq.s32.totalorder %s15, 0
    %p91 = por %p89, %p90
    %p92 = scmp.ne.s32.totalorder %s81, %s84
    %p93 = scmp.eq.s32.totalorder %s20, 3
    %p94 = por %p92, %p93
    %p95 = scmp.ne.s32.totalorder %s84, %s85
    %p96 = scmp.eq.s32.totalorder %s20, 0
    %p97 = por %p95, %p96
    %p98 = scmp.ne.s32.totalorder %s84, %s85
    %p99 = scmp.eq.s32.totalorder %s21, 3
    %p100 = por %p98, %p99
    %p102 = scmp.ne.s32.totalorder %s85, %s101
    %p103 = scmp.eq.s32.totalorder %s21, 0
    %p104 = por %p102, %p103
    %s105 = smul.u32 %s23, 8
    %s106 = ssub.s32 %s105, 1
    %p107 = scmp.gt.s32.totalorder %s106, 0
    %s108 = scalar_select %p107, %s106, 0
    %s109 = smul.u32 %s30, 8
    %s110 = ssub.s32 %s109, 1
    %p111 = scmp.gt.s32.totalorder %s110, 0
    %s112 = scalar_select %p111, %s110, 0
    %s113 = ssub.s32 %s22, %s34
    %s114 = ssub.s32 %s108, %s112
    %s115 = sor.u32 %s113, %s114
    %p116 = scmp.eq.s32.totalorder %s115, 0
    %s118 = sadd.s32 %s117, 1
    %s119 = scalar_select %p116, %s117, %s118
    %p122 = pneg %p116
    %p123 = scmp.eq.s32.totalorder %s15, 3
    %p124 = por %p122, %p123
    %p125 = scmp.ne.s32.totalorder %s117, %s120
    %p126 = scmp.eq.s32.totalorder %s15, 0
    %p127 = por %p125, %p126
    %p128 = scmp.ne.s32.totalorder %s117, %s120
    %p129 = scmp.eq.s32.totalorder %s20, 3
    %p130 = por %p128, %p129
    %p131 = scmp.ne.s32.totalorder %s120, %s121
    %p132 = scmp.eq.s32.totalorder %s20, 0
    %p133 = por %p131, %p132
    %p134 = scmp.ne.s32.totalorder %s120, %s121
    %p135 = scmp.eq.s32.totalorder %s21, 3
    %p136 = por %p134, %p135
    %p138 = scmp.ne.s32.totalorder %s121, %s137
    %p139 = scmp.eq.s32.totalorder %s21, 0
    %p140 = por %p138, %p139
    %s141 = sadd.s32 %s23, 1
    %s142 = smul.u32 %s141, 8
    %p143 = scmp.lt.s32.totalorder %s142, 15
    %s144 = scalar_select %p143, %s142, 15
    %s145 = sadd.s32 %s30, 1
    %s146 = smul.u32 %s145, 8
    %p147 = scmp.lt.s32.totalorder %s146, 15
    %s148 = scalar_select %p147, %s146, 15
    %s149 = ssub.s32 %s22, %s34
    %s150 = ssub.s32 %s144, %s148
    %s151 = sor.u32 %s149, %s150
    %p152 = scmp.eq.s32.totalorder %s151, 0
    %s154 = sadd.s32 %s153, 1
    %s155 = scalar_select %p152, %s153, %s154
    %p158 = pneg %p152
    %p159 = scmp.eq.s32.totalorder %s15, 3
    %p160 = por %p158, %p159
    %p161 = scmp.ne.s32.totalorder %s153, %s156
    %p162 = scmp.eq.s32.totalorder %s15, 0
    %p163 = por %p161, %p162
    %p164 = scmp.ne.s32.totalorder %s153, %s156
    %p165 = scmp.eq.s32.totalorder %s20, 3
    %p166 = por %p164, %p165
    %p167 = scmp.ne.s32.totalorder %s156, %s157
    %p168 = scmp.eq.s32.totalorder %s20, 0
    %p169 = por %p167, %p168
    %p170 = scmp.ne.s32.totalorder %s156, %s157
    %p171 = scmp.eq.s32.totalorder %s21, 3
    %p172 = por %p170, %p171
    %p174 = scmp.ne.s32.totalorder %s157, %s173
    %p175 = scmp.eq.s32.totalorder %s21, 0
    %p176 = por %p174, %p175
    %s178 = sadd.s32 %s177, 1
    %p181 = scmp.eq.s32.totalorder %s15, 3
    %p182 = scmp.ne.s32.totalorder %s177, %s179
    %p183 = scmp.eq.s32.totalorder %s15, 0
    %p184 = por %p182, %p183
    %p185 = scmp.ne.s32.totalorder %s177, %s179
    %p186 = scmp.eq.s32.totalorder %s20, 3
    %p187 = por %p185, %p186
    %p188 = scmp.ne.s32.totalorder %s179, %s180
    %p189 = scmp.eq.s32.totalorder %s20, 0
    %p190 = por %p188, %p189
    %p191 = scmp.ne.s32.totalorder %s179, %s180
    %p192 = scmp.eq.s32.totalorder %s21, 3
    %p193 = por %p191, %p192
    %p195 = scmp.ne.s32.totalorder %s180, %s194
    %p196 = scmp.eq.s32.totalorder %s21, 0
    %p197 = por %p195, %p196
    %s199 = sadd.s32 %s198, 1
    %p202 = scmp.eq.s32.totalorder %s15, 3
    %p203 = scmp.ne.s32.totalorder %s198, %s200
    %p204 = scmp.eq.s32.totalorder %s15, 0
    %p205 = por %p203, %p204
    %p206 = scmp.ne.s32.totalorder %s198, %s200
    %p207 = scmp.eq.s32.totalorder %s20, 3
    %p208 = por %p206, %p207
    %p209 = scmp.ne.s32.totalorder %s200, %s201
    %p210 = scmp.eq.s32.totalorder %s20, 0
    %p211 = por %p209, %p210
    %p212 = scmp.ne.s32.totalorder %s200, %s201
    %p213 = scmp.eq.s32.totalorder %s21, 3
    %p214 = por %p212, %p213
    %p216 = scmp.ne.s32.totalorder %s201, %s215
    %p217 = scmp.eq.s32.totalorder %s21, 0
    %p218 = por %p216, %p217
    %s219 = ssub.s32 %s22, %s34
    %s220 = ssub.s32 %s23, %s30
    %s221 = sor.u32 %s219, %s220
    %p222 = scmp.eq.s32.totalorder %s221, 0
    %s224 = sadd.s32 %s223, 1
    %s225 = scalar_select %p222, %s223, %s224
    %p228 = pneg %p222
    %p229 = scmp.eq.s32.totalorder %s15, 3
    %p230 = por %p228, %p229
    %p231 = scmp.ne.s32.totalorder %s223, %s226
    %p232 = scmp.eq.s32.totalorder %s15, 0
    %p233 = por %p231, %p232
    %p234 = scmp.ne.s32.totalorder %s223, %s226
    %p235 = scmp.eq.s32.totalorder %s20, 3
    %p236 = por %p234, %p235
    %p237 = scmp.ne.s32.totalorder %s226, %s227
    %p238 = scmp.eq.s32.totalorder %s20, 0
    %p239 = por %p237, %p238
    %p240 = scmp.ne.s32.totalorder %s226, %s227
    %p241 = scmp.eq.s32.totalorder %s21, 3
    %p242 = por %p240, %p241
    %p244 = scmp.ne.s32.totalorder %s227, %s243
    %p245 = scmp.eq.s32.totalorder %s21, 0
    %p246 = por %p244, %p245
    %s247 = ssub.s32 %s22, %s34
    %s248 = ssub.s32 %s23, %s30
    %s249 = sor.u32 %s247, %s248
    %p250 = scmp.eq.s32.totalorder %s249, 0
    %s252 = sadd.s32 %s251, 1
    %s253 = scalar_select %p250, %s251, %s252
    %p256 = pneg %p250
    %p257 = scmp.eq.s32.totalorder %s15, 3
    %p258 = por %p256, %p257
    %p259 = scmp.ne.s32.totalorder %s251, %s254
    %p260 = scmp.eq.s32.totalorder %s15, 0
    %p261 = por %p259, %p260
    %p262 = scmp.ne.s32.totalorder %s251, %s254
    %p263 = scmp.eq.s32.totalorder %s20, 3
    %p264 = por %p262, %p263
    %p265 = scmp.ne.s32.totalorder %s254, %s255
    %p266 = scmp.eq.s32.totalorder %s20, 0
    %p267 = por %p265, %p266
    %p268 = scmp.ne.s32.totalorder %s254, %s255
    %p269 = scmp.eq.s32.totalorder %s21, 3
    %p270 = por %p268, %p269
    %p272 = scmp.ne.s32.totalorder %s255, %s271
    %p273 = scmp.eq.s32.totalorder %s21, 0
    %p274 = por %p272, %p273
    %p275 = scmp.le.s32.totalorder 1, %s15
    %p276 = scmp.lt.s32.totalorder %s15, 5
    %p277 = pnand %p275, %p276
    %p278 = pneg %p277
    // Predicated region
    $region9: #{resblock_pallas.4} parent=5 // pred_check
      _
    $region10: #{resblock_pallas.4} parent=5 // pred_check_branch
      %280 = sbr.rel (%p277) target = $region12
    $region11: #{resblock_pallas.4} parent=5 // pred_region
      %s281 = ssub.s32 %s15, 1
      // Predicated region
      $region13: #{resblock_pallas.4} parent=11 // pred_check
        %p282 = pneg %p48
      $region14: #{resblock_pallas.4} parent=11 // pred_check_branch
        %284 = sbr.rel (%p282) target = $region16
      $region15: #{resblock_pallas.4} parent=11 // pred_region
        _
      $region16: #{resblock_pallas.4} parent=11 // pred_fallthru
        _
      // Predicated region
      $region17: #{resblock_pallas.4} parent=11 // pred_check
        %p285 = pneg %p69
      $region18: #{resblock_pallas.4} parent=11 // pred_check_branch
        %287 = sbr.rel (%p285) target = $region20
      $region19: #{resblock_pallas.4} parent=11 // pred_region
        _
      $region20: #{resblock_pallas.4} parent=11 // pred_fallthru
        _
      // Predicated region
      $region21: #{resblock_pallas.4} parent=11 // pred_check
        %p288 = pneg %p190
      $region22: #{resblock_pallas.4} parent=11 // pred_check_branch
        %290 = sbr.rel (%p288) target = $region24
      $region23: #{resblock_pallas.4} parent=11 // pred_region
        _
      $region24: #{resblock_pallas.4} parent=11 // pred_fallthru
        _
      // Predicated region
      $region25: #{resblock_pallas.4} parent=11 // pred_check
        %p291 = pneg %p211
      $region26: #{resblock_pallas.4} parent=11 // pred_check_branch
        %293 = sbr.rel (%p291) target = $region28
      $region27: #{resblock_pallas.4} parent=11 // pred_region
        _
      $region28: #{resblock_pallas.4} parent=11 // pred_fallthru
        _
    $region12: #{resblock_pallas.4} parent=5 // pred_fallthru
      _
    %p294 = scmp.lt.s32.totalorder %s15, 4
    // Predicated region
    $region29: #{resblock_pallas.4} parent=5 // pred_check
      %p295 = pneg %p294
    $region30: #{resblock_pallas.4} parent=5 // pred_check_branch
      %297 = sbr.rel (%p295) target = $region32
    $region31: #{resblock_pallas.4} parent=5 // pred_region
      // Predicated region
      $region33: #{resblock_pallas.4} parent=31 // pred_check
        %p298 = pneg %p91
      $region34: #{resblock_pallas.4} parent=31 // pred_check_branch
        %300 = sbr.rel (%p298) target = $region36
      $region35: #{resblock_pallas.4} parent=31 // pred_region
        %s301 = smul.u32 8, %s23
        %p302 = scmp.lt.s32.totalorder %s22, 1
        %s303 = scalar_select %p302, %s22, 1
        %p304 = scmp.lt.s32.totalorder %s301, 15
        %s305 = scalar_select %p304, %s301, 15
        %s306 = smul.addr %s305, 3
        %s307 = smul.addr %s303, 48
        %s308 = sadd.s32 %s306, %s307
        %s309 = smul.addr %s308, 8
        %s310 = scalar_lea.vmem %s2, %s309
        %s311 = smul.u32 8, %s23
      $region36: #{resblock_pallas.4} parent=31 // pred_fallthru
        _
      // Predicated region
      $region37: #{resblock_pallas.4} parent=31 // pred_check
        %p312 = pneg %p127
      $region38: #{resblock_pallas.4} parent=31 // pred_check_branch
        %314 = sbr.rel (%p312) target = $region40
      $region39: #{resblock_pallas.4} parent=31 // pred_region
        %s315 = smul.u32 %s23, 8
        %s316 = ssub.s32 %s315, 1
        %p317 = scmp.gt.s32.totalorder %s316, 0
        %s318 = scalar_select %p317, %s316, 0
        %p319 = scmp.lt.s32.totalorder %s22, 1
        %s320 = scalar_select %p319, %s22, 1
        %p321 = scmp.lt.s32.totalorder %s318, 15
        %s322 = scalar_select %p321, %s318, 15
        %s323 = smul.addr %s322, 3
        %s324 = smul.addr %s320, 48
        %s325 = sadd.s32 %s323, %s324
        %s326 = smul.addr %s325, 8
        %s327 = scalar_lea.vmem %s3, %s326
        %s328 = smul.u32 %s23, 8
        %s329 = ssub.s32 %s328, 1
        %p330 = scmp.gt.s32.totalorder %s329, 0
        %s331 = scalar_select %p330, %s329, 0
      $region40: #{resblock_pallas.4} parent=31 // pred_fallthru
        _
      // Predicated region
      $region41: #{resblock_pallas.4} parent=31 // pred_check
        %p332 = pneg %p163
      $region42: #{resblock_pallas.4} parent=31 // pred_check_branch
        %334 = sbr.rel (%p332) target = $region44
      $region43: #{resblock_pallas.4} parent=31 // pred_region
        %s335 = sadd.s32 %s23, 1
        %s336 = smul.u32 %s335, 8
        %p337 = scmp.lt.s32.totalorder %s336, 15
        %s338 = scalar_select %p337, %s336, 15
        %p339 = scmp.lt.s32.totalorder %s22, 1
        %s340 = scalar_select %p339, %s22, 1
        %p341 = scmp.lt.s32.totalorder %s338, 15
        %s342 = scalar_select %p341, %s338, 15
        %s343 = smul.addr %s342, 3
        %s344 = smul.addr %s340, 48
        %s345 = sadd.s32 %s343, %s344
        %s346 = smul.addr %s345, 8
        %s347 = scalar_lea.vmem %s4, %s346
        %s348 = sadd.s32 %s23, 1
        %s349 = smul.u32 %s348, 8
        %p350 = scmp.lt.s32.totalorder %s349, 15
        %s351 = scalar_select %p350, %s349, 15
      $region44: #{resblock_pallas.4} parent=31 // pred_fallthru
        _
    $region32: #{resblock_pallas.4} parent=5 // pred_fallthru
      _
    %p352 = scmp.le.s32.totalorder 1, %s15
    %p353 = scmp.lt.s32.totalorder %s15, 5
    %p354 = pnand %p352, %p353
    %p355 = pneg %p354
    // Predicated region
    $region45: #{resblock_pallas.4} parent=5 // pred_check
      _
    $region46: #{resblock_pallas.4} parent=5 // pred_check_branch
      %357 = sbr.rel (%p354) target = $region48
    $region47: #{resblock_pallas.4} parent=5 // pred_region
      %s358 = ssub.s32 %s15, 1
      %p359 = pneg %p48
      %p360 = pneg %p45
      %p361 = pneg %p69
      %p362 = pneg %p66
      %s363 = smul.u32 8, %s25
      %p364 = scmp.lt.s32.totalorder %s24, 1
      %s365 = scalar_select %p364, %s24, 1
      %p366 = scmp.lt.s32.totalorder %s363, 15
      %s367 = scalar_select %p366, %s363, 15
      %s368 = smul.addr %s367, 3
      %s369 = smul.addr %s365, 48
      %s370 = sadd.s32 %s368, %s369
      %s371 = smul.addr %s370, 8
      %s372 = scalar_lea.vmem %s2, %s371
      %p373 = pneg %p97
      %p374 = pneg %p94
      %s375 = smul.u32 %s25, 8
      %s376 = ssub.s32 %s375, 1
      %p377 = scmp.gt.s32.totalorder %s376, 0
      %s378 = scalar_select %p377, %s376, 0
      %p379 = scmp.lt.s32.totalorder %s24, 1
      %s380 = scalar_select %p379, %s24, 1
      %p381 = scmp.lt.s32.totalorder %s378, 15
      %s382 = scalar_select %p381, %s378, 15
      %s383 = smul.addr %s382, 3
      %s384 = smul.addr %s380, 48
      %s385 = sadd.s32 %s383, %s384
      %s386 = smul.addr %s385, 8
      %s387 = scalar_lea.vmem %s3, %s386
      %p388 = pneg %p133
      %p389 = pneg %p130
      %s390 = sadd.s32 %s25, 1
      %s391 = smul.u32 %s390, 8
      %p392 = scmp.lt.s32.totalorder %s391, 15
      %s393 = scalar_select %p392, %s391, 15
      %p394 = scmp.lt.s32.totalorder %s24, 1
      %s395 = scalar_select %p394, %s24, 1
      %p396 = scmp.lt.s32.totalorder %s393, 15
      %s397 = scalar_select %p396, %s393, 15
      %s398 = smul.addr %s397, 3
      %s399 = smul.addr %s395, 48
      %s400 = sadd.s32 %s398, %s399
      %s401 = smul.addr %s400, 8
      %s402 = scalar_lea.vmem %s4, %s401
      %p403 = pneg %p169
      %p404 = pneg %p166
      %p405 = pneg %p190
      %p406 = pneg %p187
      %p407 = pneg %p211
      %p408 = pneg %p208
      %p409 = pneg %p239
      %p410 = pneg %p236
      %s411 = smul.u32 8, %s25
      %p412 = scmp.lt.s32.totalorder %s24, 1
      %s413 = scalar_select %p412, %s24, 1
      %p414 = scmp.lt.s32.totalorder %s411, 15
      %s415 = scalar_select %p414, %s411, 15
      %s416 = smul.addr %s415, 2
      %s417 = smul.addr %s413, 32
      %s418 = sadd.s32 %s416, %s417
      %s419 = smul.addr %s418, 8
      %s420 = scalar_lea.vmem %s7, %s419
      %p421 = pneg %p267
      %p422 = pneg %p264
      %p423 = scmp.lt.s32.totalorder %s24, 1
      %s424 = scalar_select %p423, %s24, 1
      %p425 = scmp.lt.s32.totalorder %s25, 1
      %s426 = scalar_select %p425, %s25, 1
      %s427 = smul.addr %s424, 2
      %s428 = sadd.s32 %s426, %s427
      %s429 = smul.addr %s428, 2
      %s430 = scalar_lea.vmem %s8, %s429
      %s431 = smul.u32 8, %s25
      %p432 = scmp.lt.s32.totalorder %s24, 1
      %s433 = scalar_select %p432, %s24, 1
      %p434 = scmp.lt.s32.totalorder %s431, 15
      %s435 = scalar_select %p434, %s431, 15
      %s436 = smul.addr %s435, 3
      %s437 = smul.addr %s433, 48
      %s438 = sadd.s32 %s436, %s437
      %s439 = smul.addr %s438, 8
      %s440 = scalar_lea.vmem %s2, %s439
      %s441 = smul.u32 8, %s25
      %s442 = smul.u32 %s25, 8
      %s443 = ssub.s32 %s442, 1
      %p444 = scmp.gt.s32.totalorder %s443, 0
      %s445 = scalar_select %p444, %s443, 0
      %p446 = scmp.lt.s32.totalorder %s24, 1
      %s447 = scalar_select %p446, %s24, 1
      %p448 = scmp.lt.s32.totalorder %s445, 15
      %s449 = scalar_select %p448, %s445, 15
      %s450 = smul.addr %s449, 3
      %s451 = smul.addr %s447, 48
      %s452 = sadd.s32 %s450, %s451
      %s453 = smul.addr %s452, 8
      %s454 = scalar_lea.vmem %s3, %s453
      %s455 = smul.u32 %s25, 8
      %s456 = ssub.s32 %s455, 1
      %p457 = scmp.gt.s32.totalorder %s456, 0
      %s458 = scalar_select %p457, %s456, 0
      %s459 = sadd.s32 %s25, 1
      %s460 = smul.u32 %s459, 8
      %p461 = scmp.lt.s32.totalorder %s460, 15
      %s462 = scalar_select %p461, %s460, 15
      %p463 = scmp.lt.s32.totalorder %s24, 1
      %s464 = scalar_select %p463, %s24, 1
      %p465 = scmp.lt.s32.totalorder %s462, 15
      %s466 = scalar_select %p465, %s462, 15
      %s467 = smul.addr %s466, 3
      %s468 = smul.addr %s464, 48
      %s469 = sadd.s32 %s467, %s468
      %s470 = smul.addr %s469, 8
      %s471 = scalar_lea.vmem %s4, %s470
      %s472 = sadd.s32 %s25, 1
      %s473 = smul.u32 %s472, 8
      %p474 = scmp.lt.s32.totalorder %s473, 15
      %s475 = scalar_select %p474, %s473, 15
      %s476 = smul.u32 8, %s25
      %p477 = scmp.lt.s32.totalorder %s24, 1
      %s478 = scalar_select %p477, %s24, 1
      %p479 = scmp.lt.s32.totalorder %s476, 15
      %s480 = scalar_select %p479, %s476, 15
      %s481 = smul.addr %s480, 2
      %s482 = smul.addr %s478, 32
      %s483 = sadd.s32 %s481, %s482
      %s484 = smul.addr %s483, 8
      %s485 = scalar_lea.vmem %s7, %s484
      %s486 = smul.u32 8, %s25
      %p487 = scmp.lt.s32.totalorder %s24, 1
      %s488 = scalar_select %p487, %s24, 1
      %p489 = scmp.lt.s32.totalorder %s25, 1
      %s490 = scalar_select %p489, %s25, 1
      %s491 = smul.addr %s488, 2
      %s492 = sadd.s32 %s490, %s491
      %s493 = smul.addr %s492, 2
      %s494 = scalar_lea.vmem %s8, %s493
      %v495 = vld [vmem:[%s0] sm:$0x1]
      %v496 = vld [vmem:[%s1] sm:$0x1]
      %v497 = vlaneseq
      %v498 = vshrl.u32 %v497, 7
      %v499 = vadd.s32 %v498, 8
      %v500 = vadd.s32 %v498, 16
      %vm501 = vcmp.ge.s32.totalorder %v498, 1
      %vm502 = vcmp.ge.s32.totalorder %v499, 1
      %vm503 = vcmp.ge.s32.totalorder %v500, 1
      %vm504 = vcmp.le.s32.totalorder %v498, 16
      %vm505 = vcmp.le.s32.totalorder %v499, 16
      %vm506 = vcmp.le.s32.totalorder %v500, 16
      %vm507 = vmand %vm501, %vm504
      %vm508 = vmand %vm502, %vm505
      %vm509 = vmand %vm503, %vm506
      %v510 = vsel %vm507, 1, 0
      %v511 = vsel %vm508, 1, 0
      %v512 = vsel %vm509, 1, 0
      %v513 = vcvt.s32.f32 %v510
      %v514 = vcvt.s32.f32 %v511
      %v515 = vcvt.s32.f32 %v512
      %p516 = scmp.eq.s32.totalorder %s25, 0
      %v517 = vld [vmem:[%s454] sm:$0xff]
      %v518 = vld [vmem:[%s454 + $0x8] sm:$0xff]
      %v519 = vld [vmem:[%s454 + $0x10] sm:$0xff]
      %v521 = vperm.slane %v495, 0
      %v523 = vsub.f32 %v517, %v521
      %v524 = vsub.f32 %v518, %v521
      %v525 = vsub.f32 %v519, %v521
      %v527 = vperm.slane %v496, 0
      %v529 = vmul.f32 %v523, %v527
      %v530 = vmul.f32 %v524, %v527
      %v531 = vmul.f32 %v525, %v527
      %v532 = vmax.f32 %v529, 0.0
      %v533 = vmax.f32 %v530, 0.0
      %v534 = vmax.f32 %v531, 0.0
      %v535 = vmul.f32 %v532, %v513
      %v536 = vmul.f32 %v533, %v514
      %v537 = vmul.f32 %v534, %v515
      %s538 = scalar_select %p516, 1, 0
      %v539 = vstv %s538
      %vm540 = vcmp.eq.s32.totalorder %v539, 1
      %v541 = vsel %vm540, 0.0, %v535
      %v542 = vsel %vm540, 0.0, %v536
      %v543 = vsel %vm540, 0.0, %v537
      %vm544 = vcmask 31744
      %545 = vst.msk [vmem:[#allocation2] sm:$0xff] %vm544, %v541
      %546 = vst.msk [vmem:[#allocation2 + $0x8] sm:$0xff] %vm544, %v542
      %547 = vst.msk [vmem:[#allocation2 + $0x10] sm:$0xff] %vm544, %v543
      %v548 = vld [vmem:[%s440] sm:$0xff]
      %v549 = vld [vmem:[%s440 + $0x8] sm:$0xff]
      %v550 = vld [vmem:[%s440 + $0x10] sm:$0xff]
      %v551 = vld [vmem:[%s440 + $0x18] sm:$0xff]
      %v552 = vld [vmem:[%s440 + $0x20] sm:$0xff]
      %v553 = vld [vmem:[%s440 + $0x28] sm:$0xff]
      %v554 = vld [vmem:[%s440 + $0x30] sm:$0xff]
      %v555 = vld [vmem:[%s440 + $0x38] sm:$0xff]
      %v556 = vld [vmem:[%s440 + $0x40] sm:$0xff]
      %v557 = vld [vmem:[%s440 + $0x48] sm:$0xff]
      %v558 = vld [vmem:[%s440 + $0x50] sm:$0xff]
      %v559 = vld [vmem:[%s440 + $0x58] sm:$0xff]
      %v560 = vld [vmem:[%s440 + $0x60] sm:$0xff]
      %v561 = vld [vmem:[%s440 + $0x68] sm:$0xff]
      %v562 = vld [vmem:[%s440 + $0x70] sm:$0xff]
      %v563 = vld [vmem:[%s440 + $0x78] sm:$0xff]
      %v564 = vld [vmem:[%s440 + $0x80] sm:$0xff]
      %v565 = vld [vmem:[%s440 + $0x88] sm:$0xff]
      %v566 = vld [vmem:[%s440 + $0x90] sm:$0xff]
      %v567 = vld [vmem:[%s440 + $0x98] sm:$0xff]
      %v568 = vld [vmem:[%s440 + $0xa0] sm:$0xff]
      %v569 = vld [vmem:[%s440 + $0xa8] sm:$0xff]
      %v570 = vld [vmem:[%s440 + $0xb0] sm:$0xff]
      %v571 = vld [vmem:[%s440 + $0xb8] sm:$0xff]
      %v572 = vsub.f32 %v548, %v521
      %v573 = vsub.f32 %v549, %v521
      %v574 = vsub.f32 %v550, %v521
      %v575 = vsub.f32 %v551, %v521
      %v576 = vsub.f32 %v552, %v521
      %v577 = vsub.f32 %v553, %v521
      %v578 = vsub.f32 %v554, %v521
      %v579 = vsub.f32 %v555, %v521
      %v580 = vsub.f32 %v556, %v521
      %v581 = vsub.f32 %v557, %v521
      %v582 = vsub.f32 %v558, %v521
      %v583 = vsub.f32 %v559, %v521
      %v584 = vsub.f32 %v560, %v521
      %v585 = vsub.f32 %v561, %v521
      %v586 = vsub.f32 %v562, %v521
      %v587 = vsub.f32 %v563, %v521
      %v588 = vsub.f32 %v564, %v521
      %v589 = vsub.f32 %v565, %v521
      %v590 = vsub.f32 %v566, %v521
      %v591 = vsub.f32 %v567, %v521
      %v592 = vsub.f32 %v568, %v521
      %v593 = vsub.f32 %v569, %v521
      %v594 = vsub.f32 %v570, %v521
      %v595 = vsub.f32 %v571, %v521
      %v596 = vmul.f32 %v572, %v527
      %v597 = vmul.f32 %v573, %v527
      %v598 = vmul.f32 %v574, %v527
      %v599 = vmul.f32 %v575, %v527
      %v600 = vmul.f32 %v576, %v527
      %v601 = vmul.f32 %v577, %v527
      %v602 = vmul.f32 %v578, %v527
      %v603 = vmul.f32 %v579, %v527
      %v604 = vmul.f32 %v580, %v527
      %v605 = vmul.f32 %v581, %v527
      %v606 = vmul.f32 %v582, %v527
      %v607 = vmul.f32 %v583, %v527
      %v608 = vmul.f32 %v584, %v527
      %v609 = vmul.f32 %v585, %v527
      %v610 = vmul.f32 %v586, %v527
      %v611 = vmul.f32 %v587, %v527
      %v612 = vmul.f32 %v588, %v527
      %v613 = vmul.f32 %v589, %v527
      %v614 = vmul.f32 %v590, %v527
      %v615 = vmul.f32 %v591, %v527
      %v616 = vmul.f32 %v592, %v527
      %v617 = vmul.f32 %v593, %v527
      %v618 = vmul.f32 %v594, %v527
      %v619 = vmul.f32 %v595, %v527
      %v620 = vmax.f32 %v596, 0.0
      %v621 = vmax.f32 %v597, 0.0
      %v622 = vmax.f32 %v598, 0.0
      %v623 = vmax.f32 %v599, 0.0
      %v624 = vmax.f32 %v600, 0.0
      %v625 = vmax.f32 %v601, 0.0
      %v626 = vmax.f32 %v602, 0.0
      %v627 = vmax.f32 %v603, 0.0
      %v628 = vmax.f32 %v604, 0.0
      %v629 = vmax.f32 %v605, 0.0
      %v630 = vmax.f32 %v606, 0.0
      %v631 = vmax.f32 %v607, 0.0
      %v632 = vmax.f32 %v608, 0.0
      %v633 = vmax.f32 %v609, 0.0
      %v634 = vmax.f32 %v610, 0.0
      %v635 = vmax.f32 %v611, 0.0
      %v636 = vmax.f32 %v612, 0.0
      %v637 = vmax.f32 %v613, 0.0
      %v638 = vmax.f32 %v614, 0.0
      %v639 = vmax.f32 %v615, 0.0
      %v640 = vmax.f32 %v616, 0.0
      %v641 = vmax.f32 %v617, 0.0
      %v642 = vmax.f32 %v618, 0.0
      %v643 = vmax.f32 %v619, 0.0
      %v644 = vmul.f32 %v620, %v513
      %v645 = vmul.f32 %v621, %v514
      %v646 = vmul.f32 %v622, %v515
      %v647 = vmul.f32 %v623, %v513
      %v648 = vmul.f32 %v624, %v514
      %v649 = vmul.f32 %v625, %v515
      %v650 = vmul.f32 %v626, %v513
      %v651 = vmul.f32 %v627, %v514
      %v652 = vmul.f32 %v628, %v515
      %v653 = vmul.f32 %v629, %v513
      %v654 = vmul.f32 %v630, %v514
      %v655 = vmul.f32 %v631, %v515
      %v656 = vmul.f32 %v632, %v513
      %v657 = vmul.f32 %v633, %v514
      %v658 = vmul.f32 %v634, %v515
      %v659 = vmul.f32 %v635, %v513
      %v660 = vmul.f32 %v636, %v514
      %v661 = vmul.f32 %v637, %v515
      %v662 = vmul.f32 %v638, %v513
      %v663 = vmul.f32 %v639, %v514
      %v664 = vmul.f32 %v640, %v515
      %v665 = vmul.f32 %v641, %v513
      %v666 = vmul.f32 %v642, %v514
      %v667 = vmul.f32 %v643, %v515
      %s668 = scalar_lea.vmem [#allocation2], 24
      %669 = vst.msk [vmem:[%s668] sm:$0xff] %vm544, %v644
      %670 = vst.msk [vmem:[%s668 + $0x8] sm:$0xff] %vm544, %v645
      %671 = vst.msk [vmem:[%s668 + $0x10] sm:$0xff] %vm544, %v646
      %672 = vst.msk [vmem:[%s668 + $0x18] sm:$0xff] %vm544, %v647
      %673 = vst.msk [vmem:[%s668 + $0x20] sm:$0xff] %vm544, %v648
      %674 = vst.msk [vmem:[%s668 + $0x28] sm:$0xff] %vm544, %v649
      %675 = vst.msk [vmem:[%s668 + $0x30] sm:$0xff] %vm544, %v650
      %676 = vst.msk [vmem:[%s668 + $0x38] sm:$0xff] %vm544, %v651
      %677 = vst.msk [vmem:[%s668 + $0x40] sm:$0xff] %vm544, %v652
      %678 = vst.msk [vmem:[%s668 + $0x48] sm:$0xff] %vm544, %v653
      %679 = vst.msk [vmem:[%s668 + $0x50] sm:$0xff] %vm544, %v654
      %680 = vst.msk [vmem:[%s668 + $0x58] sm:$0xff] %vm544, %v655
      %681 = vst.msk [vmem:[%s668 + $0x60] sm:$0xff] %vm544, %v656
      %682 = vst.msk [vmem:[%s668 + $0x68] sm:$0xff] %vm544, %v657
      %683 = vst.msk [vmem:[%s668 + $0x70] sm:$0xff] %vm544, %v658
      %684 = vst.msk [vmem:[%s668 + $0x78] sm:$0xff] %vm544, %v659
      %685 = vst.msk [vmem:[%s668 + $0x80] sm:$0xff] %vm544, %v660
      %686 = vst.msk [vmem:[%s668 + $0x88] sm:$0xff] %vm544, %v661
      %687 = vst.msk [vmem:[%s668 + $0x90] sm:$0xff] %vm544, %v662
      %688 = vst.msk [vmem:[%s668 + $0x98] sm:$0xff] %vm544, %v663
      %689 = vst.msk [vmem:[%s668 + $0xa0] sm:$0xff] %vm544, %v664
      %690 = vst.msk [vmem:[%s668 + $0xa8] sm:$0xff] %vm544, %v665
      %691 = vst.msk [vmem:[%s668 + $0xb0] sm:$0xff] %vm544, %v666
      %692 = vst.msk [vmem:[%s668 + $0xb8] sm:$0xff] %vm544, %v667
      %p693 = scmp.eq.s32.totalorder %s25, 1
      %v694 = vld [vmem:[%s471] sm:$0xff]
      %v695 = vld [vmem:[%s471 + $0x8] sm:$0xff]
      %v696 = vld [vmem:[%s471 + $0x10] sm:$0xff]
      %v697 = vsub.f32 %v694, %v521
      %v698 = vsub.f32 %v695, %v521
      %v699 = vsub.f32 %v696, %v521
      %v700 = vmul.f32 %v697, %v527
      %v701 = vmul.f32 %v698, %v527
      %v702 = vmul.f32 %v699, %v527
      %v703 = vmax.f32 %v700, 0.0
      %v704 = vmax.f32 %v701, 0.0
      %v705 = vmax.f32 %v702, 0.0
      %v706 = vmul.f32 %v703, %v513
      %v707 = vmul.f32 %v704, %v514
      %v708 = vmul.f32 %v705, %v515
      %s709 = scalar_select %p693, 1, 0
      %v710 = vstv %s709
      %vm711 = vcmp.eq.s32.totalorder %v710, 1
      %v712 = vsel %vm711, 0.0, %v706
      %v713 = vsel %vm711, 0.0, %v707
      %v714 = vsel %vm711, 0.0, %v708
      %s715 = scalar_lea.vmem [#allocation2], 216
      %716 = vst.msk [vmem:[%s715] sm:$0xff] %vm544, %v712
      %717 = vst.msk [vmem:[%s715 + $0x8] sm:$0xff] %vm544, %v713
      %718 = vst.msk [vmem:[%s715 + $0x10] sm:$0xff] %vm544, %v714
      %v719 = vld [vmem:[#allocation2] sm:$0xff]
      %v720 = vld [vmem:[#allocation2 + $0x8] sm:$0xff]
      %v721 = vld [vmem:[#allocation2 + $0x18] sm:$0xff]
      %v722 = vld [vmem:[#allocation2 + $0x20] sm:$0xff]
      %v723 = vld [vmem:[#allocation2 + $0x30] sm:$0xff]
      %v724 = vld [vmem:[#allocation2 + $0x38] sm:$0xff]
      %v725 = vld [vmem:[#allocation2 + $0x48] sm:$0xff]
      %v726 = vld [vmem:[#allocation2 + $0x50] sm:$0xff]
      %v727 = vld [vmem:[#allocation2 + $0x60] sm:$0xff]
      %v728 = vld [vmem:[#allocation2 + $0x68] sm:$0xff]
      %v729 = vld [vmem:[#allocation2 + $0x78] sm:$0xff]
      %v730 = vld [vmem:[#allocation2 + $0x80] sm:$0xff]
      %v731 = vld [vmem:[#allocation2 + $0x90] sm:$0xff]
      %v732 = vld [vmem:[#allocation2 + $0x98] sm:$0xff]
      %v733 = vld [vmem:[#allocation2 + $0xa8] sm:$0xff]
      %v734 = vld [vmem:[#allocation2 + $0xb0] sm:$0xff]
      %735 = vst.msk [vmem:[#allocation3] sm:$0xff] %vm544, %v719
      %736 = vst.msk [vmem:[#allocation3 + $0x8] sm:$0xff] %vm544, %v720
      %737 = vst.msk [vmem:[#allocation3 + $0x10] sm:$0xff] %vm544, %v721
      %738 = vst.msk [vmem:[#allocation3 + $0x18] sm:$0xff] %vm544, %v722
      %739 = vst.msk [vmem:[#allocation3 + $0x20] sm:$0xff] %vm544, %v723
      %740 = vst.msk [vmem:[#allocation3 + $0x28] sm:$0xff] %vm544, %v724
      %741 = vst.msk [vmem:[#allocation3 + $0x30] sm:$0xff] %vm544, %v725
      %742 = vst.msk [vmem:[#allocation3 + $0x38] sm:$0xff] %vm544, %v726
      %743 = vst.msk [vmem:[#allocation3 + $0x40] sm:$0xff] %vm544, %v727
      %744 = vst.msk [vmem:[#allocation3 + $0x48] sm:$0xff] %vm544, %v728
      %745 = vst.msk [vmem:[#allocation3 + $0x50] sm:$0xff] %vm544, %v729
      %746 = vst.msk [vmem:[#allocation3 + $0x58] sm:$0xff] %vm544, %v730
      %747 = vst.msk [vmem:[#allocation3 + $0x60] sm:$0xff] %vm544, %v731
      %748 = vst.msk [vmem:[#allocation3 + $0x68] sm:$0xff] %vm544, %v732
      %749 = vst.msk [vmem:[#allocation3 + $0x70] sm:$0xff] %vm544, %v733
      %750 = vst.msk [vmem:[#allocation3 + $0x78] sm:$0xff] %vm544, %v734
      %v751 = vld [vmem:[#allocation2 + $0x1] sm:$0xff]
      %v752 = vld [vmem:[#allocation2 + $0x9] sm:$0xff]
      %v753 = vld [vmem:[#allocation2 + $0x19] sm:$0xff]
      %v754 = vld [vmem:[#allocation2 + $0x21] sm:$0xff]
      %v755 = vld [vmem:[#allocation2 + $0x31] sm:$0xff]
      %v756 = vld [vmem:[#allocation2 + $0x39] sm:$0xff]
      %v757 = vld [vmem:[#allocation2 + $0x49] sm:$0xff]
      %v758 = vld [vmem:[#allocation2 + $0x51] sm:$0xff]
      %v759 = vld [vmem:[#allocation2 + $0x61] sm:$0xff]
      %v760 = vld [vmem:[#allocation2 + $0x69] sm:$0xff]
      %v761 = vld [vmem:[#allocation2 + $0x79] sm:$0xff]
      %v762 = vld [vmem:[#allocation2 + $0x81] sm:$0xff]
      %v763 = vld [vmem:[#allocation2 + $0x91] sm:$0xff]
      %v764 = vld [vmem:[#allocation2 + $0x99] sm:$0xff]
      %v765 = vld [vmem:[#allocation2 + $0xa9] sm:$0xff]
      %v766 = vld [vmem:[#allocation2 + $0xb1] sm:$0xff]
      %783 = vrot.lane.b32.xlu0 %v751, 4
      %v784 = vpop.permute.xlu0 %783
      %785 = vrot.lane.b32.xlu0 %v752, 4
      %v786 = vpop.permute.xlu0 %785
      %787 = vrot.lane.b32.xlu0 %v753, 4
      %v788 = vpop.permute.xlu0 %787
      %789 = vrot.lane.b32.xlu0 %v754, 4
      %v790 = vpop.permute.xlu0 %789
      %791 = vrot.lane.b32.xlu0 %v755, 4
      %v792 = vpop.permute.xlu0 %791
      %793 = vrot.lane.b32.xlu0 %v756, 4
      %v794 = vpop.permute.xlu0 %793
      %795 = vrot.lane.b32.xlu0 %v757, 4
      %v796 = vpop.permute.xlu0 %795
      %797 = vrot.lane.b32.xlu0 %v758, 4
      %v798 = vpop.permute.xlu0 %797
      %799 = vrot.lane.b32.xlu0 %v759, 4
      %v800 = vpop.permute.xlu0 %799
      %801 = vrot.lane.b32.xlu0 %v760, 4
      %v802 = vpop.permute.xlu0 %801
      %803 = vrot.lane.b32.xlu0 %v761, 4
      %v804 = vpop.permute.xlu0 %803
      %805 = vrot.lane.b32.xlu0 %v762, 4
      %v806 = vpop.permute.xlu0 %805
      %807 = vrot.lane.b32.xlu0 %v763, 4
      %v808 = vpop.permute.xlu0 %807
      %809 = vrot.lane.b32.xlu0 %v764, 4
      %v810 = vpop.permute.xlu0 %809
      %811 = vrot.lane.b32.xlu0 %v765, 4
      %v812 = vpop.permute.xlu0 %811
      %813 = vrot.lane.b32.xlu0 %v766, 4
      %v814 = vpop.permute.xlu0 %813
      %vm831 = vcmask 64544
      %832 = vst.msk [vmem:[#allocation3] sm:$0xff] %vm831, %v784
      %833 = vst.msk [vmem:[#allocation3 + $0x8] sm:$0xff] %vm831, %v786
      %834 = vst.msk [vmem:[#allocation3 + $0x10] sm:$0xff] %vm831, %v788
      %835 = vst.msk [vmem:[#allocation3 + $0x18] sm:$0xff] %vm831, %v790
      %836 = vst.msk [vmem:[#allocation3 + $0x20] sm:$0xff] %vm831, %v792
      %837 = vst.msk [vmem:[#allocation3 + $0x28] sm:$0xff] %vm831, %v794
      %838 = vst.msk [vmem:[#allocation3 + $0x30] sm:$0xff] %vm831, %v796
      %839 = vst.msk [vmem:[#allocation3 + $0x38] sm:$0xff] %vm831, %v798
      %840 = vst.msk [vmem:[#allocation3 + $0x40] sm:$0xff] %vm831, %v800
      %841 = vst.msk [vmem:[#allocation3 + $0x48] sm:$0xff] %vm831, %v802
      %842 = vst.msk [vmem:[#allocation3 + $0x50] sm:$0xff] %vm831, %v804
      %843 = vst.msk [vmem:[#allocation3 + $0x58] sm:$0xff] %vm831, %v806
      %844 = vst.msk [vmem:[#allocation3 + $0x60] sm:$0xff] %vm831, %v808
      %845 = vst.msk [vmem:[#allocation3 + $0x68] sm:$0xff] %vm831, %v810
      %846 = vst.msk [vmem:[#allocation3 + $0x70] sm:$0xff] %vm831, %v812
      %847 = vst.msk [vmem:[#allocation3 + $0x78] sm:$0xff] %vm831, %v814
      %v848 = vld [vmem:[#allocation2 + $0x2] sm:$0xff]
      %v849 = vld [vmem:[#allocation2 + $0xa] sm:$0xff]
      %v850 = vld [vmem:[#allocation2 + $0x1a] sm:$0xff]
      %v851 = vld [vmem:[#allocation2 + $0x22] sm:$0xff]
      %v852 = vld [vmem:[#allocation2 + $0x32] sm:$0xff]
      %v853 = vld [vmem:[#allocation2 + $0x3a] sm:$0xff]
      %v854 = vld [vmem:[#allocation2 + $0x4a] sm:$0xff]
      %v855 = vld [vmem:[#allocation2 + $0x52] sm:$0xff]
      %v856 = vld [vmem:[#allocation2 + $0x62] sm:$0xff]
      %v857 = vld [vmem:[#allocation2 + $0x6a] sm:$0xff]
      %v858 = vld [vmem:[#allocation2 + $0x7a] sm:$0xff]
      %v859 = vld [vmem:[#allocation2 + $0x82] sm:$0xff]
      %v860 = vld [vmem:[#allocation2 + $0x92] sm:$0xff]
      %v861 = vld [vmem:[#allocation2 + $0x9a] sm:$0xff]
      %v862 = vld [vmem:[#allocation2 + $0xaa] sm:$0xff]
      %v863 = vld [vmem:[#allocation2 + $0xb2] sm:$0xff]
      %880 = vrot.lane.b32.xlu0 %v848, 8
      %v881 = vpop.permute.xlu0 %880
      %882 = vrot.lane.b32.xlu0 %v849, 8
      %v883 = vpop.permute.xlu0 %882
      %884 = vrot.lane.b32.xlu0 %v850, 8
      %v885 = vpop.permute.xlu0 %884
      %886 = vrot.lane.b32.xlu0 %v851, 8
      %v887 = vpop.permute.xlu0 %886
      %888 = vrot.lane.b32.xlu0 %v852, 8
      %v889 = vpop.permute.xlu0 %888
      %890 = vrot.lane.b32.xlu0 %v853, 8
      %v891 = vpop.permute.xlu0 %890
      %892 = vrot.lane.b32.xlu0 %v854, 8
      %v893 = vpop.permute.xlu0 %892
      %894 = vrot.lane.b32.xlu0 %v855, 8
      %v895 = vpop.permute.xlu0 %894
      %896 = vrot.lane.b32.xlu0 %v856, 8
      %v897 = vpop.permute.xlu0 %896
      %898 = vrot.lane.b32.xlu0 %v857, 8
      %v899 = vpop.permute.xlu0 %898
      %900 = vrot.lane.b32.xlu0 %v858, 8
      %v901 = vpop.permute.xlu0 %900
      %902 = vrot.lane.b32.xlu0 %v859, 8
      %v903 = vpop.permute.xlu0 %902
      %904 = vrot.lane.b32.xlu0 %v860, 8
      %v905 = vpop.permute.xlu0 %904
      %906 = vrot.lane.b32.xlu0 %v861, 8
      %v907 = vpop.permute.xlu0 %906
      %908 = vrot.lane.b32.xlu0 %v862, 8
      %v909 = vpop.permute.xlu0 %908
      %910 = vrot.lane.b32.xlu0 %v863, 8
      %v911 = vpop.permute.xlu0 %910
      %vm928 = vcmask 97344
      %929 = vst.msk [vmem:[#allocation3] sm:$0xff] %vm928, %v881
      %930 = vst.msk [vmem:[#allocation3 + $0x8] sm:$0xff] %vm928, %v883
      %931 = vst.msk [vmem:[#allocation3 + $0x10] sm:$0xff] %vm928, %v885
      %932 = vst.msk [vmem:[#allocation3 + $0x18] sm:$0xff] %vm928, %v887
      %933 = vst.msk [vmem:[#allocation3 + $0x20] sm:$0xff] %vm928, %v889
      %934 = vst.msk [vmem:[#allocation3 + $0x28] sm:$0xff] %vm928, %v891
      %935 = vst.msk [vmem:[#allocation3 + $0x30] sm:$0xff] %vm928, %v893
      %936 = vst.msk [vmem:[#allocation3 + $0x38] sm:$0xff] %vm928, %v895
      %937 = vst.msk [vmem:[#allocation3 + $0x40] sm:$0xff] %vm928, %v897
      %938 = vst.msk [vmem:[#allocation3 + $0x48] sm:$0xff] %vm928, %v899
      %939 = vst.msk [vmem:[#allocation3 + $0x50] sm:$0xff] %vm928, %v901
      %940 = vst.msk [vmem:[#allocation3 + $0x58] sm:$0xff] %vm928, %v903
      %941 = vst.msk [vmem:[#allocation3 + $0x60] sm:$0xff] %vm928, %v905
      %942 = vst.msk [vmem:[#allocation3 + $0x68] sm:$0xff] %vm928, %v907
      %943 = vst.msk [vmem:[#allocation3 + $0x70] sm:$0xff] %vm928, %v909
      %944 = vst.msk [vmem:[#allocation3 + $0x78] sm:$0xff] %vm928, %v911
      %v945 = vld [vmem:[%s668] sm:$0xff]
      %v946 = vld [vmem:[%s668 + $0x8] sm:$0xff]
      %v947 = vld [vmem:[%s668 + $0x18] sm:$0xff]
      %v948 = vld [vmem:[%s668 + $0x20] sm:$0xff]
      %v949 = vld [vmem:[%s668 + $0x30] sm:$0xff]
      %v950 = vld [vmem:[%s668 + $0x38] sm:$0xff]
      %v951 = vld [vmem:[%s668 + $0x48] sm:$0xff]
      %v952 = vld [vmem:[%s668 + $0x50] sm:$0xff]
      %v953 = vld [vmem:[%s668 + $0x60] sm:$0xff]
      %v954 = vld [vmem:[%s668 + $0x68] sm:$0xff]
      %v955 = vld [vmem:[%s668 + $0x78] sm:$0xff]
      %v956 = vld [vmem:[%s668 + $0x80] sm:$0xff]
      %v957 = vld [vmem:[%s668 + $0x90] sm:$0xff]
      %v958 = vld [vmem:[%s668 + $0x98] sm:$0xff]
      %v959 = vld [vmem:[%s668 + $0xa8] sm:$0xff]
      %v960 = vld [vmem:[%s668 + $0xb0] sm:$0xff]
      %977 = vrot.lane.b32.xlu0 %v945, 12
      %v978 = vpop.permute.xlu0 %977
      %979 = vrot.lane.b32.xlu0 %v946, 12
      %v980 = vpop.permute.xlu0 %979
      %981 = vrot.lane.b32.xlu0 %v947, 12
      %v982 = vpop.permute.xlu0 %981
      %983 = vrot.lane.b32.xlu0 %v948, 12
      %v984 = vpop.permute.xlu0 %983
      %985 = vrot.lane.b32.xlu0 %v949, 12
      %v986 = vpop.permute.xlu0 %985
      %987 = vrot.lane.b32.xlu0 %v950, 12
      %v988 = vpop.permute.xlu0 %987
      %989 = vrot.lane.b32.xlu0 %v951, 12
      %v990 = vpop.permute.xlu0 %989
      %991 = vrot.lane.b32.xlu0 %v952, 12
      %v992 = vpop.permute.xlu0 %991
      %993 = vrot.lane.b32.xlu0 %v953, 12
      %v994 = vpop.permute.xlu0 %993
      %995 = vrot.lane.b32.xlu0 %v954, 12
      %v996 = vpop.permute.xlu0 %995
      %997 = vrot.lane.b32.xlu0 %v955, 12
      %v998 = vpop.permute.xlu0 %997
      %999 = vrot.lane.b32.xlu0 %v956, 12
      %v1000 = vpop.permute.xlu0 %999
      %1001 = vrot.lane.b32.xlu0 %v957, 12
      %v1002 = vpop.permute.xlu0 %1001
      %1003 = vrot.lane.b32.xlu0 %v958, 12
      %v1004 = vpop.permute.xlu0 %1003
      %1005 = vrot.lane.b32.xlu0 %v959, 12
      %v1006 = vpop.permute.xlu0 %1005
      %1007 = vrot.lane.b32.xlu0 %v960, 12
      %v1008 = vpop.permute.xlu0 %1007
      %vm1025 = vcmask 130144
      %1026 = vst.msk [vmem:[#allocation3] sm:$0xff] %vm1025, %v978
      %1027 = vst.msk [vmem:[#allocation3 + $0x8] sm:$0xff] %vm1025, %v980
      %1028 = vst.msk [vmem:[#allocation3 + $0x10] sm:$0xff] %vm1025, %v982
      %1029 = vst.msk [vmem:[#allocation3 + $0x18] sm:$0xff] %vm1025, %v984
      %1030 = vst.msk [vmem:[#allocation3 + $0x20] sm:$0xff] %vm1025, %v986
      %1031 = vst.msk [vmem:[#allocation3 + $0x28] sm:$0xff] %vm1025, %v988
      %1032 = vst.msk [vmem:[#allocation3 + $0x30] sm:$0xff] %vm1025, %v990
      %1033 = vst.msk [vmem:[#allocation3 + $0x38] sm:$0xff] %vm1025, %v992
      %1034 = vst.msk [vmem:[#allocation3 + $0x40] sm:$0xff] %vm1025, %v994
      %1035 = vst.msk [vmem:[#allocation3 + $0x48] sm:$0xff] %vm1025, %v996
      %1036 = vst.msk [vmem:[#allocation3 + $0x50] sm:$0xff] %vm1025, %v998
      %1037 = vst.msk [vmem:[#allocation3 + $0x58] sm:$0xff] %vm1025, %v1000
      %1038 = vst.msk [vmem:[#allocation3 + $0x60] sm:$0xff] %vm1025, %v1002
      %1039 = vst.msk [vmem:[#allocation3 + $0x68] sm:$0xff] %vm1025, %v1004
      %1040 = vst.msk [vmem:[#allocation3 + $0x70] sm:$0xff] %vm1025, %v1006
      %1041 = vst.msk [vmem:[#allocation3 + $0x78] sm:$0xff] %vm1025, %v1008
      %v1042 = vld [vmem:[%s668 + $0x1] sm:$0xff]
      %v1043 = vld [vmem:[%s668 + $0x9] sm:$0xff]
      %v1044 = vld [vmem:[%s668 + $0x19] sm:$0xff]
      %v1045 = vld [vmem:[%s668 + $0x21] sm:$0xff]
      %v1046 = vld [vmem:[%s668 + $0x31] sm:$0xff]
      %v1047 = vld [vmem:[%s668 + $0x39] sm:$0xff]
      %v1048 = vld [vmem:[%s668 + $0x49] sm:$0xff]
      %v1049 = vld [vmem:[%s668 + $0x51] sm:$0xff]
      %v1050 = vld [vmem:[%s668 + $0x61] sm:$0xff]
      %v1051 = vld [vmem:[%s668 + $0x69] sm:$0xff]
      %v1052 = vld [vmem:[%s668 + $0x79] sm:$0xff]
      %v1053 = vld [vmem:[%s668 + $0x81] sm:$0xff]
      %v1054 = vld [vmem:[%s668 + $0x91] sm:$0xff]
      %v1055 = vld [vmem:[%s668 + $0x99] sm:$0xff]
      %v1056 = vld [vmem:[%s668 + $0xa9] sm:$0xff]
      %v1057 = vld [vmem:[%s668 + $0xb1] sm:$0xff]
      %1074 = vrot.lane.b32.xlu0 %v1042, 16
      %v1075 = vpop.permute.xlu0 %1074
      %1076 = vrot.lane.b32.xlu0 %v1043, 16
      %v1077 = vpop.permute.xlu0 %1076
      %1078 = vrot.lane.b32.xlu0 %v1044, 16
      %v1079 = vpop.permute.xlu0 %1078
      %1080 = vrot.lane.b32.xlu0 %v1045, 16
      %v1081 = vpop.permute.xlu0 %1080
      %1082 = vrot.lane.b32.xlu0 %v1046, 16
      %v1083 = vpop.permute.xlu0 %1082
      %1084 = vrot.lane.b32.xlu0 %v1047, 16
      %v1085 = vpop.permute.xlu0 %1084
      %1086 = vrot.lane.b32.xlu0 %v1048, 16
      %v1087 = vpop.permute.xlu0 %1086
      %1088 = vrot.lane.b32.xlu0 %v1049, 16
      %v1089 = vpop.permute.xlu0 %1088
      %1090 = vrot.lane.b32.xlu0 %v1050, 16
      %v1091 = vpop.permute.xlu0 %1090
      %1092 = vrot.lane.b32.xlu0 %v1051, 16
      %v1093 = vpop.permute.xlu0 %1092
      %1094 = vrot.lane.b32.xlu0 %v1052, 16
      %v1095 = vpop.permute.xlu0 %1094
      %1096 = vrot.lane.b32.xlu0 %v1053, 16
      %v1097 = vpop.permute.xlu0 %1096
      %1098 = vrot.lane.b32.xlu0 %v1054, 16
      %v1099 = vpop.permute.xlu0 %1098
      %1100 = vrot.lane.b32.xlu0 %v1055, 16
      %v1101 = vpop.permute.xlu0 %1100
      %1102 = vrot.lane.b32.xlu0 %v1056, 16
      %v1103 = vpop.permute.xlu0 %1102
      %1104 = vrot.lane.b32.xlu0 %v1057, 16
      %v1105 = vpop.permute.xlu0 %1104
      %vm1122 = vcmask 162944
      %1123 = vst.msk [vmem:[#allocation3] sm:$0xff] %vm1122, %v1075
      %1124 = vst.msk [vmem:[#allocation3 + $0x8] sm:$0xff] %vm1122, %v1077
      %1125 = vst.msk [vmem:[#allocation3 + $0x10] sm:$0xff] %vm1122, %v1079
      %1126 = vst.msk [vmem:[#allocation3 + $0x18] sm:$0xff] %vm1122, %v1081
      %1127 = vst.msk [vmem:[#allocation3 + $0x20] sm:$0xff] %vm1122, %v1083
      %1128 = vst.msk [vmem:[#allocation3 + $0x28] sm:$0xff] %vm1122, %v1085
      %1129 = vst.msk [vmem:[#allocation3 + $0x30] sm:$0xff] %vm1122, %v1087
      %1130 = vst.msk [vmem:[#allocation3 + $0x38] sm:$0xff] %vm1122, %v1089
      %1131 = vst.msk [vmem:[#allocation3 + $0x40] sm:$0xff] %vm1122, %v1091
      %1132 = vst.msk [vmem:[#allocation3 + $0x48] sm:$0xff] %vm1122, %v1093
      %1133 = vst.msk [vmem:[#allocation3 + $0x50] sm:$0xff] %vm1122, %v1095
      %1134 = vst.msk [vmem:[#allocation3 + $0x58] sm:$0xff] %vm1122, %v1097
      %1135 = vst.msk [vmem:[#allocation3 + $0x60] sm:$0xff] %vm1122, %v1099
      %1136 = vst.msk [vmem:[#allocation3 + $0x68] sm:$0xff] %vm1122, %v1101
      %1137 = vst.msk [vmem:[#allocation3 + $0x70] sm:$0xff] %vm1122, %v1103
      %1138 = vst.msk [vmem:[#allocation3 + $0x78] sm:$0xff] %vm1122, %v1105
      %v1139 = vld [vmem:[%s668 + $0x2] sm:$0xff]
      %v1140 = vld [vmem:[%s668 + $0xa] sm:$0xff]
      %v1141 = vld [vmem:[%s668 + $0x1a] sm:$0xff]
      %v1142 = vld [vmem:[%s668 + $0x22] sm:$0xff]
      %v1143 = vld [vmem:[%s668 + $0x32] sm:$0xff]
      %v1144 = vld [vmem:[%s668 + $0x3a] sm:$0xff]
      %v1145 = vld [vmem:[%s668 + $0x4a] sm:$0xff]
      %v1146 = vld [vmem:[%s668 + $0x52] sm:$0xff]
      %v1147 = vld [vmem:[%s668 + $0x62] sm:$0xff]
      %v1148 = vld [vmem:[%s668 + $0x6a] sm:$0xff]
      %v1149 = vld [vmem:[%s668 + $0x7a] sm:$0xff]
      %v1150 = vld [vmem:[%s668 + $0x82] sm:$0xff]
      %v1151 = vld [vmem:[%s668 + $0x92] sm:$0xff]
      %v1152 = vld [vmem:[%s668 + $0x9a] sm:$0xff]
      %v1153 = vld [vmem:[%s668 + $0xaa] sm:$0xff]
      %v1154 = vld [vmem:[%s668 + $0xb2] sm:$0xff]
      %1171 = vrot.lane.b32.xlu0 %v1139, 20
      %v1172 = vpop.permute.xlu0 %1171
      %1173 = vrot.lane.b32.xlu0 %v1140, 20
      %v1174 = vpop.permute.xlu0 %1173
      %1175 = vrot.lane.b32.xlu0 %v1141, 20
      %v1176 = vpop.permute.xlu0 %1175
      %1177 = vrot.lane.b32.xlu0 %v1142, 20
      %v1178 = vpop.permute.xlu0 %1177
      %1179 = vrot.lane.b32.xlu0 %v1143, 20
      %v1180 = vpop.permute.xlu0 %1179
      %1181 = vrot.lane.b32.xlu0 %v1144, 20
      %v1182 = vpop.permute.xlu0 %1181
      %1183 = vrot.lane.b32.xlu0 %v1145, 20
      %v1184 = vpop.permute.xlu0 %1183
      %1185 = vrot.lane.b32.xlu0 %v1146, 20
      %v1186 = vpop.permute.xlu0 %1185
      %1187 = vrot.lane.b32.xlu0 %v1147, 20
      %v1188 = vpop.permute.xlu0 %1187
      %1189 = vrot.lane.b32.xlu0 %v1148, 20
      %v1190 = vpop.permute.xlu0 %1189
      %1191 = vrot.lane.b32.xlu0 %v1149, 20
      %v1192 = vpop.permute.xlu0 %1191
      %1193 = vrot.lane.b32.xlu0 %v1150, 20
      %v1194 = vpop.permute.xlu0 %1193
      %1195 = vrot.lane.b32.xlu0 %v1151, 20
      %v1196 = vpop.permute.xlu0 %1195
      %1197 = vrot.lane.b32.xlu0 %v1152, 20
      %v1198 = vpop.permute.xlu0 %1197
      %1199 = vrot.lane.b32.xlu0 %v1153, 20
      %v1200 = vpop.permute.xlu0 %1199
      %1201 = vrot.lane.b32.xlu0 %v1154, 20
      %v1202 = vpop.permute.xlu0 %1201
      %vm1219 = vcmask 195744
      %1220 = vst.msk [vmem:[#allocation3] sm:$0xff] %vm1219, %v1172
      %1221 = vst.msk [vmem:[#allocation3 + $0x8] sm:$0xff] %vm1219, %v1174
      %1222 = vst.msk [vmem:[#allocation3 + $0x10] sm:$0xff] %vm1219, %v1176
      %1223 = vst.msk [vmem:[#allocation3 + $0x18] sm:$0xff] %vm1219, %v1178
      %1224 = vst.msk [vmem:[#allocation3 + $0x20] sm:$0xff] %vm1219, %v1180
      %1225 = vst.msk [vmem:[#allocation3 + $0x28] sm:$0xff] %vm1219, %v1182
      %1226 = vst.msk [vmem:[#allocation3 + $0x30] sm:$0xff] %vm1219, %v1184
      %1227 = vst.msk [vmem:[#allocation3 + $0x38] sm:$0xff] %vm1219, %v1186
      %1228 = vst.msk [vmem:[#allocation3 + $0x40] sm:$0xff] %vm1219, %v1188
      %1229 = vst.msk [vmem:[#allocation3 + $0x48] sm:$0xff] %vm1219, %v1190
      %1230 = vst.msk [vmem:[#allocation3 + $0x50] sm:$0xff] %vm1219, %v1192
      %1231 = vst.msk [vmem:[#allocation3 + $0x58] sm:$0xff] %vm1219, %v1194
      %1232 = vst.msk [vmem:[#allocation3 + $0x60] sm:$0xff] %vm1219, %v1196
      %1233 = vst.msk [vmem:[#allocation3 + $0x68] sm:$0xff] %vm1219, %v1198
      %1234 = vst.msk [vmem:[#allocation3 + $0x70] sm:$0xff] %vm1219, %v1200
      %1235 = vst.msk [vmem:[#allocation3 + $0x78] sm:$0xff] %vm1219, %v1202
      %s1236 = scalar_lea.vmem [#allocation2], 48
      %v1237 = vld [vmem:[%s1236] sm:$0xff]
      %v1238 = vld [vmem:[%s1236 + $0x8] sm:$0xff]
      %v1239 = vld [vmem:[%s1236 + $0x18] sm:$0xff]
      %v1240 = vld [vmem:[%s1236 + $0x20] sm:$0xff]
      %v1241 = vld [vmem:[%s1236 + $0x30] sm:$0xff]
      %v1242 = vld [vmem:[%s1236 + $0x38] sm:$0xff]
      %v1243 = vld [vmem:[%s1236 + $0x48] sm:$0xff]
      %v1244 = vld [vmem:[%s1236 + $0x50] sm:$0xff]
      %v1245 = vld [vmem:[%s1236 + $0x60] sm:$0xff]
      %v1246 = vld [vmem:[%s1236 + $0x68] sm:$0xff]
      %v1247 = vld [vmem:[%s1236 + $0x78] sm:$0xff]
      %v1248 = vld [vmem:[%s1236 + $0x80] sm:$0xff]
      %v1249 = vld [vmem:[%s1236 + $0x90] sm:$0xff]
      %v1250 = vld [vmem:[%s1236 + $0x98] sm:$0xff]
      %v1251 = vld [vmem:[%s1236 + $0xa8] sm:$0xff]
      %v1252 = vld [vmem:[%s1236 + $0xb0] sm:$0xff]
      %1269 = vrot.lane.b32.xlu0 %v1237, 24
      %v1270 = vpop.permute.xlu0 %1269
      %1271 = vrot.lane.b32.xlu0 %v1238, 24
      %v1272 = vpop.permute.xlu0 %1271
      %1273 = vrot.lane.b32.xlu0 %v1239, 24
      %v1274 = vpop.permute.xlu0 %1273
      %1275 = vrot.lane.b32.xlu0 %v1240, 24
      %v1276 = vpop.permute.xlu0 %1275
      %1277 = vrot.lane.b32.xlu0 %v1241, 24
      %v1278 = vpop.permute.xlu0 %1277
      %1279 = vrot.lane.b32.xlu0 %v1242, 24
      %v1280 = vpop.permute.xlu0 %1279
      %1281 = vrot.lane.b32.xlu0 %v1243, 24
      %v1282 = vpop.permute.xlu0 %1281
      %1283 = vrot.lane.b32.xlu0 %v1244, 24
      %v1284 = vpop.permute.xlu0 %1283
      %1285 = vrot.lane.b32.xlu0 %v1245, 24
      %v1286 = vpop.permute.xlu0 %1285
      %1287 = vrot.lane.b32.xlu0 %v1246, 24
      %v1288 = vpop.permute.xlu0 %1287
      %1289 = vrot.lane.b32.xlu0 %v1247, 24
      %v1290 = vpop.permute.xlu0 %1289
      %1291 = vrot.lane.b32.xlu0 %v1248, 24
      %v1292 = vpop.permute.xlu0 %1291
      %1293 = vrot.lane.b32.xlu0 %v1249, 24
      %v1294 = vpop.permute.xlu0 %1293
      %1295 = vrot.lane.b32.xlu0 %v1250, 24
      %v1296 = vpop.permute.xlu0 %1295
      %1297 = vrot.lane.b32.xlu0 %v1251, 24
      %v1298 = vpop.permute.xlu0 %1297
      %1299 = vrot.lane.b32.xlu0 %v1252, 24
      %v1300 = vpop.permute.xlu0 %1299
      %vm1317 = vcmask 228544
      %1318 = vst.msk [vmem:[#allocation3] sm:$0xff] %vm1317, %v1270
      %1319 = vst.msk [vmem:[#allocation3 + $0x8] sm:$0xff] %vm1317, %v1272
      %1320 = vst.msk [vmem:[#allocation3 + $0x10] sm:$0xff] %vm1317, %v1274
      %1321 = vst.msk [vmem:[#allocation3 + $0x18] sm:$0xff] %vm1317, %v1276
      %1322 = vst.msk [vmem:[#allocation3 + $0x20] sm:$0xff] %vm1317, %v1278
      %1323 = vst.msk [vmem:[#allocation3 + $0x28] sm:$0xff] %vm1317, %v1280
      %1324 = vst.msk [vmem:[#allocation3 + $0x30] sm:$0xff] %vm1317, %v1282
      %1325 = vst.msk [vmem:[#allocation3 + $0x38] sm:$0xff] %vm1317, %v1284
      %1326 = vst.msk [vmem:[#allocation3 + $0x40] sm:$0xff] %vm1317, %v1286
      %1327 = vst.msk [vmem:[#allocation3 + $0x48] sm:$0xff] %vm1317, %v1288
      %1328 = vst.msk [vmem:[#allocation3 + $0x50] sm:$0xff] %vm1317, %v1290
      %1329 = vst.msk [vmem:[#allocation3 + $0x58] sm:$0xff] %vm1317, %v1292
      %1330 = vst.msk [vmem:[#allocation3 + $0x60] sm:$0xff] %vm1317, %v1294
      %1331 = vst.msk [vmem:[#allocation3 + $0x68] sm:$0xff] %vm1317, %v1296
      %1332 = vst.msk [vmem:[#allocation3 + $0x70] sm:$0xff] %vm1317, %v1298
      %1333 = vst.msk [vmem:[#allocation3 + $0x78] sm:$0xff] %vm1317, %v1300
      %v1334 = vld [vmem:[%s1236 + $0x1] sm:$0xff]
      %v1335 = vld [vmem:[%s1236 + $0x9] sm:$0xff]
      %v1336 = vld [vmem:[%s1236 + $0x19] sm:$0xff]
      %v1337 = vld [vmem:[%s1236 + $0x21] sm:$0xff]
      %v1338 = vld [vmem:[%s1236 + $0x31] sm:$0xff]
      %v1339 = vld [vmem:[%s1236 + $0x39] sm:$0xff]
      %v1340 = vld [vmem:[%s1236 + $0x49] sm:$0xff]
      %v1341 = vld [vmem:[%s1236 + $0x51] sm:$0xff]
      %v1342 = vld [vmem:[%s1236 + $0x61] sm:$0xff]
      %v1343 = vld [vmem:[%s1236 + $0x69] sm:$0xff]
      %v1344 = vld [vmem:[%s1236 + $0x79] sm:$0xff]
      %v1345 = vld [vmem:[%s1236 + $0x81] sm:$0xff]
      %v1346 = vld [vmem:[%s1236 + $0x91] sm:$0xff]
      %v1347 = vld [vmem:[%s1236 + $0x99] sm:$0xff]
      %v1348 = vld [vmem:[%s1236 + $0xa9] sm:$0xff]
      %v1349 = vld [vmem:[%s1236 + $0xb1] sm:$0xff]
      %1366 = vrot.lane.b32.xlu0 %v1334, 28
      %v1367 = vpop.permute.xlu0 %1366
      %1368 = vrot.lane.b32.xlu0 %v1335, 28
      %v1369 = vpop.permute.xlu0 %1368
      %1370 = vrot.lane.b32.xlu0 %v1336, 28
      %v1371 = vpop.permute.xlu0 %1370
      %1372 = vrot.lane.b32.xlu0 %v1337, 28
      %v1373 = vpop.permute.xlu0 %1372
      %1374 = vrot.lane.b32.xlu0 %v1338, 28
      %v1375 = vpop.permute.xlu0 %1374
      %1376 = vrot.lane.b32.xlu0 %v1339, 28
      %v1377 = vpop.permute.xlu0 %1376
      %1378 = vrot.lane.b32.xlu0 %v1340, 28
      %v1379 = vpop.permute.xlu0 %1378
      %1380 = vrot.lane.b32.xlu0 %v1341, 28
      %v1381 = vpop.permute.xlu0 %1380
      %1382 = vrot.lane.b32.xlu0 %v1342, 28
      %v1383 = vpop.permute.xlu0 %1382
      %1384 = vrot.lane.b32.xlu0 %v1343, 28
      %v1385 = vpop.permute.xlu0 %1384
      %1386 = vrot.lane.b32.xlu0 %v1344, 28
      %v1387 = vpop.permute.xlu0 %1386
      %1388 = vrot.lane.b32.xlu0 %v1345, 28
      %v1389 = vpop.permute.xlu0 %1388
      %1390 = vrot.lane.b32.xlu0 %v1346, 28
      %v1391 = vpop.permute.xlu0 %1390
      %1392 = vrot.lane.b32.xlu0 %v1347, 28
      %v1393 = vpop.permute.xlu0 %1392
      %1394 = vrot.lane.b32.xlu0 %v1348, 28
      %v1395 = vpop.permute.xlu0 %1394
      %1396 = vrot.lane.b32.xlu0 %v1349, 28
      %v1397 = vpop.permute.xlu0 %1396
      %vm1414 = vcmask 261344
      %1415 = vst.msk [vmem:[#allocation3] sm:$0xff] %vm1414, %v1367
      %1416 = vst.msk [vmem:[#allocation3 + $0x8] sm:$0xff] %vm1414, %v1369
      %1417 = vst.msk [vmem:[#allocation3 + $0x10] sm:$0xff] %vm1414, %v1371
      %1418 = vst.msk [vmem:[#allocation3 + $0x18] sm:$0xff] %vm1414, %v1373
      %1419 = vst.msk [vmem:[#allocation3 + $0x20] sm:$0xff] %vm1414, %v1375
      %1420 = vst.msk [vmem:[#allocation3 + $0x28] sm:$0xff] %vm1414, %v1377
      %1421 = vst.msk [vmem:[#allocation3 + $0x30] sm:$0xff] %vm1414, %v1379
      %1422 = vst.msk [vmem:[#allocation3 + $0x38] sm:$0xff] %vm1414, %v1381
      %1423 = vst.msk [vmem:[#allocation3 + $0x40] sm:$0xff] %vm1414, %v1383
      %1424 = vst.msk [vmem:[#allocation3 + $0x48] sm:$0xff] %vm1414, %v1385
      %1425 = vst.msk [vmem:[#allocation3 + $0x50] sm:$0xff] %vm1414, %v1387
      %1426 = vst.msk [vmem:[#allocation3 + $0x58] sm:$0xff] %vm1414, %v1389
      %1427 = vst.msk [vmem:[#allocation3 + $0x60] sm:$0xff] %vm1414, %v1391
      %1428 = vst.msk [vmem:[#allocation3 + $0x68] sm:$0xff] %vm1414, %v1393
      %1429 = vst.msk [vmem:[#allocation3 + $0x70] sm:$0xff] %vm1414, %v1395
      %1430 = vst.msk [vmem:[#allocation3 + $0x78] sm:$0xff] %vm1414, %v1397
      %v1431 = vld [vmem:[%s1236 + $0x2] sm:$0xff]
      %v1432 = vld [vmem:[%s1236 + $0xa] sm:$0xff]
      %v1433 = vld [vmem:[%s1236 + $0x1a] sm:$0xff]
      %v1434 = vld [vmem:[%s1236 + $0x22] sm:$0xff]
      %v1435 = vld [vmem:[%s1236 + $0x32] sm:$0xff]
      %v1436 = vld [vmem:[%s1236 + $0x3a] sm:$0xff]
      %v1437 = vld [vmem:[%s1236 + $0x4a] sm:$0xff]
      %v1438 = vld [vmem:[%s1236 + $0x52] sm:$0xff]
      %v1439 = vld [vmem:[%s1236 + $0x62] sm:$0xff]
      %v1440 = vld [vmem:[%s1236 + $0x6a] sm:$0xff]
      %v1441 = vld [vmem:[%s1236 + $0x7a] sm:$0xff]
      %v1442 = vld [vmem:[%s1236 + $0x82] sm:$0xff]
      %v1443 = vld [vmem:[%s1236 + $0x92] sm:$0xff]
      %v1444 = vld [vmem:[%s1236 + $0x9a] sm:$0xff]
      %v1445 = vld [vmem:[%s1236 + $0xaa] sm:$0xff]
      %v1446 = vld [vmem:[%s1236 + $0xb2] sm:$0xff]
      %1463 = vrot.lane.b32.xlu0 %v1431, 32
      %v1464 = vpop.permute.xlu0 %1463
      %1465 = vrot.lane.b32.xlu0 %v1432, 32
      %v1466 = vpop.permute.xlu0 %1465
      %1467 = vrot.lane.b32.xlu0 %v1433, 32
      %v1468 = vpop.permute.xlu0 %1467
      %1469 = vrot.lane.b32.xlu0 %v1434, 32
      %v1470 = vpop.permute.xlu0 %1469
      %1471 = vrot.lane.b32.xlu0 %v1435, 32
      %v1472 = vpop.permute.xlu0 %1471
      %1473 = vrot.lane.b32.xlu0 %v1436, 32
      %v1474 = vpop.permute.xlu0 %1473
      %1475 = vrot.lane.b32.xlu0 %v1437, 32
      %v1476 = vpop.permute.xlu0 %1475
      %1477 = vrot.lane.b32.xlu0 %v1438, 32
      %v1478 = vpop.permute.xlu0 %1477
      %1479 = vrot.lane.b32.xlu0 %v1439, 32
      %v1480 = vpop.permute.xlu0 %1479
      %1481 = vrot.lane.b32.xlu0 %v1440, 32
      %v1482 = vpop.permute.xlu0 %1481
      %1483 = vrot.lane.b32.xlu0 %v1441, 32
      %v1484 = vpop.permute.xlu0 %1483
      %1485 = vrot.lane.b32.xlu0 %v1442, 32
      %v1486 = vpop.permute.xlu0 %1485
      %1487 = vrot.lane.b32.xlu0 %v1443, 32
      %v1488 = vpop.permute.xlu0 %1487
      %1489 = vrot.lane.b32.xlu0 %v1444, 32
      %v1490 = vpop.permute.xlu0 %1489
      %1491 = vrot.lane.b32.xlu0 %v1445, 32
      %v1492 = vpop.permute.xlu0 %1491
      %1493 = vrot.lane.b32.xlu0 %v1446, 32
      %v1494 = vpop.permute.xlu0 %1493
      %vm1511 = vcmask 294144
      %1512 = vst.msk [vmem:[#allocation3] sm:$0xff] %vm1511, %v1464
      %1513 = vst.msk [vmem:[#allocation3 + $0x8] sm:$0xff] %vm1511, %v1466
      %1514 = vst.msk [vmem:[#allocation3 + $0x10] sm:$0xff] %vm1511, %v1468
      %1515 = vst.msk [vmem:[#allocation3 + $0x18] sm:$0xff] %vm1511, %v1470
      %1516 = vst.msk [vmem:[#allocation3 + $0x20] sm:$0xff] %vm1511, %v1472
      %1517 = vst.msk [vmem:[#allocation3 + $0x28] sm:$0xff] %vm1511, %v1474
      %1518 = vst.msk [vmem:[#allocation3 + $0x30] sm:$0xff] %vm1511, %v1476
      %1519 = vst.msk [vmem:[#allocation3 + $0x38] sm:$0xff] %vm1511, %v1478
      %1520 = vst.msk [vmem:[#allocation3 + $0x40] sm:$0xff] %vm1511, %v1480
      %1521 = vst.msk [vmem:[#allocation3 + $0x48] sm:$0xff] %vm1511, %v1482
      %1522 = vst.msk [vmem:[#allocation3 + $0x50] sm:$0xff] %vm1511, %v1484
      %1523 = vst.msk [vmem:[#allocation3 + $0x58] sm:$0xff] %vm1511, %v1486
      %1524 = vst.msk [vmem:[#allocation3 + $0x60] sm:$0xff] %vm1511, %v1488
      %1525 = vst.msk [vmem:[#allocation3 + $0x68] sm:$0xff] %vm1511, %v1490
      %1526 = vst.msk [vmem:[#allocation3 + $0x70] sm:$0xff] %vm1511, %v1492
      %1527 = vst.msk [vmem:[#allocation3 + $0x78] sm:$0xff] %vm1511, %v1494
      %v1528 = vld [vmem:[#allocation3] sm:$0xff]
      %v1529 = vld [vmem:[#allocation3 + $0x8] sm:$0xff]
      %v1530 = vld [vmem:[#allocation3 + $0x10] sm:$0xff]
      %v1531 = vld [vmem:[#allocation3 + $0x18] sm:$0xff]
      %v1532 = vld [vmem:[#allocation3 + $0x20] sm:$0xff]
      %v1533 = vld [vmem:[#allocation3 + $0x28] sm:$0xff]
      %v1534 = vld [vmem:[#allocation3 + $0x30] sm:$0xff]
      %v1535 = vld [vmem:[#allocation3 + $0x38] sm:$0xff]
      %v1536 = vld [vmem:[#allocation3 + $0x40] sm:$0xff]
      %v1537 = vld [vmem:[#allocation3 + $0x48] sm:$0xff]
      %v1538 = vld [vmem:[#allocation3 + $0x50] sm:$0xff]
      %v1539 = vld [vmem:[#allocation3 + $0x58] sm:$0xff]
      %v1540 = vld [vmem:[#allocation3 + $0x60] sm:$0xff]
      %v1541 = vld [vmem:[#allocation3 + $0x68] sm:$0xff]
      %v1542 = vld [vmem:[#allocation3 + $0x70] sm:$0xff]
      %v1543 = vld [vmem:[#allocation3 + $0x78] sm:$0xff]
      %v1544 = vld [vmem:[%s5] sm:$0xff]
      %v1545 = vld [vmem:[%s5 + $0x8] sm:$0xff]
      %v1546 = vld [vmem:[%s5 + $0x10] sm:$0xff]
      %v1547 = vld [vmem:[%s5 + $0x18] sm:$0xff]
      %v1548 = vld [vmem:[%s5 + $0x20] sm:$0xf]
      %v1549 = vld [vmem:[%s6] sm:$0x1]
      %v1551 = vperm.slane %v1549, 0
      %vm1553 = vcmask 293888
      %v1555 = vsel %vm1553, %v1528, 0
      %v1558 = vsel %vm1553, %v1529, 0
      %v1561 = vsel %vm1553, %v1530, 0
      %v1564 = vsel %vm1553, %v1531, 0
      %v1567 = vsel %vm1553, %v1532, 0
      %v1570 = vsel %vm1553, %v1533, 0
      %v1573 = vsel %vm1553, %v1534, 0
      %v1576 = vsel %vm1553, %v1535, 0
      %v1579 = vsel %vm1553, %v1536, 0
      %v1582 = vsel %vm1553, %v1537, 0
      %v1585 = vsel %vm1553, %v1538, 0
      %v1588 = vsel %vm1553, %v1539, 0
      %v1591 = vsel %vm1553, %v1540, 0
      %v1594 = vsel %vm1553, %v1541, 0
      %v1597 = vsel %vm1553, %v1542, 0
      %v1600 = vsel %vm1553, %v1543, 0
      %vm1602 = vcmask 1043456
      %v1604 = vsel %vm1602, %v1548, 0
      %1606 = vmatpush.msra.mxu0 0.0
      %1607 = vmatpush.msra.mxu0 0.0
      %1608 = vmatpush.msra.mxu0 0.0
      %1609 = vmatpush.msra.mxu0 0.0
      %1610 = vmatpush.msra.mxu0 0.0
      %1611 = vmatpush.msra.mxu0 0.0
      %1612 = vmatpush.msra.mxu0 0.0
      %1613 = vmatpush.msra.mxu0 0.0
      %1614 = vmatpush.msra.mxu0 0.0
      %1615 = vmatpush.msra.mxu0 0.0
      %1616 = vmatpush.msra.mxu0 0.0
      %1617 = vmatpush.msra.mxu0 %v1604
      %1618 = vmatpush.msra.mxu0 %v1547
      %1619 = vmatpush.msra.mxu0 %v1546
      %1620 = vmatpush.msra.mxu0 %v1545
      %1621 = vmatpush.msra.mxu0 %v1544
      %1622 = vmatmul.f32.gmra.mxu0 %v1555
      %v1623 = vpop.f32.mrf.mxu0
      %v1624 = vadd.f32 %v1551, %v1623
      %1625 = vmatmul.f32.gmra.mxu0 %v1558
      %v1626 = vpop.f32.mrf.mxu0
      %v1627 = vadd.f32 %v1551, %v1626
      %1628 = vmatmul.f32.gmra.mxu0 %v1561
      %v1629 = vpop.f32.mrf.mxu0
      %v1630 = vadd.f32 %v1551, %v1629
      %1631 = vmatmul.f32.gmra.mxu0 %v1564
      %v1632 = vpop.f32.mrf.mxu0
      %v1633 = vadd.f32 %v1551, %v1632
      %1634 = vmatmul.f32.gmra.mxu0 %v1567
      %v1635 = vpop.f32.mrf.mxu0
      %v1636 = vadd.f32 %v1551, %v1635
      %1637 = vmatmul.f32.gmra.mxu0 %v1570
      %v1638 = vpop.f32.mrf.mxu0
      %v1639 = vadd.f32 %v1551, %v1638
      %1640 = vmatmul.f32.gmra.mxu0 %v1573
      %v1641 = vpop.f32.mrf.mxu0
      %v1642 = vadd.f32 %v1551, %v1641
      %1643 = vmatmul.f32.gmra.mxu0 %v1576
      %v1644 = vpop.f32.mrf.mxu0
      %v1645 = vadd.f32 %v1551, %v1644
      %1646 = vmatmul.f32.gmra.mxu0 %v1579
      %v1647 = vpop.f32.mrf.mxu0
      %v1648 = vadd.f32 %v1551, %v1647
      %1649 = vmatmul.f32.gmra.mxu0 %v1582
      %v1650 = vpop.f32.mrf.mxu0
      %v1651 = vadd.f32 %v1551, %v1650
      %1652 = vmatmul.f32.gmra.mxu0 %v1585
      %v1653 = vpop.f32.mrf.mxu0
      %v1654 = vadd.f32 %v1551, %v1653
      %1655 = vmatmul.f32.gmra.mxu0 %v1588
      %v1656 = vpop.f32.mrf.mxu0
      %v1657 = vadd.f32 %v1551, %v1656
      %1658 = vmatmul.f32.gmra.mxu0 %v1591
      %v1659 = vpop.f32.mrf.mxu0
      %v1660 = vadd.f32 %v1551, %v1659
      %1661 = vmatmul.f32.gmra.mxu0 %v1594
      %v1662 = vpop.f32.mrf.mxu0
      %v1663 = vadd.f32 %v1551, %v1662
      %1664 = vmatmul.f32.gmra.mxu0 %v1597
      %v1665 = vpop.f32.mrf.mxu0
      %v1666 = vadd.f32 %v1551, %v1665
      %1667 = vmatmul.f32.gmra.mxu0 %v1600
      %v1668 = vpop.f32.mrf.mxu0
      %v1669 = vadd.f32 %v1551, %v1668
      %1670 = vdwg.mxu0
      %v1671 = vsel %vm544, %v1624, 0.0
      %v1672 = vsel %vm544, %v1627, 0.0
      %v1673 = vadd.f32 %v1671, %v1672
      %v1674 = vsel %vm544, %v1630, 0.0
      %v1675 = vadd.f32 %v1673, %v1674
      %v1676 = vsel %vm544, %v1633, 0.0
      %v1677 = vadd.f32 %v1675, %v1676
      %v1678 = vsel %vm544, %v1636, 0.0
      %v1679 = vadd.f32 %v1677, %v1678
      %v1680 = vsel %vm544, %v1639, 0.0
      %v1681 = vadd.f32 %v1679, %v1680
      %v1682 = vsel %vm544, %v1642, 0.0
      %v1683 = vadd.f32 %v1681, %v1682
      %v1684 = vsel %vm544, %v1645, 0.0
      %v1685 = vadd.f32 %v1683, %v1684
      %v1686 = vsel %vm544, %v1648, 0.0
      %v1687 = vadd.f32 %v1685, %v1686
      %v1688 = vsel %vm544, %v1651, 0.0
      %v1689 = vadd.f32 %v1687, %v1688
      %v1690 = vsel %vm544, %v1654, 0.0
      %v1691 = vadd.f32 %v1689, %v1690
      %v1692 = vsel %vm544, %v1657, 0.0
      %v1693 = vadd.f32 %v1691, %v1692
      %v1694 = vsel %vm544, %v1660, 0.0
      %v1695 = vadd.f32 %v1693, %v1694
      %v1696 = vsel %vm544, %v1663, 0.0
      %v1697 = vadd.f32 %v1695, %v1696
      %v1698 = vsel %vm544, %v1666, 0.0
      %v1699 = vadd.f32 %v1697, %v1698
      %v1700 = vsel %vm544, %v1669, 0.0
      %v1701 = vadd.f32 %v1699, %v1700
      %v1702 = vrot.slane %v1701, 4
      %v1703 = vadd.f32 %v1701, %v1702
      %v1704 = vrot.slane %v1703, 2
      %v1705 = vadd.f32 %v1703, %v1704
      %v1706 = vrot.slane %v1705, 1
      %v1707 = vadd.f32 %v1705, %v1706
      %vm1708 = vcmask 24576
      %1709 = vst.msk [vmem:[%s494] sm:$0x1] %vm1708, %v1707
      %v1710 = vmul.f32 %v1624, %v1624
      %v1711 = vmul.f32 %v1627, %v1627
      %v1712 = vmul.f32 %v1630, %v1630
      %v1713 = vmul.f32 %v1633, %v1633
      %v1714 = vmul.f32 %v1636, %v1636
      %v1715 = vmul.f32 %v1639, %v1639
      %v1716 = vmul.f32 %v1642, %v1642
      %v1717 = vmul.f32 %v1645, %v1645
      %v1718 = vmul.f32 %v1648, %v1648
      %v1719 = vmul.f32 %v1651, %v1651
      %v1720 = vmul.f32 %v1654, %v1654
      %v1721 = vmul.f32 %v1657, %v1657
      %v1722 = vmul.f32 %v1660, %v1660
      %v1723 = vmul.f32 %v1663, %v1663
      %v1724 = vmul.f32 %v1666, %v1666
      %v1725 = vmul.f32 %v1669, %v1669
      %v1726 = vsel %vm544, %v1710, 0.0
      %v1727 = vsel %vm544, %v1711, 0.0
      %v1728 = vadd.f32 %v1726, %v1727
      %v1729 = vsel %vm544, %v1712, 0.0
      %v1730 = vadd.f32 %v1728, %v1729
      %v1731 = vsel %vm544, %v1713, 0.0
      %v1732 = vadd.f32 %v1730, %v1731
      %v1733 = vsel %vm544, %v1714, 0.0
      %v1734 = vadd.f32 %v1732, %v1733
      %v1735 = vsel %vm544, %v1715, 0.0
      %v1736 = vadd.f32 %v1734, %v1735
      %v1737 = vsel %vm544, %v1716, 0.0
      %v1738 = vadd.f32 %v1736, %v1737
      %v1739 = vsel %vm544, %v1717, 0.0
      %v1740 = vadd.f32 %v1738, %v1739
      %v1741 = vsel %vm544, %v1718, 0.0
      %v1742 = vadd.f32 %v1740, %v1741
      %v1743 = vsel %vm544, %v1719, 0.0
      %v1744 = vadd.f32 %v1742, %v1743
      %v1745 = vsel %vm544, %v1720, 0.0
      %v1746 = vadd.f32 %v1744, %v1745
      %v1747 = vsel %vm544, %v1721, 0.0
      %v1748 = vadd.f32 %v1746, %v1747
      %v1749 = vsel %vm544, %v1722, 0.0
      %v1750 = vadd.f32 %v1748, %v1749
      %v1751 = vsel %vm544, %v1723, 0.0
      %v1752 = vadd.f32 %v1750, %v1751
      %v1753 = vsel %vm544, %v1724, 0.0
      %v1754 = vadd.f32 %v1752, %v1753
      %v1755 = vsel %vm544, %v1725, 0.0
      %v1756 = vadd.f32 %v1754, %v1755
      %v1757 = vrot.slane %v1756, 4
      %v1758 = vadd.f32 %v1756, %v1757
      %v1759 = vrot.slane %v1758, 2
      %v1760 = vadd.f32 %v1758, %v1759
      %v1761 = vrot.slane %v1760, 1
      %v1762 = vadd.f32 %v1760, %v1761
      %1763 = vst.msk [vmem:[%s494 + $0x1] sm:$0x1] %vm1708, %v1762
      %1764 = vst.msk [vmem:[%s485] sm:$0xff] %vm544, %v1624
      %1765 = vst.msk [vmem:[%s485 + $0x8] sm:$0xff] %vm544, %v1627
      %1766 = vst.msk [vmem:[%s485 + $0x10] sm:$0xff] %vm544, %v1630
      %1767 = vst.msk [vmem:[%s485 + $0x18] sm:$0xff] %vm544, %v1633
      %1768 = vst.msk [vmem:[%s485 + $0x20] sm:$0xff] %vm544, %v1636
      %1769 = vst.msk [vmem:[%s485 + $0x28] sm:$0xff] %vm544, %v1639
      %1770 = vst.msk [vmem:[%s485 + $0x30] sm:$0xff] %vm544, %v1642
      %1771 = vst.msk [vmem:[%s485 + $0x38] sm:$0xff] %vm544, %v1645
      %1772 = vst.msk [vmem:[%s485 + $0x40] sm:$0xff] %vm544, %v1648
      %1773 = vst.msk [vmem:[%s485 + $0x48] sm:$0xff] %vm544, %v1651
      %1774 = vst.msk [vmem:[%s485 + $0x50] sm:$0xff] %vm544, %v1654
      %1775 = vst.msk [vmem:[%s485 + $0x58] sm:$0xff] %vm544, %v1657
      %1776 = vst.msk [vmem:[%s485 + $0x60] sm:$0xff] %vm544, %v1660
      %1777 = vst.msk [vmem:[%s485 + $0x68] sm:$0xff] %vm544, %v1663
      %1778 = vst.msk [vmem:[%s485 + $0x70] sm:$0xff] %vm544, %v1666
      %1779 = vst.msk [vmem:[%s485 + $0x78] sm:$0xff] %vm544, %v1669
      %s1780 = smul.u32 8, %s25
      %p1781 = scmp.lt.s32.totalorder %s24, 1
      %s1782 = scalar_select %p1781, %s24, 1
      %p1783 = scmp.lt.s32.totalorder %s1780, 15
      %s1784 = scalar_select %p1783, %s1780, 15
      %s1785 = smul.addr %s1784, 2
      %s1786 = smul.addr %s1782, 32
      %s1787 = sadd.s32 %s1785, %s1786
      %s1788 = smul.addr %s1787, 8
      %s1789 = scalar_lea.vmem %s7, %s1788
      %p1790 = scmp.lt.s32.totalorder %s24, 1
      %s1791 = scalar_select %p1790, %s24, 1
      %p1792 = scmp.lt.s32.totalorder %s25, 1
      %s1793 = scalar_select %p1792, %s25, 1
      %s1794 = smul.addr %s1791, 2
      %s1795 = sadd.s32 %s1793, %s1794
      %s1796 = smul.addr %s1795, 2
      %s1797 = scalar_lea.vmem %s8, %s1796
      // Predicated region
      $region49: #{resblock_pallas.4} parent=47 // pred_check
        %p1798 = pneg %p236
      $region50: #{resblock_pallas.4} parent=47 // pred_check_branch
        %1800 = sbr.rel (%p1798) target = $region52
      $region51: #{resblock_pallas.4} parent=47 // pred_region
        %s1801 = smul.u32 8, %s25
      $region52: #{resblock_pallas.4} parent=47 // pred_fallthru
        _
      // Predicated region
      $region53: #{resblock_pallas.4} parent=47 // pred_check
        %p1802 = pneg %p264
      $region54: #{resblock_pallas.4} parent=47 // pred_check_branch
        %1804 = sbr.rel (%p1802) target = $region56
      $region55: #{resblock_pallas.4} parent=47 // pred_region
        _
      $region56: #{resblock_pallas.4} parent=47 // pred_fallthru
        _
    $region48: #{resblock_pallas.4} parent=5 // pred_fallthru
      _
    %p1805 = scmp.le.s32.totalorder 2, %s15
    // Predicated region
    $region57: #{resblock_pallas.4} parent=5 // pred_check
      %p1806 = pneg %p1805
    $region58: #{resblock_pallas.4} parent=5 // pred_check_branch
      %1808 = sbr.rel (%p1806) target = $region60
    $region59: #{resblock_pallas.4} parent=5 // pred_region
      %s1809 = ssub.s32 %s15, 2
      // Predicated region
      $region61: #{resblock_pallas.4} parent=59 // pred_check
        %p1810 = pneg %p242
      $region62: #{resblock_pallas.4} parent=59 // pred_check_branch
        %1812 = sbr.rel (%p1810) target = $region64
      $region63: #{resblock_pallas.4} parent=59 // pred_region
        %s1813 = smul.u32 8, %s27
        %p1814 = scmp.lt.s32.totalorder %s26, 1
        %s1815 = scalar_select %p1814, %s26, 1
        %p1816 = scmp.lt.s32.totalorder %s1813, 15
        %s1817 = scalar_select %p1816, %s1813, 15
        %s1818 = smul.addr %s1817, 2
        %s1819 = smul.addr %s1815, 32
        %s1820 = sadd.s32 %s1818, %s1819
        %s1821 = smul.addr %s1820, 8
        %s1822 = scalar_lea.vmem %s7, %s1821
      $region64: #{resblock_pallas.4} parent=59 // pred_fallthru
        _
      // Predicated region
      $region65: #{resblock_pallas.4} parent=59 // pred_check
        %p1823 = pneg %p270
      $region66: #{resblock_pallas.4} parent=59 // pred_check_branch
        %1825 = sbr.rel (%p1823) target = $region68
      $region67: #{resblock_pallas.4} parent=59 // pred_region
        %p1826 = scmp.lt.s32.totalorder %s26, 1
        %s1827 = scalar_select %p1826, %s26, 1
        %p1828 = scmp.lt.s32.totalorder %s27, 1
        %s1829 = scalar_select %p1828, %s27, 1
        %s1830 = smul.addr %s1827, 2
        %s1831 = sadd.s32 %s1829, %s1830
        %s1832 = smul.addr %s1831, 2
        %s1833 = scalar_lea.vmem %s8, %s1832
      $region68: #{resblock_pallas.4} parent=59 // pred_fallthru
        _
    $region60: #{resblock_pallas.4} parent=5 // pred_fallthru
      _
  $region6: #{resblock_pallas.4} parent=0 // loop_footer
    %s19 = sadd.s32 1, %s15
  $region7: #{resblock_pallas.4} parent=0 // loop_footer_branch
    %14 = sbr.rel target = $region3
  $region8: #{resblock_pallas.4} parent=0 // loop_exit
    _

</llo_original>
